<compile_context>
chip_gen: v7x
topology: tpu7x:2x2x1
jax: 0.10.0
libtpu: 0.0.40
codegen_flags: <defaults>
</compile_context>

<pallas_src>
import math
import functools

import jax
import jax.numpy as jnp
from jax.experimental import pallas as pl
from jax.experimental.pallas import tpu as pltpu


def _fusion_kernel(n_head, eps, seq_len, block_n, d_model, mxu_dtype,
                   video_ref, audio_ref,
                   wq_ref, bq_ref, wkv_ref, bkv_ref, wo_ref, bo_ref,
                   gamma_ref, beta_ref, out_ref):
    L, Nb, E, H = seq_len, block_n, d_model, n_head
    Dh = E // H
    B = Nb * H

    video = video_ref[...].astype(jnp.float32)          # (L, Nb, E)
    audio = audio_ref[...].astype(jnp.float32)

    # global_feat = video * audio (kept in f32 for residual + LayerNorm)
    g = video * audio                                    # (L, Nb, E)

    # Fold (L, Nb) into matmul rows; E stays on lanes so these reshapes are free.
    g2 = g.reshape(L * Nb, E)
    aud2 = audio.reshape(L * Nb, E)
    vid2 = video.reshape(L * Nb, E)

    cast = lambda x: x.astype(mxu_dtype)

    # In-projections. 1/sqrt(Dh) is folded into wq/bq on the host; K and V are
    # fused into one (E, 2E) matmul, applied to audio and video separately so
    # the memory = cat([audio, video]) input copy is never materialised.
    q = jnp.dot(cast(g2), wq_ref[...],
                preferred_element_type=jnp.float32) + bq_ref[...]
    kv_a = jnp.dot(cast(aud2), wkv_ref[...],
                   preferred_element_type=jnp.float32) + bkv_ref[...]
    kv_v = jnp.dot(cast(vid2), wkv_ref[...],
                   preferred_element_type=jnp.float32) + bkv_ref[...]

    # memory ordering: audio rows first (s = 0..L-1), then video (s = L..2L-1).
    k2 = jnp.concatenate([kv_a[:, :E], kv_v[:, :E]], axis=0)   # (2L*Nb, E)
    vv2 = jnp.concatenate([kv_a[:, E:], kv_v[:, E:]], axis=0)  # (2L*Nb, E)

    def heads_to_batch(x2, S):
        # (S*Nb, E) rows ordered (s, n) -> (Nb*H, S, Dh), b = n*H + h
        x4 = x2.reshape(S, Nb, H, Dh)
        return jnp.transpose(x4, (1, 2, 0, 3)).reshape(B, S, Dh)

    qh = heads_to_batch(q, L)                                   # (B, L,  Dh)
    kh = heads_to_batch(k2, 2 * L)                              # (B, 2L, Dh)
    vh = heads_to_batch(vv2, 2 * L)                             # (B, 2L, Dh)

    # One batched score contraction + softmax + one batched PV contraction.
    # TODO(synk): for long L, switch to a kv-chunk loop with online softmax so
    # the (B, L, 2L) score tensor never exceeds the VMEM budget (v7x: 64 MiB).
    s = jnp.einsum("bld,bsd->bls", cast(qh), cast(kh),
                   preferred_element_type=jnp.float32)          # (B, L, 2L)
    s = s - jnp.max(s, axis=-1, keepdims=True)
    p = jnp.exp(s)
    p = p * pl.reciprocal(jnp.sum(p, axis=-1, keepdims=True), approx=True)
    # attention dropout: identity (eval mode)
    o = jnp.einsum("bls,bsd->bld", cast(p), cast(vh),
                   preferred_element_type=jnp.float32)          # (B, L, Dh)

    # Recombine heads: reshapes + one transpose -> (L*Nb, E) rows (l, n).
    attn = jnp.transpose(o.reshape(Nb, H, L, Dh), (2, 0, 1, 3)).reshape(L * Nb, E)
    mid = jnp.dot(cast(attn), wo_ref[...],
                  preferred_element_type=jnp.float32) + bo_ref[...]

    # output = LayerNorm(global_feat + dropout(mid)); dropout = identity (eval)
    x = g2 + mid
    mu = jnp.mean(x, axis=-1, keepdims=True)
    var = jnp.mean((x - mu) * (x - mu), axis=-1, keepdims=True)
    y = (x - mu) * jax.lax.rsqrt(var + eps)
    y = y * gamma_ref[...] + beta_ref[...]

    out_ref[...] = y.reshape(L, Nb, E).astype(out_ref.dtype)


def forward_backward_fusion(video_feat, audio_feat, params, *, n_head,
                            eps=1e-5, block_n=None, mxu_dtype=jnp.float32):
    """video_feat, audio_feat: (L, N, E) seq-first, like nn.MultiheadAttention."""
    L, N, E = video_feat.shape
    assert E % n_head == 0
    Dh = E // n_head
    scale = 1.0 / math.sqrt(Dh)

    if block_n is None:
        # >= 2 grid steps when the batch allows it (v7x has 2 TensorCores and
        # "parallel" can only shard a grid with >= 2 steps); else whole batch.
        block_n = N // 2 if (N >= 16 and (N // 2) % 8 == 0) else N
    assert N % block_n == 0, "batch must be divisible by block_n"
    assert block_n == N or block_n % 8 == 0, (
        "batch tile must equal the batch or be a multiple of 8 (sublane rule)")
    num_blocks = N // block_n

    # Weights pre-transposed to (in, out); softmax scale folded into the Q
    # projection; K/V fused into one (E, 2E) weight. MXU operands optionally
    # pre-cast to bf16 (accumulation stays f32 via preferred_element_type).
    wq_t = (params["wq"].T * scale).astype(mxu_dtype)
    bq = (params["bq"] * scale).reshape(1, E).astype(jnp.float32)
    wkv_t = jnp.concatenate([params["wk"].T, params["wv"].T], axis=1).astype(mxu_dtype)
    bkv = jnp.concatenate([params["bk"], params["bv"]]).reshape(1, 2 * E).astype(jnp.float32)
    wo_t = params["wo"].T.astype(mxu_dtype)
    bo = params["bo"].reshape(1, E).astype(jnp.float32)
    gamma = params["ln_w"].reshape(1, E).astype(jnp.float32)
    beta = params["ln_b"].reshape(1, E).astype(jnp.float32)

    # Inputs / output stay 3-D seq-first: the (L, block_n, E) block keeps E on
    # lanes, so in-kernel reshapes only collapse leading dims (no relayout).
    seq_spec = pl.BlockSpec((L, block_n, E), lambda b: (0, b, 0))
    full = lambda shape: pl.BlockSpec(shape, lambda b: (0, 0))
    # TODO(synk): mark the constant weight/bias specs pipeline_mode=pl.Buffered(1)
    # once single-buffered constant blocks are verified on the target jax rev
    # (saves the ~4*E*E*itemsize double-buffer; matters most on v7x).

    itemsize_in = jnp.dtype(video_feat.dtype).itemsize
    itemsize_w = jnp.dtype(mxu_dtype).itemsize
    vmem_est = (
        3 * 2 * L * block_n * E * itemsize_in             # in/out blocks, 2x-buffered
        + 2 * (4 * E * E * itemsize_w + 8 * E * 4)        # weights + biases, 2x-buffered
        + 4 * (8 * L * block_n * E                        # f32 activations
               + 2 * block_n * n_head * 2 * L * L))       # scores + probs
    vmem_limit = int(min(96 * 2 ** 20, max(32 * 2 ** 20, 2 * vmem_est)))

    flops = 12 * L * N * E * E + 8 * N * L * L * E
    transcendentals = 2 * N * n_head * L * L + N * L * (n_head + 1)
    bytes_accessed = (3 * L * N * E * itemsize_in
                      + 4 * E * E * itemsize_w + 8 * E * 4)

    out = pl.pallas_call(
        functools.partial(_fusion_kernel, n_head, eps, L, block_n, E, mxu_dtype),
        out_shape=jax.ShapeDtypeStruct((L, N, E), video_feat.dtype),
        grid_spec=pltpu.PrefetchScalarGridSpec(
            num_scalar_prefetch=0,
            grid=(num_blocks,),
            in_specs=[seq_spec, seq_spec,
                      full((E, E)), full((1, E)),
                      full((E, 2 * E)), full((1, 2 * E)),
                      full((E, E)), full((1, E)),
                      full((1, E)), full((1, E))],
            out_specs=seq_spec),
        compiler_params=pltpu.CompilerParams(
            dimension_semantics=("parallel",),
            vmem_limit_bytes=vmem_limit),
        cost_estimate=pl.CostEstimate(
            flops=flops, transcendentals=transcendentals,
            bytes_accessed=bytes_accessed),
    )(video_feat, audio_feat, wq_t, bq, wkv_t, bkv, wo_t, bo, gamma, beta)
    return out


def reference_forward(video_feat, audio_feat, params, *, n_head, eps=1e-5):
    """Pure-JAX mirror of the PyTorch forward (eval mode) for verification."""
    L, N, E = video_feat.shape
    Dh = E // n_head
    g = video_feat * audio_feat                              # (L, N, E)
    mem = jnp.concatenate([audio_feat, video_feat], axis=0)  # (2L, N, E)

    q = jnp.einsum("lne,oe->lno", g, params["wq"]) + params["bq"]
    k = jnp.einsum("sne,oe->sno", mem, params["wk"]) + params["bk"]
    v = jnp.einsum("sne,oe->sno", mem, params["wv"]) + params["bv"]

    qh = q.reshape(L, N, n_head, Dh)
    kh = k.reshape(2 * L, N, n_head, Dh)
    vh = v.reshape(2 * L, N, n_head, Dh)
    scores = jnp.einsum("lnhd,snhd->nhls", qh, kh) / math.sqrt(Dh)
    probs = jax.nn.softmax(scores, axis=-1)
    attn = jnp.einsum("nhls,snhd->lnhd", probs, vh).reshape(L, N, E)
    mid = jnp.einsum("lne,oe->lno", attn, params["wo"]) + params["bo"]

    x = g + mid
    mu = jnp.mean(x, axis=-1, keepdims=True)
    var = jnp.mean((x - mu) ** 2, axis=-1, keepdims=True)
    return (x - mu) / jnp.sqrt(var + eps) * params["ln_w"] + params["ln_b"]


def make_params(key, d_model):
    ks = jax.random.split(key, 5)
    s = 1.0 / math.sqrt(d_model)
    in_proj_w = jax.random.uniform(ks[0], (3 * d_model, d_model),
                                   minval=-s, maxval=s, dtype=jnp.float32)
    in_proj_b = jax.random.uniform(ks[1], (3 * d_model,),
                                   minval=-s, maxval=s, dtype=jnp.float32)
    out_proj_w = jax.random.uniform(ks[2], (d_model, d_model),
                                    minval=-s, maxval=s, dtype=jnp.float32)
    out_proj_b = jax.random.uniform(ks[3], (d_model,),
                                    minval=-s, maxval=s, dtype=jnp.float32)
    return {
        "wq": in_proj_w[0:d_model],
        "wk": in_proj_w[d_model:2 * d_model],
        "wv": in_proj_w[2 * d_model:],
        "bq": in_proj_b[0:d_model],
        "bk": in_proj_b[d_model:2 * d_model],
        "bv": in_proj_b[2 * d_model:],
        "wo": out_proj_w,
        "bo": out_proj_b,
        "ln_w": jnp.ones((d_model,), jnp.float32),
        "ln_b": jnp.zeros((d_model,), jnp.float32),
    }


if __name__ == "__main__":
    # small shapes: seq L=8, batch N=2, d_model E=32, heads=4
    L, N, E, H = 8, 2, 32, 4
    key = jax.random.PRNGKey(0)
    k1, k2, k3 = jax.random.split(key, 3)

    video_feat = jax.random.normal(k1, (L, N, E), dtype=jnp.float32)
    audio_feat = jax.random.normal(k2, (L, N, E), dtype=jnp.float32)
    params = make_params(k3, E)

    ref = reference_forward(video_feat, audio_feat, params, n_head=H)

    # f32 MXU path (default): tight check vs reference (approx reciprocal only).
    out = forward_backward_fusion(video_feat, audio_feat, params, n_head=H)
    out = jax.block_until_ready(out)
    assert out.shape == (L, N, E)
    assert jnp.allclose(out, ref, atol=2e-3, rtol=2e-3), "f32 mismatch vs reference"

    # bf16 MXU path: weights + matmul operands bf16, f32 accumulate/softmax/LN.
    out_bf16 = forward_backward_fusion(video_feat, audio_feat, params,
                                       n_head=H, mxu_dtype=jnp.bfloat16)
    out_bf16 = jax.block_until_ready(out_bf16)
    assert jnp.allclose(out_bf16, ref, atol=1e-1, rtol=1e-1), "bf16 path diverged"

    # Multi-block grid (block_n < N, >= 2 parallel steps for v7x's 2 TCs).
    N2 = 16
    k4, k5 = jax.random.split(jax.random.PRNGKey(1))
    video2 = jax.random.normal(k4, (L, N2, E), dtype=jnp.float32)
    audio2 = jax.random.normal(k5, (L, N2, E), dtype=jnp.float32)
    out2 = forward_backward_fusion(video2, audio2, params, n_head=H)
    out2 = jax.block_until_ready(out2)
    ref2 = reference_forward(video2, audio2, params, n_head=H)
    assert jnp.allclose(out2, ref2, atol=2e-3, rtol=2e-3), "tiled-grid mismatch"

    # TODO(synk): training-mode dropout (nn.Dropout / attention dropout) is not
    # modeled; forward is eval-mode deterministic.
    print("KERNEL_OK")
</pallas_src>

<mosaic_0001>
module attributes {stable_mosaic.version = 11 : i64} {
  func.func @_fusion_kernel(%arg0: i32, %arg1: memref<8x2x32xf32, #tpu.memory_space<vmem>>, %arg2: memref<8x2x32xf32, #tpu.memory_space<vmem>>, %arg3: memref<32x32xf32, #tpu.memory_space<vmem>>, %arg4: memref<1x32xf32, #tpu.memory_space<vmem>>, %arg5: memref<32x64xf32, #tpu.memory_space<vmem>>, %arg6: memref<1x64xf32, #tpu.memory_space<vmem>>, %arg7: memref<32x32xf32, #tpu.memory_space<vmem>>, %arg8: memref<1x32xf32, #tpu.memory_space<vmem>>, %arg9: memref<1x32xf32, #tpu.memory_space<vmem>>, %arg10: memref<1x32xf32, #tpu.memory_space<vmem>>, %arg11: memref<8x2x32xf32, #tpu.memory_space<vmem>>) attributes {dimension_semantics = [#tpu.dimension_semantics<parallel>], iteration_bounds = array<i64: 1>, scalar_prefetch = 0 : i64, scratch_operands = 0 : i64, tpu.core_type = #tpu.core_type<tc>, window_params = [{transform_indices = @transform_0, window_bounds = array<i64: 8, 2, 32>}, {transform_indices = @transform_1, window_bounds = array<i64: 8, 2, 32>}, {pipeline_mode = #tpu.pipeline_mode<synchronous>, transform_indices = @transform_2, window_bounds = array<i64: 32, 32>}, {pipeline_mode = #tpu.pipeline_mode<synchronous>, transform_indices = @transform_3, window_bounds = array<i64: 1, 32>}, {pipeline_mode = #tpu.pipeline_mode<synchronous>, transform_indices = @transform_4, window_bounds = array<i64: 32, 64>}, {pipeline_mode = #tpu.pipeline_mode<synchronous>, transform_indices = @transform_5, window_bounds = array<i64: 1, 64>}, {pipeline_mode = #tpu.pipeline_mode<synchronous>, transform_indices = @transform_6, window_bounds = array<i64: 32, 32>}, {pipeline_mode = #tpu.pipeline_mode<synchronous>, transform_indices = @transform_7, window_bounds = array<i64: 1, 32>}, {pipeline_mode = #tpu.pipeline_mode<synchronous>, transform_indices = @transform_8, window_bounds = array<i64: 1, 32>}, {pipeline_mode = #tpu.pipeline_mode<synchronous>, transform_indices = @transform_9, window_bounds = array<i64: 1, 32>}, {transform_indices = @transform_10, window_bounds = array<i64: 8, 2, 32>}]} {
    %c0 = arith.constant 0 : index
    %c0_0 = arith.constant 0 : index
    %c0_1 = arith.constant 0 : index
    %0 = vector.load %arg1[%c0, %c0_0, %c0_1] : memref<8x2x32xf32, #tpu.memory_space<vmem>>, vector<8x2x32xf32>
    %c0_2 = arith.constant 0 : index
    %c0_3 = arith.constant 0 : index
    %c0_4 = arith.constant 0 : index
    %1 = vector.load %arg2[%c0_2, %c0_3, %c0_4] : memref<8x2x32xf32, #tpu.memory_space<vmem>>, vector<8x2x32xf32>
    %2 = arith.mulf %0, %1 : vector<8x2x32xf32>
    %3 = vector.shape_cast %2 : vector<8x2x32xf32> to vector<16x32xf32>
    %4 = vector.shape_cast %1 : vector<8x2x32xf32> to vector<16x32xf32>
    %5 = vector.shape_cast %0 : vector<8x2x32xf32> to vector<16x32xf32>
    %c0_5 = arith.constant 0 : index
    %c0_6 = arith.constant 0 : index
    %6 = vector.load %arg3[%c0_5, %c0_6] : memref<32x32xf32, #tpu.memory_space<vmem>>, vector<32x32xf32>
    %cst = arith.constant dense<0.000000e+00> : vector<16x32xf32>
    %7 = tpu.matmul %3, %6, %cst {dimension_numbers = #tpu.dot_dimension_numbers<[1], [0], [0], [1], [0, 0, 1, 1], [], []>} : vector<16x32xf32>, vector<32x32xf32>, vector<16x32xf32> -> vector<16x32xf32>
    %c0_7 = arith.constant 0 : index
    %c0_8 = arith.constant 0 : index
    %8 = vector.load %arg4[%c0_7, %c0_8] : memref<1x32xf32, #tpu.memory_space<vmem>>, vector<1x32xf32>
    %9 = vector.broadcast %8 : vector<1x32xf32> to vector<16x32xf32>
    %10 = arith.addf %7, %9 : vector<16x32xf32>
    %c0_9 = arith.constant 0 : index
    %c0_10 = arith.constant 0 : index
    %11 = vector.load %arg5[%c0_9, %c0_10] : memref<32x64xf32, #tpu.memory_space<vmem>>, vector<32x64xf32>
    %cst_11 = arith.constant dense<0.000000e+00> : vector<16x64xf32>
    %12 = tpu.matmul %4, %11, %cst_11 {dimension_numbers = #tpu.dot_dimension_numbers<[1], [0], [0], [1], [0, 0, 1, 1], [], []>} : vector<16x32xf32>, vector<32x64xf32>, vector<16x64xf32> -> vector<16x64xf32>
    %c0_12 = arith.constant 0 : index
    %c0_13 = arith.constant 0 : index
    %13 = vector.load %arg6[%c0_12, %c0_13] : memref<1x64xf32, #tpu.memory_space<vmem>>, vector<1x64xf32>
    %14 = vector.broadcast %13 : vector<1x64xf32> to vector<16x64xf32>
    %15 = arith.addf %12, %14 : vector<16x64xf32>
    %c0_14 = arith.constant 0 : index
    %c0_15 = arith.constant 0 : index
    %16 = vector.load %arg5[%c0_14, %c0_15] : memref<32x64xf32, #tpu.memory_space<vmem>>, vector<32x64xf32>
    %cst_16 = arith.constant dense<0.000000e+00> : vector<16x64xf32>
    %17 = tpu.matmul %5, %16, %cst_16 {dimension_numbers = #tpu.dot_dimension_numbers<[1], [0], [0], [1], [0, 0, 1, 1], [], []>} : vector<16x32xf32>, vector<32x64xf32>, vector<16x64xf32> -> vector<16x64xf32>
    %c0_17 = arith.constant 0 : index
    %c0_18 = arith.constant 0 : index
    %18 = vector.load %arg6[%c0_17, %c0_18] : memref<1x64xf32, #tpu.memory_space<vmem>>, vector<1x64xf32>
    %19 = vector.broadcast %18 : vector<1x64xf32> to vector<16x64xf32>
    %20 = arith.addf %17, %19 : vector<16x64xf32>
    %21 = vector.extract_strided_slice %15 {offsets = [0, 0], sizes = [16, 32], strides = [1, 1]} : vector<16x64xf32> to vector<16x32xf32>
    %22 = vector.extract_strided_slice %20 {offsets = [0, 0], sizes = [16, 32], strides = [1, 1]} : vector<16x64xf32> to vector<16x32xf32>
    %23 = tpu.concatenate %21, %22 in 0 : vector<16x32xf32>, vector<16x32xf32> -> vector<32x32xf32>
    %24 = vector.extract_strided_slice %15 {offsets = [0, 32], sizes = [16, 32], strides = [1, 1]} : vector<16x64xf32> to vector<16x32xf32>
    %25 = vector.extract_strided_slice %20 {offsets = [0, 32], sizes = [16, 32], strides = [1, 1]} : vector<16x64xf32> to vector<16x32xf32>
    %26 = tpu.concatenate %24, %25 in 0 : vector<16x32xf32>, vector<16x32xf32> -> vector<32x32xf32>
    %27 = vector.shape_cast %10 : vector<16x32xf32> to vector<8x2x4x8xf32>
    %28 = tpu.transpose %27, [1, 2, 0, 3] : vector<8x2x4x8xf32> -> vector<2x4x8x8xf32>
    %29 = vector.shape_cast %28 : vector<2x4x8x8xf32> to vector<8x8x8xf32>
    %30 = vector.shape_cast %23 : vector<32x32xf32> to vector<16x2x4x8xf32>
    %31 = tpu.transpose %30, [1, 2, 0, 3] : vector<16x2x4x8xf32> -> vector<2x4x16x8xf32>
    %32 = vector.shape_cast %31 : vector<2x4x16x8xf32> to vector<8x16x8xf32>
    %33 = vector.shape_cast %26 : vector<32x32xf32> to vector<16x2x4x8xf32>
    %34 = tpu.transpose %33, [1, 2, 0, 3] : vector<16x2x4x8xf32> -> vector<2x4x16x8xf32>
    %35 = vector.shape_cast %34 : vector<2x4x16x8xf32> to vector<8x16x8xf32>
    "tpu.trace_start"() <{level = 10 : i32, message = "bld,bsd->bls"}> : () -> ()
    %cst_19 = arith.constant dense<0.000000e+00> : vector<8x8x16xf32>
    %36 = tpu.matmul %29, %32, %cst_19 {dimension_numbers = #tpu.dot_dimension_numbers<[2], [2], [1], [1], [0, 0, 0, 1, 1, 1], [0], [0]>} : vector<8x8x8xf32>, vector<8x16x8xf32>, vector<8x8x16xf32> -> vector<8x8x16xf32>
    "tpu.trace_stop"() : () -> ()
    %cst_20 = arith.constant dense<0xFF800000> : vector<8x8xf32>
    %37 = vector.multi_reduction <maximumf>, %36, %cst_20 [2] : vector<8x8x16xf32> to vector<8x8xf32>
    %38 = vector.shape_cast %37 : vector<8x8xf32> to vector<8x8x1xf32>
    %39 = vector.broadcast %38 : vector<8x8x1xf32> to vector<8x8x16xf32>
    %40 = arith.subf %36, %39 : vector<8x8x16xf32>
    %41 = math.exp %40 : vector<8x8x16xf32>
    %cst_21 = arith.constant dense<0.000000e+00> : vector<8x8xf32>
    %42 = vector.multi_reduction <add>, %41, %cst_21 [2] : vector<8x8x16xf32> to vector<8x8xf32>
    %43 = vector.shape_cast %42 : vector<8x8xf32> to vector<8x8x1xf32>
    %44 = tpu.reciprocal %43 {approx = true} : vector<8x8x1xf32> -> vector<8x8x1xf32>
    %45 = vector.broadcast %44 : vector<8x8x1xf32> to vector<8x8x16xf32>
    %46 = arith.mulf %41, %45 : vector<8x8x16xf32>
    "tpu.trace_start"() <{level = 10 : i32, message = "bls,bsd->bld"}> : () -> ()
    %cst_22 = arith.constant dense<0.000000e+00> : vector<8x8x8xf32>
    %47 = tpu.matmul %46, %35, %cst_22 {dimension_numbers = #tpu.dot_dimension_numbers<[2], [1], [1], [2], [0, 0, 0, 1, 1, 2], [0], [0]>} : vector<8x8x16xf32>, vector<8x16x8xf32>, vector<8x8x8xf32> -> vector<8x8x8xf32>
    "tpu.trace_stop"() : () -> ()
    %48 = vector.shape_cast %47 : vector<8x8x8xf32> to vector<2x4x8x8xf32>
    %49 = tpu.transpose %48, [2, 0, 1, 3] : vector<2x4x8x8xf32> -> vector<8x2x4x8xf32>
    %50 = vector.shape_cast %49 : vector<8x2x4x8xf32> to vector<16x32xf32>
    %c0_23 = arith.constant 0 : index
    %c0_24 = arith.constant 0 : index
    %51 = vector.load %arg7[%c0_23, %c0_24] : memref<32x32xf32, #tpu.memory_space<vmem>>, vector<32x32xf32>
    %cst_25 = arith.constant dense<0.000000e+00> : vector<16x32xf32>
    %52 = tpu.matmul %50, %51, %cst_25 {dimension_numbers = #tpu.dot_dimension_numbers<[1], [0], [0], [1], [0, 0, 1, 1], [], []>} : vector<16x32xf32>, vector<32x32xf32>, vector<16x32xf32> -> vector<16x32xf32>
    %c0_26 = arith.constant 0 : index
    %c0_27 = arith.constant 0 : index
    %53 = vector.load %arg8[%c0_26, %c0_27] : memref<1x32xf32, #tpu.memory_space<vmem>>, vector<1x32xf32>
    %54 = vector.broadcast %53 : vector<1x32xf32> to vector<16x32xf32>
    %55 = arith.addf %52, %54 : vector<16x32xf32>
    %56 = arith.addf %3, %55 : vector<16x32xf32>
    %cst_28 = arith.constant dense<0.000000e+00> : vector<16xf32>
    %57 = vector.multi_reduction <add>, %56, %cst_28 [1] : vector<16x32xf32> to vector<16xf32>
    %58 = vector.shape_cast %57 : vector<16xf32> to vector<16x1xf32>
    %cst_29 = arith.constant 3.200000e+01 : f32
    %59 = vector.broadcast %cst_29 : f32 to vector<16x1xf32>
    %60 = arith.divf %58, %59 : vector<16x1xf32>
    %61 = vector.broadcast %60 : vector<16x1xf32> to vector<16x32xf32>
    %62 = arith.subf %56, %61 : vector<16x32xf32>
    %63 = vector.broadcast %60 : vector<16x1xf32> to vector<16x32xf32>
    %64 = arith.subf %56, %63 : vector<16x32xf32>
    %65 = arith.mulf %62, %64 : vector<16x32xf32>
    %cst_30 = arith.constant dense<0.000000e+00> : vector<16xf32>
    %66 = vector.multi_reduction <add>, %65, %cst_30 [1] : vector<16x32xf32> to vector<16xf32>
    %67 = vector.shape_cast %66 : vector<16xf32> to vector<16x1xf32>
    %cst_31 = arith.constant 3.200000e+01 : f32
    %68 = vector.broadcast %cst_31 : f32 to vector<16x1xf32>
    %69 = arith.divf %67, %68 : vector<16x1xf32>
    %70 = vector.broadcast %60 : vector<16x1xf32> to vector<16x32xf32>
    %71 = arith.subf %56, %70 : vector<16x32xf32>
    %cst_32 = arith.constant 9.99999974E-6 : f32
    %72 = vector.broadcast %cst_32 : f32 to vector<16x1xf32>
    %73 = arith.addf %69, %72 : vector<16x1xf32>
    %74 = math.rsqrt %73 : vector<16x1xf32>
    %75 = vector.broadcast %74 : vector<16x1xf32> to vector<16x32xf32>
    %76 = arith.mulf %71, %75 : vector<16x32xf32>
    %c0_33 = arith.constant 0 : index
    %c0_34 = arith.constant 0 : index
    %77 = vector.load %arg9[%c0_33, %c0_34] : memref<1x32xf32, #tpu.memory_space<vmem>>, vector<1x32xf32>
    %78 = vector.broadcast %77 : vector<1x32xf32> to vector<16x32xf32>
    %79 = arith.mulf %76, %78 : vector<16x32xf32>
    %c0_35 = arith.constant 0 : index
    %c0_36 = arith.constant 0 : index
    %80 = vector.load %arg10[%c0_35, %c0_36] : memref<1x32xf32, #tpu.memory_space<vmem>>, vector<1x32xf32>
    %81 = vector.broadcast %80 : vector<1x32xf32> to vector<16x32xf32>
    %82 = arith.addf %79, %81 : vector<16x32xf32>
    %83 = vector.shape_cast %82 : vector<16x32xf32> to vector<8x2x32xf32>
    %c0_37 = arith.constant 0 : index
    %c0_38 = arith.constant 0 : index
    %c0_39 = arith.constant 0 : index
    %84 = vector.load %arg11[%c0_37, %c0_38, %c0_39] : memref<8x2x32xf32, #tpu.memory_space<vmem>>, vector<8x2x32xf32>
    tpu.vector_store %arg11[%c0_37, %c0_38, %c0_39], %83 {strides = array<i32>} : memref<8x2x32xf32, #tpu.memory_space<vmem>>, vector<8x2x32xf32>,
    return
  }
  func.func @transform_0(%arg0: i32) -> (i32, i32, i32) {
    %c0_i32 = arith.constant 0 : i32
    %c0_i32_0 = arith.constant 0 : i32
    %c0_i32_1 = arith.constant 0 : i32
    return %c0_i32, %arg0, %c0_i32_0 : i32, i32, i32
  }
  func.func @transform_1(%arg0: i32) -> (i32, i32, i32) {
    %c0_i32 = arith.constant 0 : i32
    %c0_i32_0 = arith.constant 0 : i32
    %c0_i32_1 = arith.constant 0 : i32
    return %c0_i32, %arg0, %c0_i32_0 : i32, i32, i32
  }
  func.func @transform_2(%arg0: i32) -> (i32, i32) {
    %c0_i32 = arith.constant 0 : i32
    %c0_i32_0 = arith.constant 0 : i32
    %c0_i32_1 = arith.constant 0 : i32
    return %c0_i32, %c0_i32_0 : i32, i32
  }
  func.func @transform_3(%arg0: i32) -> (i32, i32) {
    %c0_i32 = arith.constant 0 : i32
    %c0_i32_0 = arith.constant 0 : i32
    %c0_i32_1 = arith.constant 0 : i32
    return %c0_i32, %c0_i32_0 : i32, i32
  }
  func.func @transform_4(%arg0: i32) -> (i32, i32) {
    %c0_i32 = arith.constant 0 : i32
    %c0_i32_0 = arith.constant 0 : i32
    %c0_i32_1 = arith.constant 0 : i32
    return %c0_i32, %c0_i32_0 : i32, i32
  }
  func.func @transform_5(%arg0: i32) -> (i32, i32) {
    %c0_i32 = arith.constant 0 : i32
    %c0_i32_0 = arith.constant 0 : i32
    %c0_i32_1 = arith.constant 0 : i32
    return %c0_i32, %c0_i32_0 : i32, i32
  }
  func.func @transform_6(%arg0: i32) -> (i32, i32) {
    %c0_i32 = arith.constant 0 : i32
    %c0_i32_0 = arith.constant 0 : i32
    %c0_i32_1 = arith.constant 0 : i32
    return %c0_i32, %c0_i32_0 : i32, i32
  }
  func.func @transform_7(%arg0: i32) -> (i32, i32) {
    %c0_i32 = arith.constant 0 : i32
    %c0_i32_0 = arith.constant 0 : i32
    %c0_i32_1 = arith.constant 0 : i32
    return %c0_i32, %c0_i32_0 : i32, i32
  }
  func.func @transform_8(%arg0: i32) -> (i32, i32) {
    %c0_i32 = arith.constant 0 : i32
    %c0_i32_0 = arith.constant 0 : i32
    %c0_i32_1 = arith.constant 0 : i32
    return %c0_i32, %c0_i32_0 : i32, i32
  }
  func.func @transform_9(%arg0: i32) -> (i32, i32) {
    %c0_i32 = arith.constant 0 : i32
    %c0_i32_0 = arith.constant 0 : i32
    %c0_i32_1 = arith.constant 0 : i32
    return %c0_i32, %c0_i32_0 : i32, i32
  }
  func.func @transform_10(%arg0: i32) -> (i32, i32, i32) {
    %c0_i32 = arith.constant 0 : i32
    %c0_i32_0 = arith.constant 0 : i32
    %c0_i32_1 = arith.constant 0 : i32
    return %c0_i32, %arg0, %c0_i32_0 : i32, i32, i32
  }
}

</mosaic_0001>

<llo_original>
// kernel: tpu_custom_call.1
$region0: #{tpu_custom_call.1}
  #allocation0 [shape = 'u32[]', space=smem, size = 0x4, offset = 0x4, fixed_abs, tag = 'smem constant byte address 0x4 - core index']
  #allocation1 [shape = 'u32[144,128]{1,0:T(1,128)}', space=vmem, size = 0x12000, scoped, tag = 'internal scratch']
  %s0 = inlined_call_operand.hbm [shape: f32[8,2,32], index: 0, kind: input, shape index: {}]
  %s1 = inlined_call_operand.hbm [shape: f32[8,2,32], index: 1, kind: input, shape index: {}]
  %s2 = inlined_call_operand.hbm [shape: f32[32,32], index: 2, kind: input, shape index: {}]
  %s3 = inlined_call_operand.vmem [shape: f32[1,32], index: 3, kind: input, shape index: {}]
  %s4 = inlined_call_operand.hbm [shape: f32[32,64], index: 4, kind: input, shape index: {}]
  %s5 = inlined_call_operand.vmem [shape: f32[1,64], index: 5, kind: input, shape index: {}]
  %s6 = inlined_call_operand.hbm [shape: f32[32,32], index: 6, kind: input, shape index: {}]
  %s7 = inlined_call_operand.vmem [shape: f32[1,32], index: 7, kind: input, shape index: {}]
  %s8 = inlined_call_operand.vmem [shape: f32[1,32], index: 8, kind: input, shape index: {}]
  %s9 = inlined_call_operand.vmem [shape: f32[1,32], index: 9, kind: input, shape index: {}]
  %s10 = inlined_call_operand.hbm [shape: f32[8,2,32], index: 10, kind: output, shape index: {}]
  %s11 = sld [smem:[#allocation0]]
  $region70: #{tpu_custom_call.1} parent=0
    _
  %s13 = ssub.s32 1, %s11
  %s14 = scalar_select 0, %s13, %s11
  $region1: #{tpu_custom_call.1} parent=0
    #allocation2 [shape = 'u8[8192]{0}', space=vmem, size = 0x2000, scoped, tag = 'input window, operand 0, single buffered']
    #allocation3 [shape = 's32[1]{0}', space=sflag, size = 0x4, scoped, tag = 'scoped memory for tpu_custom_call.1']
    #allocation4 [shape = 's32[1]{0}', space=sflag, size = 0x4, scoped, tag = 'scoped memory for tpu_custom_call.1']
    #allocation5 [shape = 'u8[8192]{0}', space=vmem, size = 0x2000, scoped, tag = 'input window, operand 1, single buffered']
    #allocation6 [shape = 's32[1]{0}', space=sflag, size = 0x4, scoped, tag = 'scoped memory for tpu_custom_call.1']
    #allocation7 [shape = 'u8[16384]{0}', space=vmem, size = 0x4000, scoped, tag = 'input window, operand 2, single buffered']
    #allocation8 [shape = 'u8[16384]{0}', space=vmem, size = 0x4000, scoped, tag = 'input window, operand 4, single buffered']
    #allocation9 [shape = 's32[1]{0}', space=sflag, size = 0x4, scoped, tag = 'scoped memory for tpu_custom_call.1']
    #allocation10 [shape = 'u8[16384]{0}', space=vmem, size = 0x4000, scoped, tag = 'input window, operand 6, single buffered']
    #allocation11 [shape = 'u8[8192]{0}', space=vmem, size = 0x2000, scoped, tag = 'output window, operand 0, single buffered']
    %15 = vsyncpa [#allocation3], 0
    %16 = vsyncpa [#allocation6], 0
    %17 = vsyncpa [#allocation9], 0
    %18 = vsyncpa [#allocation4], 0
    // Predicated region
    $region2: #{tpu_custom_call.1} parent=1 // pred_check
      _
    $region3: #{tpu_custom_call.1} parent=1 // pred_check_branch
      %20 = sbr.rel (0) target = $region5
    $region4: #{tpu_custom_call.1} parent=1 // pred_region
      %s22 = ssub.s32 256, 256
      %23 = vsyncadd [#allocation3], %s22
      %s24 = sshll.u32 [#allocation2], 4
      %s25 = int_to_ptr.vmem [resolvable:$true] %s24
      %30 = dma.hbm_to_vmem [thread:$0]  %s0, 256, %s25, [#allocation3], 32, 32, 2
    $region5: #{tpu_custom_call.1} parent=1 // pred_fallthru
      _
    // Predicated region
    $region6: #{tpu_custom_call.1} parent=1 // pred_check
      _
    $region7: #{tpu_custom_call.1} parent=1 // pred_check_branch
      %32 = sbr.rel (0) target = $region9
    $region8: #{tpu_custom_call.1} parent=1 // pred_region
      %s34 = ssub.s32 256, 256
      %35 = vsyncadd [#allocation6], %s34
      %s36 = sshll.u32 [#allocation5], 4
      %s37 = int_to_ptr.vmem [resolvable:$true] %s36
      %42 = dma.hbm_to_vmem [thread:$0]  %s1, 256, %s37, [#allocation6], 32, 32, 2
    $region9: #{tpu_custom_call.1} parent=1 // pred_fallthru
      _
    // Predicated region
    $region10: #{tpu_custom_call.1} parent=1 // pred_check
      _
    $region11: #{tpu_custom_call.1} parent=1 // pred_check_branch
      %44 = sbr.rel (0) target = $region13
    $region12: #{tpu_custom_call.1} parent=1 // pred_region
      %s46 = ssub.s32 512, 512
      %47 = vsyncadd [#allocation6], %s46
      %s48 = sshll.u32 [#allocation7], 4
      %s49 = int_to_ptr.vmem [resolvable:$true] %s48
      %54 = dma.hbm_to_vmem [thread:$0]  %s2, 512, %s49, [#allocation6], 128, 128, 8
    $region13: #{tpu_custom_call.1} parent=1 // pred_fallthru
      _
    // Predicated region
    $region14: #{tpu_custom_call.1} parent=1 // pred_check
      _
    $region15: #{tpu_custom_call.1} parent=1 // pred_check_branch
      %56 = sbr.rel (0) target = $region17
    $region16: #{tpu_custom_call.1} parent=1 // pred_region
      _
    $region17: #{tpu_custom_call.1} parent=1 // pred_fallthru
      _
    // Predicated region
    $region18: #{tpu_custom_call.1} parent=1 // pred_check
      _
    $region19: #{tpu_custom_call.1} parent=1 // pred_check_branch
      %58 = sbr.rel (0) target = $region21
    $region20: #{tpu_custom_call.1} parent=1 // pred_region
      %s60 = ssub.s32 512, 512
      %61 = vsyncadd [#allocation9], %s60
      %s62 = sshll.u32 [#allocation8], 4
      %s63 = int_to_ptr.vmem [resolvable:$true] %s62
      %68 = dma.hbm_to_vmem [thread:$0]  %s4, 512, %s63, [#allocation9], 128, 128, 8
    $region21: #{tpu_custom_call.1} parent=1 // pred_fallthru
      _
    // Predicated region
    $region22: #{tpu_custom_call.1} parent=1 // pred_check
      _
    $region23: #{tpu_custom_call.1} parent=1 // pred_check_branch
      %70 = sbr.rel (0) target = $region25
    $region24: #{tpu_custom_call.1} parent=1 // pred_region
      _
    $region25: #{tpu_custom_call.1} parent=1 // pred_fallthru
      _
    // Predicated region
    $region26: #{tpu_custom_call.1} parent=1 // pred_check
      _
    $region27: #{tpu_custom_call.1} parent=1 // pred_check_branch
      %72 = sbr.rel (0) target = $region29
    $region28: #{tpu_custom_call.1} parent=1 // pred_region
      %s74 = ssub.s32 512, 512
      %75 = vsyncadd [#allocation9], %s74
      %s76 = sshll.u32 [#allocation10], 4
      %s77 = int_to_ptr.vmem [resolvable:$true] %s76
      %82 = dma.hbm_to_vmem [thread:$0]  %s6, 512, %s77, [#allocation9], 128, 128, 8
    $region29: #{tpu_custom_call.1} parent=1 // pred_fallthru
      _
    // Predicated region
    $region30: #{tpu_custom_call.1} parent=1 // pred_check
      _
    $region31: #{tpu_custom_call.1} parent=1 // pred_check_branch
      %84 = sbr.rel (0) target = $region33
    $region32: #{tpu_custom_call.1} parent=1 // pred_region
      _
    $region33: #{tpu_custom_call.1} parent=1 // pred_fallthru
      _
    // Predicated region
    $region34: #{tpu_custom_call.1} parent=1 // pred_check
      _
    $region35: #{tpu_custom_call.1} parent=1 // pred_check_branch
      %86 = sbr.rel (0) target = $region37
    $region36: #{tpu_custom_call.1} parent=1 // pred_region
      _
    $region37: #{tpu_custom_call.1} parent=1 // pred_fallthru
      _
    // Predicated region
    $region38: #{tpu_custom_call.1} parent=1 // pred_check
      _
    $region39: #{tpu_custom_call.1} parent=1 // pred_check_branch
      %88 = sbr.rel (0) target = $region41
    $region40: #{tpu_custom_call.1} parent=1 // pred_region
      _
    $region41: #{tpu_custom_call.1} parent=1 // pred_fallthru
      _
    // Predicated region
    $region42: #{tpu_custom_call.1} parent=1 // pred_check
      _
    $region43: #{tpu_custom_call.1} parent=1 // pred_check_branch
      %90 = sbr.rel (0) target = $region45
    $region44: #{tpu_custom_call.1} parent=1 // pred_region
      %91 = dma.done [#allocation3], 256
    $region45: #{tpu_custom_call.1} parent=1 // pred_fallthru
      _
    // Predicated region
    $region46: #{tpu_custom_call.1} parent=1 // pred_check
      _
    $region47: #{tpu_custom_call.1} parent=1 // pred_check_branch
      %93 = sbr.rel (0) target = $region49
    $region48: #{tpu_custom_call.1} parent=1 // pred_region
      %94 = dma.done [#allocation6], 256
    $region49: #{tpu_custom_call.1} parent=1 // pred_fallthru
      _
    // Predicated region
    $region50: #{tpu_custom_call.1} parent=1 // pred_check
      _
    $region51: #{tpu_custom_call.1} parent=1 // pred_check_branch
      %96 = sbr.rel (0) target = $region53
    $region52: #{tpu_custom_call.1} parent=1 // pred_region
      %97 = dma.done [#allocation6], 512
    $region53: #{tpu_custom_call.1} parent=1 // pred_fallthru
      _
    // Predicated region
    $region54: #{tpu_custom_call.1} parent=1 // pred_check
      _
    $region55: #{tpu_custom_call.1} parent=1 // pred_check_branch
      %99 = sbr.rel (0) target = $region57
    $region56: #{tpu_custom_call.1} parent=1 // pred_region
      %100 = dma.done [#allocation9], 512
    $region57: #{tpu_custom_call.1} parent=1 // pred_fallthru
      _
    // Predicated region
    $region58: #{tpu_custom_call.1} parent=1 // pred_check
      _
    $region59: #{tpu_custom_call.1} parent=1 // pred_check_branch
      %102 = sbr.rel (0) target = $region61
    $region60: #{tpu_custom_call.1} parent=1 // pred_region
      %103 = dma.done [#allocation9], 512
    $region61: #{tpu_custom_call.1} parent=1 // pred_fallthru
      _
    %v104 = vld [vmem:[#allocation2] sm:$0x3]
    %v105 = vld [vmem:[#allocation2 + $0x2] sm:$0x3]
    %v106 = vld [vmem:[#allocation2 + $0x4] sm:$0x3]
    %v107 = vld [vmem:[#allocation2 + $0x6] sm:$0x3]
    %v108 = vld [vmem:[#allocation2 + $0x8] sm:$0x3]
    %v109 = vld [vmem:[#allocation2 + $0xa] sm:$0x3]
    %v110 = vld [vmem:[#allocation2 + $0xc] sm:$0x3]
    %v111 = vld [vmem:[#allocation2 + $0xe] sm:$0x3]
    %v112 = vld [vmem:[#allocation5] sm:$0x3]
    %v113 = vld [vmem:[#allocation5 + $0x2] sm:$0x3]
    %v114 = vld [vmem:[#allocation5 + $0x4] sm:$0x3]
    %v115 = vld [vmem:[#allocation5 + $0x6] sm:$0x3]
    %v116 = vld [vmem:[#allocation5 + $0x8] sm:$0x3]
    %v117 = vld [vmem:[#allocation5 + $0xa] sm:$0x3]
    %v118 = vld [vmem:[#allocation5 + $0xc] sm:$0x3]
    %v119 = vld [vmem:[#allocation5 + $0xe] sm:$0x3]
    %v120 = vmul.f32 %v104, %v112
    %v121 = vmul.f32 %v105, %v113
    %v122 = vmul.f32 %v106, %v114
    %v123 = vmul.f32 %v107, %v115
    %v124 = vmul.f32 %v108, %v116
    %v125 = vmul.f32 %v109, %v117
    %v126 = vmul.f32 %v110, %v118
    %v127 = vmul.f32 %v111, %v119
    %v128 = vld [vmem:[#allocation7] sm:$0xff]
    %v129 = vld [vmem:[#allocation7 + $0x8] sm:$0xff]
    %v130 = vld [vmem:[#allocation7 + $0x10] sm:$0xff]
    %v131 = vld [vmem:[#allocation7 + $0x18] sm:$0xff]
    %v132 = vld [vmem:[%s3] sm:$0x1]
    %v134 = vlaneseq
    %v135 = vshrl.u32 %v134, 7
    %v136 = vsub.s32 0, %v135
    %v137 = vrot.slane %v132, %v136
    %v147 = vcombine.low %v120, %v121
    %v148 = vcombine.low %v122, %v123
    %v150 = vunpack.c.l.s4 1983009808
    %v151 = vunpack.c.0.s8 %v150
    %v152 = vlaneseq
    %v153 = vshrl.u32 %v152, 7
    %v154 = vsub.s32 %v151, %v153
    %v155 = vrot.slane %v147, %v154
    %v157 = vunpack.c.l.s4 1983009808
    %v158 = vunpack.c.0.s8 %v157
    %v159 = vlaneseq
    %v160 = vshrl.u32 %v159, 7
    %v161 = vsub.s32 %v158, %v160
    %v162 = vrot.slane %v148, %v161
    %v163 = vcombine.low %v155, %v162
    %v164 = vcombine.low %v124, %v125
    %v165 = vcombine.low %v126, %v127
    %v167 = vunpack.c.l.s4 1983009808
    %v168 = vunpack.c.0.s8 %v167
    %v169 = vlaneseq
    %v170 = vshrl.u32 %v169, 7
    %v171 = vsub.s32 %v168, %v170
    %v172 = vrot.slane %v164, %v171
    %v174 = vunpack.c.l.s4 1983009808
    %v175 = vunpack.c.0.s8 %v174
    %v176 = vlaneseq
    %v177 = vshrl.u32 %v176, 7
    %v178 = vsub.s32 %v175, %v177
    %v179 = vrot.slane %v165, %v178
    %v180 = vcombine.low %v172, %v179
    %vm181 = vcmask 261120
    %v182 = vsel %vm181, %v163, 0
    %v184 = vsel %vm181, %v180, 0
    %186 = vmatprep.subr.mxu0 0.0
    %187 = vmatpush1.msra.mxu0 %v128
    %188 = vmatprep.subr.mxu0 0.0
    %189 = vmatpush1.msra.mxu0 %v129
    %190 = vmatprep.subr.mxu0 0.0
    %191 = vmatpush1.msra.mxu0 %v130
    %192 = vmatprep.subr.mxu0 0.0
    %193 = vmatpush1.msra.mxu0 %v131
    %194 = vmatprep.subr.mxu0 0.0
    %195 = vmatpush1.msra.mxu0 0.0
    %196 = vmatprep.subr.mxu0 0.0
    %197 = vmatpush1.msra.mxu0 0.0
    %198 = vmatprep.subr.mxu0 0.0
    %199 = vmatpush1.msra.mxu0 0.0
    %200 = vmatprep.subr.mxu0 0.0
    %201 = vmatpush1.msra.mxu0 0.0
    %202 = vmatprep.subr.mxu0 0.0
    %203 = vmatpush1.msra.mxu0 0.0
    %204 = vmatprep.subr.mxu0 0.0
    %205 = vmatpush1.msra.mxu0 0.0
    %206 = vmatprep.subr.mxu0 0.0
    %207 = vmatpush1.msra.mxu0 0.0
    %208 = vmatprep.subr.mxu0 0.0
    %209 = vmatpush1.msra.mxu0 0.0
    %210 = vmatprep.subr.mxu0 0.0
    %211 = vmatpush1.msra.mxu0 0.0
    %212 = vmatprep.subr.mxu0 0.0
    %213 = vmatpush1.msra.mxu0 0.0
    %214 = vmatprep.subr.mxu0 0.0
    %215 = vmatpush1.msra.mxu0 0.0
    %216 = vmatprep.subr.mxu0 0.0
    %217 = vmatpush1.msra.mxu0 0.0
    %218 = vmatprep.subr.mxu0 0.0
    %219 = vmatpush1.msra.mxu0 0.0
    %220 = vmatprep.subr.mxu0 0.0
    %221 = vmatpush1.msra.mxu0 0.0
    %222 = vmatprep.subr.mxu0 0.0
    %223 = vmatpush1.msra.mxu0 0.0
    %224 = vmatprep.subr.mxu0 0.0
    %225 = vmatpush1.msra.mxu0 0.0
    %226 = vmatprep.subr.mxu0 0.0
    %227 = vmatpush1.msra.mxu0 0.0
    %228 = vmatprep.subr.mxu0 0.0
    %229 = vmatpush1.msra.mxu0 0.0
    %230 = vmatprep.subr.mxu0 0.0
    %231 = vmatpush1.msra.mxu0 0.0
    %232 = vmatprep.subr.mxu0 0.0
    %233 = vmatpush1.msra.mxu0 0.0
    %234 = vmatprep.subr.mxu0 0.0
    %235 = vmatpush1.msra.mxu0 0.0
    %236 = vmatprep.subr.mxu0 0.0
    %237 = vmatpush1.msra.mxu0 0.0
    %238 = vmatprep.subr.mxu0 0.0
    %239 = vmatpush1.msra.mxu0 0.0
    %240 = vmatprep.subr.mxu0 0.0
    %241 = vmatpush1.msra.mxu0 0.0
    %242 = vmatprep.subr.mxu0 0.0
    %243 = vmatpush1.msra.mxu0 0.0
    %244 = vmatprep.subr.mxu0 0.0
    %245 = vmatpush1.msra.mxu0 0.0
    %246 = vmatprep.subr.mxu0 0.0
    %247 = vmatpush1.msra.mxu0 0.0
    %248 = vmatprep.subr.mxu0 0.0
    %249 = vmatpush1.msra.mxu0 0.0
    %250 = vmatprep.mubr.f32.mxu0 0.0
    %251 = vmatmul.mubr.f32.gmra.mrb[0].mxu0 %v182
    %v252 = vpop.f32.mrb[0].mxu0
    %v253 = vadd.f32 %v137, %v252
    %v254 = vpop.f32.mrb[0].mxu0
    %255 = vmatprep.mubr.f32.mxu0 0.0
    %256 = vmatmul.mubr.f32.gmra.mrb[0].mxu0 %v184
    %v257 = vpop.f32.mrb[0].mxu0
    %v258 = vadd.f32 %v137, %v257
    %v259 = vpop.f32.mrb[0].mxu0
    %260 = vdwg.mxu0
    %v261 = vld [vmem:[#allocation8] sm:$0xff]
    %v262 = vld [vmem:[#allocation8 + $0x8] sm:$0xff]
    %v263 = vld [vmem:[#allocation8 + $0x10] sm:$0xff]
    %v264 = vld [vmem:[#allocation8 + $0x18] sm:$0xff]
    %v265 = vld [vmem:[%s5] sm:$0x1]
    %v267 = vlaneseq
    %v268 = vshrl.u32 %v267, 7
    %v269 = vsub.s32 0, %v268
    %v270 = vrot.slane %v265, %v269
    %v280 = vcombine.low %v112, %v113
    %v281 = vcombine.low %v114, %v115
    %v283 = vunpack.c.l.s4 1983009808
    %v284 = vunpack.c.0.s8 %v283
    %v285 = vlaneseq
    %v286 = vshrl.u32 %v285, 7
    %v287 = vsub.s32 %v284, %v286
    %v288 = vrot.slane %v280, %v287
    %v290 = vunpack.c.l.s4 1983009808
    %v291 = vunpack.c.0.s8 %v290
    %v292 = vlaneseq
    %v293 = vshrl.u32 %v292, 7
    %v294 = vsub.s32 %v291, %v293
    %v295 = vrot.slane %v281, %v294
    %v296 = vcombine.low %v288, %v295
    %v297 = vcombine.low %v116, %v117
    %v298 = vcombine.low %v118, %v119
    %v300 = vunpack.c.l.s4 1983009808
    %v301 = vunpack.c.0.s8 %v300
    %v302 = vlaneseq
    %v303 = vshrl.u32 %v302, 7
    %v304 = vsub.s32 %v301, %v303
    %v305 = vrot.slane %v297, %v304
    %v307 = vunpack.c.l.s4 1983009808
    %v308 = vunpack.c.0.s8 %v307
    %v309 = vlaneseq
    %v310 = vshrl.u32 %v309, 7
    %v311 = vsub.s32 %v308, %v310
    %v312 = vrot.slane %v298, %v311
    %v313 = vcombine.low %v305, %v312
    %v314 = vsel %vm181, %v296, 0
    %v316 = vsel %vm181, %v313, 0
    %318 = vmatprep.subr.mxu0 0.0
    %319 = vmatpush1.msra.mxu0 %v261
    %320 = vmatprep.subr.mxu0 0.0
    %321 = vmatpush1.msra.mxu0 %v262
    %322 = vmatprep.subr.mxu0 0.0
    %323 = vmatpush1.msra.mxu0 %v263
    %324 = vmatprep.subr.mxu0 0.0
    %325 = vmatpush1.msra.mxu0 %v264
    %326 = vmatprep.subr.mxu0 0.0
    %327 = vmatpush1.msra.mxu0 0.0
    %328 = vmatprep.subr.mxu0 0.0
    %329 = vmatpush1.msra.mxu0 0.0
    %330 = vmatprep.subr.mxu0 0.0
    %331 = vmatpush1.msra.mxu0 0.0
    %332 = vmatprep.subr.mxu0 0.0
    %333 = vmatpush1.msra.mxu0 0.0
    %334 = vmatprep.subr.mxu0 0.0
    %335 = vmatpush1.msra.mxu0 0.0
    %336 = vmatprep.subr.mxu0 0.0
    %337 = vmatpush1.msra.mxu0 0.0
    %338 = vmatprep.subr.mxu0 0.0
    %339 = vmatpush1.msra.mxu0 0.0
    %340 = vmatprep.subr.mxu0 0.0
    %341 = vmatpush1.msra.mxu0 0.0
    %342 = vmatprep.subr.mxu0 0.0
    %343 = vmatpush1.msra.mxu0 0.0
    %344 = vmatprep.subr.mxu0 0.0
    %345 = vmatpush1.msra.mxu0 0.0
    %346 = vmatprep.subr.mxu0 0.0
    %347 = vmatpush1.msra.mxu0 0.0
    %348 = vmatprep.subr.mxu0 0.0
    %349 = vmatpush1.msra.mxu0 0.0
    %350 = vmatprep.subr.mxu0 0.0
    %351 = vmatpush1.msra.mxu0 0.0
    %352 = vmatprep.subr.mxu0 0.0
    %353 = vmatpush1.msra.mxu0 0.0
    %354 = vmatprep.subr.mxu0 0.0
    %355 = vmatpush1.msra.mxu0 0.0
    %356 = vmatprep.subr.mxu0 0.0
    %357 = vmatpush1.msra.mxu0 0.0
    %358 = vmatprep.subr.mxu0 0.0
    %359 = vmatpush1.msra.mxu0 0.0
    %360 = vmatprep.subr.mxu0 0.0
    %361 = vmatpush1.msra.mxu0 0.0
    %362 = vmatprep.subr.mxu0 0.0
    %363 = vmatpush1.msra.mxu0 0.0
    %364 = vmatprep.subr.mxu0 0.0
    %365 = vmatpush1.msra.mxu0 0.0
    %366 = vmatprep.subr.mxu0 0.0
    %367 = vmatpush1.msra.mxu0 0.0
    %368 = vmatprep.subr.mxu0 0.0
    %369 = vmatpush1.msra.mxu0 0.0
    %370 = vmatprep.subr.mxu0 0.0
    %371 = vmatpush1.msra.mxu0 0.0
    %372 = vmatprep.subr.mxu0 0.0
    %373 = vmatpush1.msra.mxu0 0.0
    %374 = vmatprep.subr.mxu0 0.0
    %375 = vmatpush1.msra.mxu0 0.0
    %376 = vmatprep.subr.mxu0 0.0
    %377 = vmatpush1.msra.mxu0 0.0
    %378 = vmatprep.subr.mxu0 0.0
    %379 = vmatpush1.msra.mxu0 0.0
    %380 = vmatprep.subr.mxu0 0.0
    %381 = vmatpush1.msra.mxu0 0.0
    %382 = vmatprep.mubr.f32.mxu0 0.0
    %383 = vmatmul.mubr.f32.gmra.mrb[0].mxu0 %v314
    %v384 = vpop.f32.mrb[0].mxu0
    %v385 = vadd.f32 %v270, %v384
    %v386 = vpop.f32.mrb[0].mxu0
    %387 = vmatprep.mubr.f32.mxu0 0.0
    %388 = vmatmul.mubr.f32.gmra.mrb[0].mxu0 %v316
    %v389 = vpop.f32.mrb[0].mxu0
    %v390 = vadd.f32 %v270, %v389
    %v391 = vpop.f32.mrb[0].mxu0
    %392 = vdwg.mxu0
    %v401 = vcombine.low %v104, %v105
    %v402 = vcombine.low %v106, %v107
    %v404 = vunpack.c.l.s4 1983009808
    %v405 = vunpack.c.0.s8 %v404
    %v406 = vlaneseq
    %v407 = vshrl.u32 %v406, 7
    %v408 = vsub.s32 %v405, %v407
    %v409 = vrot.slane %v401, %v408
    %v411 = vunpack.c.l.s4 1983009808
    %v412 = vunpack.c.0.s8 %v411
    %v413 = vlaneseq
    %v414 = vshrl.u32 %v413, 7
    %v415 = vsub.s32 %v412, %v414
    %v416 = vrot.slane %v402, %v415
    %v417 = vcombine.low %v409, %v416
    %v418 = vcombine.low %v108, %v109
    %v419 = vcombine.low %v110, %v111
    %v421 = vunpack.c.l.s4 1983009808
    %v422 = vunpack.c.0.s8 %v421
    %v423 = vlaneseq
    %v424 = vshrl.u32 %v423, 7
    %v425 = vsub.s32 %v422, %v424
    %v426 = vrot.slane %v418, %v425
    %v428 = vunpack.c.l.s4 1983009808
    %v429 = vunpack.c.0.s8 %v428
    %v430 = vlaneseq
    %v431 = vshrl.u32 %v430, 7
    %v432 = vsub.s32 %v429, %v431
    %v433 = vrot.slane %v419, %v432
    %v434 = vcombine.low %v426, %v433
    %v435 = vsel %vm181, %v417, 0
    %v437 = vsel %vm181, %v434, 0
    %439 = vmatprep.subr.mxu0 0.0
    %440 = vmatpush1.msra.mxu0 %v261
    %441 = vmatprep.subr.mxu0 0.0
    %442 = vmatpush1.msra.mxu0 %v262
    %443 = vmatprep.subr.mxu0 0.0
    %444 = vmatpush1.msra.mxu0 %v263
    %445 = vmatprep.subr.mxu0 0.0
    %446 = vmatpush1.msra.mxu0 %v264
    %447 = vmatprep.subr.mxu0 0.0
    %448 = vmatpush1.msra.mxu0 0.0
    %449 = vmatprep.subr.mxu0 0.0
    %450 = vmatpush1.msra.mxu0 0.0
    %451 = vmatprep.subr.mxu0 0.0
    %452 = vmatpush1.msra.mxu0 0.0
    %453 = vmatprep.subr.mxu0 0.0
    %454 = vmatpush1.msra.mxu0 0.0
    %455 = vmatprep.subr.mxu0 0.0
    %456 = vmatpush1.msra.mxu0 0.0
    %457 = vmatprep.subr.mxu0 0.0
    %458 = vmatpush1.msra.mxu0 0.0
    %459 = vmatprep.subr.mxu0 0.0
    %460 = vmatpush1.msra.mxu0 0.0
    %461 = vmatprep.subr.mxu0 0.0
    %462 = vmatpush1.msra.mxu0 0.0
    %463 = vmatprep.subr.mxu0 0.0
    %464 = vmatpush1.msra.mxu0 0.0
    %465 = vmatprep.subr.mxu0 0.0
    %466 = vmatpush1.msra.mxu0 0.0
    %467 = vmatprep.subr.mxu0 0.0
    %468 = vmatpush1.msra.mxu0 0.0
    %469 = vmatprep.subr.mxu0 0.0
    %470 = vmatpush1.msra.mxu0 0.0
    %471 = vmatprep.subr.mxu0 0.0
    %472 = vmatpush1.msra.mxu0 0.0
    %473 = vmatprep.subr.mxu0 0.0
    %474 = vmatpush1.msra.mxu0 0.0
    %475 = vmatprep.subr.mxu0 0.0
    %476 = vmatpush1.msra.mxu0 0.0
    %477 = vmatprep.subr.mxu0 0.0
    %478 = vmatpush1.msra.mxu0 0.0
    %479 = vmatprep.subr.mxu0 0.0
    %480 = vmatpush1.msra.mxu0 0.0
    %481 = vmatprep.subr.mxu0 0.0
    %482 = vmatpush1.msra.mxu0 0.0
    %483 = vmatprep.subr.mxu0 0.0
    %484 = vmatpush1.msra.mxu0 0.0
    %485 = vmatprep.subr.mxu0 0.0
    %486 = vmatpush1.msra.mxu0 0.0
    %487 = vmatprep.subr.mxu0 0.0
    %488 = vmatpush1.msra.mxu0 0.0
    %489 = vmatprep.subr.mxu0 0.0
    %490 = vmatpush1.msra.mxu0 0.0
    %491 = vmatprep.subr.mxu0 0.0
    %492 = vmatpush1.msra.mxu0 0.0
    %493 = vmatprep.subr.mxu0 0.0
    %494 = vmatpush1.msra.mxu0 0.0
    %495 = vmatprep.subr.mxu0 0.0
    %496 = vmatpush1.msra.mxu0 0.0
    %497 = vmatprep.subr.mxu0 0.0
    %498 = vmatpush1.msra.mxu0 0.0
    %499 = vmatprep.subr.mxu0 0.0
    %500 = vmatpush1.msra.mxu0 0.0
    %501 = vmatprep.subr.mxu0 0.0
    %502 = vmatpush1.msra.mxu0 0.0
    %503 = vmatprep.mubr.f32.mxu0 0.0
    %504 = vmatmul.mubr.f32.gmra.mrb[0].mxu0 %v435
    %v505 = vpop.f32.mrb[0].mxu0
    %v506 = vadd.f32 %v270, %v505
    %v507 = vpop.f32.mrb[0].mxu0
    %508 = vmatprep.mubr.f32.mxu0 0.0
    %509 = vmatmul.mubr.f32.gmra.mrb[0].mxu0 %v437
    %v510 = vpop.f32.mrb[0].mxu0
    %v511 = vadd.f32 %v270, %v510
    %v512 = vpop.f32.mrb[0].mxu0
    %513 = vdwg.mxu0
    %516 = vrot.lane.b32.xlu0 %v253, 120
    %v517 = vpop.permute.xlu0 %516
    %518 = vrot.lane.b32.xlu0 %v258, 120
    %v519 = vpop.permute.xlu0 %518
    %522 = vrot.lane.b32.xlu0 %v253, 112
    %v523 = vpop.permute.xlu0 %522
    %524 = vrot.lane.b32.xlu0 %v258, 112
    %v525 = vpop.permute.xlu0 %524
    %528 = vrot.lane.b32.xlu0 %v253, 104
    %v529 = vpop.permute.xlu0 %528
    %530 = vrot.lane.b32.xlu0 %v258, 104
    %v531 = vpop.permute.xlu0 %530
    %v534 = vcombine.low %v253, %v523
    %v535 = vcombine.high %v253, %v523
    %v537 = vunpack.c.l.s4 1983009808
    %v538 = vunpack.c.0.s8 %v537
    %v539 = vlaneseq
    %v540 = vshrl.u32 %v539, 7
    %v541 = vsub.s32 %v538, %v540
    %v542 = vrot.slane %v534, %v541
    %v544 = vunpack.c.l.s4 1983009808
    %v545 = vunpack.c.0.s8 %v544
    %v546 = vlaneseq
    %v547 = vshrl.u32 %v546, 7
    %v548 = vsub.s32 %v545, %v547
    %v549 = vrot.slane %v535, %v548
    %v550 = vcombine.low %v517, %v529
    %v551 = vcombine.high %v517, %v529
    %v553 = vunpack.c.l.s4 1983009808
    %v554 = vunpack.c.0.s8 %v553
    %v555 = vlaneseq
    %v556 = vshrl.u32 %v555, 7
    %v557 = vsub.s32 %v554, %v556
    %v558 = vrot.slane %v550, %v557
    %v560 = vunpack.c.l.s4 1983009808
    %v561 = vunpack.c.0.s8 %v560
    %v562 = vlaneseq
    %v563 = vshrl.u32 %v562, 7
    %v564 = vsub.s32 %v561, %v563
    %v565 = vrot.slane %v551, %v564
    %v566 = vcombine.low %v542, %v558
    %v567 = vcombine.high %v542, %v558
    %v569 = vunpack.c.l.s4 1934713408
    %v570 = vunpack.c.0.s8 %v569
    %v571 = vlaneseq
    %v572 = vshrl.u32 %v571, 7
    %v573 = vsub.s32 %v570, %v572
    %v574 = vrot.slane %v566, %v573
    %v576 = vunpack.c.l.s4 1934713408
    %v577 = vunpack.c.0.s8 %v576
    %v578 = vlaneseq
    %v579 = vshrl.u32 %v578, 7
    %v580 = vsub.s32 %v577, %v579
    %v581 = vrot.slane %v567, %v580
    %v582 = vcombine.low %v549, %v565
    %v583 = vcombine.high %v549, %v565
    %v585 = vunpack.c.l.s4 1934713408
    %v586 = vunpack.c.0.s8 %v585
    %v587 = vlaneseq
    %v588 = vshrl.u32 %v587, 7
    %v589 = vsub.s32 %v586, %v588
    %v590 = vrot.slane %v582, %v589
    %v592 = vunpack.c.l.s4 1934713408
    %v593 = vunpack.c.0.s8 %v592
    %v594 = vlaneseq
    %v595 = vshrl.u32 %v594, 7
    %v596 = vsub.s32 %v593, %v595
    %v597 = vrot.slane %v583, %v596
    %v598 = vcombine.high %v574, 0.0
    %v599 = vcombine.high %v581, 0.0
    %v600 = vcombine.high %v590, 0.0
    %v601 = vcombine.high %v597, 0.0
    %v602 = vcombine.low %v258, %v525
    %v603 = vcombine.high %v258, %v525
    %v605 = vunpack.c.l.s4 1983009808
    %v606 = vunpack.c.0.s8 %v605
    %v607 = vlaneseq
    %v608 = vshrl.u32 %v607, 7
    %v609 = vsub.s32 %v606, %v608
    %v610 = vrot.slane %v602, %v609
    %v612 = vunpack.c.l.s4 1983009808
    %v613 = vunpack.c.0.s8 %v612
    %v614 = vlaneseq
    %v615 = vshrl.u32 %v614, 7
    %v616 = vsub.s32 %v613, %v615
    %v617 = vrot.slane %v603, %v616
    %v618 = vcombine.low %v519, %v531
    %v619 = vcombine.high %v519, %v531
    %v621 = vunpack.c.l.s4 1983009808
    %v622 = vunpack.c.0.s8 %v621
    %v623 = vlaneseq
    %v624 = vshrl.u32 %v623, 7
    %v625 = vsub.s32 %v622, %v624
    %v626 = vrot.slane %v618, %v625
    %v628 = vunpack.c.l.s4 1983009808
    %v629 = vunpack.c.0.s8 %v628
    %v630 = vlaneseq
    %v631 = vshrl.u32 %v630, 7
    %v632 = vsub.s32 %v629, %v631
    %v633 = vrot.slane %v619, %v632
    %v634 = vcombine.low %v610, %v626
    %v635 = vcombine.high %v610, %v626
    %v637 = vunpack.c.l.s4 1934713408
    %v638 = vunpack.c.0.s8 %v637
    %v639 = vlaneseq
    %v640 = vshrl.u32 %v639, 7
    %v641 = vsub.s32 %v638, %v640
    %v642 = vrot.slane %v634, %v641
    %v644 = vunpack.c.l.s4 1934713408
    %v645 = vunpack.c.0.s8 %v644
    %v646 = vlaneseq
    %v647 = vshrl.u32 %v646, 7
    %v648 = vsub.s32 %v645, %v647
    %v649 = vrot.slane %v635, %v648
    %v650 = vcombine.low %v617, %v633
    %v651 = vcombine.high %v617, %v633
    %v653 = vunpack.c.l.s4 1934713408
    %v654 = vunpack.c.0.s8 %v653
    %v655 = vlaneseq
    %v656 = vshrl.u32 %v655, 7
    %v657 = vsub.s32 %v654, %v656
    %v658 = vrot.slane %v650, %v657
    %v660 = vunpack.c.l.s4 1934713408
    %v661 = vunpack.c.0.s8 %v660
    %v662 = vlaneseq
    %v663 = vshrl.u32 %v662, 7
    %v664 = vsub.s32 %v661, %v663
    %v665 = vrot.slane %v651, %v664
    %v666 = vcombine.high %v642, 0.0
    %v667 = vcombine.high %v649, 0.0
    %v668 = vcombine.high %v658, 0.0
    %v669 = vcombine.high %v665, 0.0
    %v670 = vcombine.low %v574, %v590
    %v672 = vunpack.c.l.s4 1983009808
    %v673 = vunpack.c.0.s8 %v672
    %v674 = vlaneseq
    %v675 = vshrl.u32 %v674, 7
    %v676 = vsub.s32 %v673, %v675
    %v677 = vrot.slane %v670, %v676
    %v678 = vcombine.low %v581, %v597
    %v680 = vunpack.c.l.s4 1983009808
    %v681 = vunpack.c.0.s8 %v680
    %v682 = vlaneseq
    %v683 = vshrl.u32 %v682, 7
    %v684 = vsub.s32 %v681, %v683
    %v685 = vrot.slane %v678, %v684
    %v686 = vcombine.low %v642, %v658
    %v688 = vunpack.c.l.s4 1983009808
    %v689 = vunpack.c.0.s8 %v688
    %v690 = vlaneseq
    %v691 = vshrl.u32 %v690, 7
    %v692 = vsub.s32 %v689, %v691
    %v693 = vrot.slane %v686, %v692
    %v694 = vcombine.low %v649, %v665
    %v696 = vunpack.c.l.s4 1983009808
    %v697 = vunpack.c.0.s8 %v696
    %v698 = vlaneseq
    %v699 = vshrl.u32 %v698, 7
    %v700 = vsub.s32 %v697, %v699
    %v701 = vrot.slane %v694, %v700
    %v702 = vcombine.low %v677, %v685
    %v703 = vcombine.high %v677, %v685
    %v705 = vunpack.c.l.s4 1934713408
    %v706 = vunpack.c.0.s8 %v705
    %v707 = vlaneseq
    %v708 = vshrl.u32 %v707, 7
    %v709 = vsub.s32 %v706, %v708
    %v710 = vrot.slane %v702, %v709
    %v712 = vunpack.c.l.s4 1934713408
    %v713 = vunpack.c.0.s8 %v712
    %v714 = vlaneseq
    %v715 = vshrl.u32 %v714, 7
    %v716 = vsub.s32 %v713, %v715
    %v717 = vrot.slane %v703, %v716
    %v718 = vcombine.low %v693, %v701
    %v719 = vcombine.high %v693, %v701
    %v721 = vunpack.c.l.s4 1934713408
    %v722 = vunpack.c.0.s8 %v721
    %v723 = vlaneseq
    %v724 = vshrl.u32 %v723, 7
    %v725 = vsub.s32 %v722, %v724
    %v726 = vrot.slane %v718, %v725
    %v728 = vunpack.c.l.s4 1934713408
    %v729 = vunpack.c.0.s8 %v728
    %v730 = vlaneseq
    %v731 = vshrl.u32 %v730, 7
    %v732 = vsub.s32 %v729, %v731
    %v733 = vrot.slane %v719, %v732
    %v734 = vcombine.low %v710, %v726
    %v735 = vcombine.high %v710, %v726
    %v736 = vcombine.low %v717, %v733
    %v737 = vcombine.high %v717, %v733
    %v738 = vcombine.low %v598, %v600
    %v740 = vunpack.c.l.s4 1983009808
    %v741 = vunpack.c.0.s8 %v740
    %v742 = vlaneseq
    %v743 = vshrl.u32 %v742, 7
    %v744 = vsub.s32 %v741, %v743
    %v745 = vrot.slane %v738, %v744
    %v746 = vcombine.low %v599, %v601
    %v748 = vunpack.c.l.s4 1983009808
    %v749 = vunpack.c.0.s8 %v748
    %v750 = vlaneseq
    %v751 = vshrl.u32 %v750, 7
    %v752 = vsub.s32 %v749, %v751
    %v753 = vrot.slane %v746, %v752
    %v754 = vcombine.low %v666, %v668
    %v756 = vunpack.c.l.s4 1983009808
    %v757 = vunpack.c.0.s8 %v756
    %v758 = vlaneseq
    %v759 = vshrl.u32 %v758, 7
    %v760 = vsub.s32 %v757, %v759
    %v761 = vrot.slane %v754, %v760
    %v762 = vcombine.low %v667, %v669
    %v764 = vunpack.c.l.s4 1983009808
    %v765 = vunpack.c.0.s8 %v764
    %v766 = vlaneseq
    %v767 = vshrl.u32 %v766, 7
    %v768 = vsub.s32 %v765, %v767
    %v769 = vrot.slane %v762, %v768
    %v770 = vcombine.low %v745, %v753
    %v771 = vcombine.high %v745, %v753
    %v773 = vunpack.c.l.s4 1934713408
    %v774 = vunpack.c.0.s8 %v773
    %v775 = vlaneseq
    %v776 = vshrl.u32 %v775, 7
    %v777 = vsub.s32 %v774, %v776
    %v778 = vrot.slane %v770, %v777
    %v780 = vunpack.c.l.s4 1934713408
    %v781 = vunpack.c.0.s8 %v780
    %v782 = vlaneseq
    %v783 = vshrl.u32 %v782, 7
    %v784 = vsub.s32 %v781, %v783
    %v785 = vrot.slane %v771, %v784
    %v786 = vcombine.low %v761, %v769
    %v787 = vcombine.high %v761, %v769
    %v789 = vunpack.c.l.s4 1934713408
    %v790 = vunpack.c.0.s8 %v789
    %v791 = vlaneseq
    %v792 = vshrl.u32 %v791, 7
    %v793 = vsub.s32 %v790, %v792
    %v794 = vrot.slane %v786, %v793
    %v796 = vunpack.c.l.s4 1934713408
    %v797 = vunpack.c.0.s8 %v796
    %v798 = vlaneseq
    %v799 = vshrl.u32 %v798, 7
    %v800 = vsub.s32 %v797, %v799
    %v801 = vrot.slane %v787, %v800
    %v802 = vcombine.low %v778, %v794
    %v803 = vcombine.high %v778, %v794
    %v804 = vcombine.low %v785, %v801
    %v805 = vcombine.high %v785, %v801
    %810 = vrot.lane.b32.xlu0 %v385, 120
    %v811 = vpop.permute.xlu0 %810
    %812 = vrot.lane.b32.xlu0 %v390, 120
    %v813 = vpop.permute.xlu0 %812
    %814 = vrot.lane.b32.xlu0 %v506, 120
    %v815 = vpop.permute.xlu0 %814
    %816 = vrot.lane.b32.xlu0 %v511, 120
    %v817 = vpop.permute.xlu0 %816
    %822 = vrot.lane.b32.xlu0 %v385, 112
    %v823 = vpop.permute.xlu0 %822
    %824 = vrot.lane.b32.xlu0 %v390, 112
    %v825 = vpop.permute.xlu0 %824
    %826 = vrot.lane.b32.xlu0 %v506, 112
    %v827 = vpop.permute.xlu0 %826
    %828 = vrot.lane.b32.xlu0 %v511, 112
    %v829 = vpop.permute.xlu0 %828
    %834 = vrot.lane.b32.xlu0 %v385, 104
    %v835 = vpop.permute.xlu0 %834
    %836 = vrot.lane.b32.xlu0 %v390, 104
    %v837 = vpop.permute.xlu0 %836
    %838 = vrot.lane.b32.xlu0 %v506, 104
    %v839 = vpop.permute.xlu0 %838
    %840 = vrot.lane.b32.xlu0 %v511, 104
    %v841 = vpop.permute.xlu0 %840
    %v846 = vcombine.low %v385, %v823
    %v847 = vcombine.high %v385, %v823
    %v849 = vunpack.c.l.s4 1983009808
    %v850 = vunpack.c.0.s8 %v849
    %v851 = vlaneseq
    %v852 = vshrl.u32 %v851, 7
    %v853 = vsub.s32 %v850, %v852
    %v854 = vrot.slane %v846, %v853
    %v856 = vunpack.c.l.s4 1983009808
    %v857 = vunpack.c.0.s8 %v856
    %v858 = vlaneseq
    %v859 = vshrl.u32 %v858, 7
    %v860 = vsub.s32 %v857, %v859
    %v861 = vrot.slane %v847, %v860
    %v862 = vcombine.low %v811, %v835
    %v863 = vcombine.high %v811, %v835
    %v865 = vunpack.c.l.s4 1983009808
    %v866 = vunpack.c.0.s8 %v865
    %v867 = vlaneseq
    %v868 = vshrl.u32 %v867, 7
    %v869 = vsub.s32 %v866, %v868
    %v870 = vrot.slane %v862, %v869
    %v872 = vunpack.c.l.s4 1983009808
    %v873 = vunpack.c.0.s8 %v872
    %v874 = vlaneseq
    %v875 = vshrl.u32 %v874, 7
    %v876 = vsub.s32 %v873, %v875
    %v877 = vrot.slane %v863, %v876
    %v878 = vcombine.low %v854, %v870
    %v879 = vcombine.high %v854, %v870
    %v881 = vunpack.c.l.s4 1934713408
    %v882 = vunpack.c.0.s8 %v881
    %v883 = vlaneseq
    %v884 = vshrl.u32 %v883, 7
    %v885 = vsub.s32 %v882, %v884
    %v886 = vrot.slane %v878, %v885
    %v888 = vunpack.c.l.s4 1934713408
    %v889 = vunpack.c.0.s8 %v888
    %v890 = vlaneseq
    %v891 = vshrl.u32 %v890, 7
    %v892 = vsub.s32 %v889, %v891
    %v893 = vrot.slane %v879, %v892
    %v894 = vcombine.low %v861, %v877
    %v895 = vcombine.high %v861, %v877
    %v897 = vunpack.c.l.s4 1934713408
    %v898 = vunpack.c.0.s8 %v897
    %v899 = vlaneseq
    %v900 = vshrl.u32 %v899, 7
    %v901 = vsub.s32 %v898, %v900
    %v902 = vrot.slane %v894, %v901
    %v904 = vunpack.c.l.s4 1934713408
    %v905 = vunpack.c.0.s8 %v904
    %v906 = vlaneseq
    %v907 = vshrl.u32 %v906, 7
    %v908 = vsub.s32 %v905, %v907
    %v909 = vrot.slane %v895, %v908
    %v910 = vcombine.high %v886, 0.0
    %v911 = vcombine.high %v893, 0.0
    %v912 = vcombine.high %v902, 0.0
    %v913 = vcombine.high %v909, 0.0
    %v914 = vcombine.low %v390, %v825
    %v915 = vcombine.high %v390, %v825
    %v917 = vunpack.c.l.s4 1983009808
    %v918 = vunpack.c.0.s8 %v917
    %v919 = vlaneseq
    %v920 = vshrl.u32 %v919, 7
    %v921 = vsub.s32 %v918, %v920
    %v922 = vrot.slane %v914, %v921
    %v924 = vunpack.c.l.s4 1983009808
    %v925 = vunpack.c.0.s8 %v924
    %v926 = vlaneseq
    %v927 = vshrl.u32 %v926, 7
    %v928 = vsub.s32 %v925, %v927
    %v929 = vrot.slane %v915, %v928
    %v930 = vcombine.low %v813, %v837
    %v931 = vcombine.high %v813, %v837
    %v933 = vunpack.c.l.s4 1983009808
    %v934 = vunpack.c.0.s8 %v933
    %v935 = vlaneseq
    %v936 = vshrl.u32 %v935, 7
    %v937 = vsub.s32 %v934, %v936
    %v938 = vrot.slane %v930, %v937
    %v940 = vunpack.c.l.s4 1983009808
    %v941 = vunpack.c.0.s8 %v940
    %v942 = vlaneseq
    %v943 = vshrl.u32 %v942, 7
    %v944 = vsub.s32 %v941, %v943
    %v945 = vrot.slane %v931, %v944
    %v946 = vcombine.low %v922, %v938
    %v947 = vcombine.high %v922, %v938
    %v949 = vunpack.c.l.s4 1934713408
    %v950 = vunpack.c.0.s8 %v949
    %v951 = vlaneseq
    %v952 = vshrl.u32 %v951, 7
    %v953 = vsub.s32 %v950, %v952
    %v954 = vrot.slane %v946, %v953
    %v956 = vunpack.c.l.s4 1934713408
    %v957 = vunpack.c.0.s8 %v956
    %v958 = vlaneseq
    %v959 = vshrl.u32 %v958, 7
    %v960 = vsub.s32 %v957, %v959
    %v961 = vrot.slane %v947, %v960
    %v962 = vcombine.low %v929, %v945
    %v963 = vcombine.high %v929, %v945
    %v965 = vunpack.c.l.s4 1934713408
    %v966 = vunpack.c.0.s8 %v965
    %v967 = vlaneseq
    %v968 = vshrl.u32 %v967, 7
    %v969 = vsub.s32 %v966, %v968
    %v970 = vrot.slane %v962, %v969
    %v972 = vunpack.c.l.s4 1934713408
    %v973 = vunpack.c.0.s8 %v972
    %v974 = vlaneseq
    %v975 = vshrl.u32 %v974, 7
    %v976 = vsub.s32 %v973, %v975
    %v977 = vrot.slane %v963, %v976
    %v978 = vcombine.high %v954, 0.0
    %v979 = vcombine.high %v961, 0.0
    %v980 = vcombine.high %v970, 0.0
    %v981 = vcombine.high %v977, 0.0
    %v982 = vcombine.low %v506, %v827
    %v983 = vcombine.high %v506, %v827
    %v985 = vunpack.c.l.s4 1983009808
    %v986 = vunpack.c.0.s8 %v985
    %v987 = vlaneseq
    %v988 = vshrl.u32 %v987, 7
    %v989 = vsub.s32 %v986, %v988
    %v990 = vrot.slane %v982, %v989
    %v992 = vunpack.c.l.s4 1983009808
    %v993 = vunpack.c.0.s8 %v992
    %v994 = vlaneseq
    %v995 = vshrl.u32 %v994, 7
    %v996 = vsub.s32 %v993, %v995
    %v997 = vrot.slane %v983, %v996
    %v998 = vcombine.low %v815, %v839
    %v999 = vcombine.high %v815, %v839
    %v1001 = vunpack.c.l.s4 1983009808
    %v1002 = vunpack.c.0.s8 %v1001
    %v1003 = vlaneseq
    %v1004 = vshrl.u32 %v1003, 7
    %v1005 = vsub.s32 %v1002, %v1004
    %v1006 = vrot.slane %v998, %v1005
    %v1008 = vunpack.c.l.s4 1983009808
    %v1009 = vunpack.c.0.s8 %v1008
    %v1010 = vlaneseq
    %v1011 = vshrl.u32 %v1010, 7
    %v1012 = vsub.s32 %v1009, %v1011
    %v1013 = vrot.slane %v999, %v1012
    %v1014 = vcombine.low %v990, %v1006
    %v1015 = vcombine.high %v990, %v1006
    %v1017 = vunpack.c.l.s4 1934713408
    %v1018 = vunpack.c.0.s8 %v1017
    %v1019 = vlaneseq
    %v1020 = vshrl.u32 %v1019, 7
    %v1021 = vsub.s32 %v1018, %v1020
    %v1022 = vrot.slane %v1014, %v1021
    %v1024 = vunpack.c.l.s4 1934713408
    %v1025 = vunpack.c.0.s8 %v1024
    %v1026 = vlaneseq
    %v1027 = vshrl.u32 %v1026, 7
    %v1028 = vsub.s32 %v1025, %v1027
    %v1029 = vrot.slane %v1015, %v1028
    %v1030 = vcombine.low %v997, %v1013
    %v1031 = vcombine.high %v997, %v1013
    %v1033 = vunpack.c.l.s4 1934713408
    %v1034 = vunpack.c.0.s8 %v1033
    %v1035 = vlaneseq
    %v1036 = vshrl.u32 %v1035, 7
    %v1037 = vsub.s32 %v1034, %v1036
    %v1038 = vrot.slane %v1030, %v1037
    %v1040 = vunpack.c.l.s4 1934713408
    %v1041 = vunpack.c.0.s8 %v1040
    %v1042 = vlaneseq
    %v1043 = vshrl.u32 %v1042, 7
    %v1044 = vsub.s32 %v1041, %v1043
    %v1045 = vrot.slane %v1031, %v1044
    %v1046 = vcombine.high %v1022, 0.0
    %v1047 = vcombine.high %v1029, 0.0
    %v1048 = vcombine.high %v1038, 0.0
    %v1049 = vcombine.high %v1045, 0.0
    %v1050 = vcombine.low %v511, %v829
    %v1051 = vcombine.high %v511, %v829
    %v1053 = vunpack.c.l.s4 1983009808
    %v1054 = vunpack.c.0.s8 %v1053
    %v1055 = vlaneseq
    %v1056 = vshrl.u32 %v1055, 7
    %v1057 = vsub.s32 %v1054, %v1056
    %v1058 = vrot.slane %v1050, %v1057
    %v1060 = vunpack.c.l.s4 1983009808
    %v1061 = vunpack.c.0.s8 %v1060
    %v1062 = vlaneseq
    %v1063 = vshrl.u32 %v1062, 7
    %v1064 = vsub.s32 %v1061, %v1063
    %v1065 = vrot.slane %v1051, %v1064
    %v1066 = vcombine.low %v817, %v841
    %v1067 = vcombine.high %v817, %v841
    %v1069 = vunpack.c.l.s4 1983009808
    %v1070 = vunpack.c.0.s8 %v1069
    %v1071 = vlaneseq
    %v1072 = vshrl.u32 %v1071, 7
    %v1073 = vsub.s32 %v1070, %v1072
    %v1074 = vrot.slane %v1066, %v1073
    %v1076 = vunpack.c.l.s4 1983009808
    %v1077 = vunpack.c.0.s8 %v1076
    %v1078 = vlaneseq
    %v1079 = vshrl.u32 %v1078, 7
    %v1080 = vsub.s32 %v1077, %v1079
    %v1081 = vrot.slane %v1067, %v1080
    %v1082 = vcombine.low %v1058, %v1074
    %v1083 = vcombine.high %v1058, %v1074
    %v1085 = vunpack.c.l.s4 1934713408
    %v1086 = vunpack.c.0.s8 %v1085
    %v1087 = vlaneseq
    %v1088 = vshrl.u32 %v1087, 7
    %v1089 = vsub.s32 %v1086, %v1088
    %v1090 = vrot.slane %v1082, %v1089
    %v1092 = vunpack.c.l.s4 1934713408
    %v1093 = vunpack.c.0.s8 %v1092
    %v1094 = vlaneseq
    %v1095 = vshrl.u32 %v1094, 7
    %v1096 = vsub.s32 %v1093, %v1095
    %v1097 = vrot.slane %v1083, %v1096
    %v1098 = vcombine.low %v1065, %v1081
    %v1099 = vcombine.high %v1065, %v1081
    %v1101 = vunpack.c.l.s4 1934713408
    %v1102 = vunpack.c.0.s8 %v1101
    %v1103 = vlaneseq
    %v1104 = vshrl.u32 %v1103, 7
    %v1105 = vsub.s32 %v1102, %v1104
    %v1106 = vrot.slane %v1098, %v1105
    %v1108 = vunpack.c.l.s4 1934713408
    %v1109 = vunpack.c.0.s8 %v1108
    %v1110 = vlaneseq
    %v1111 = vshrl.u32 %v1110, 7
    %v1112 = vsub.s32 %v1109, %v1111
    %v1113 = vrot.slane %v1099, %v1112
    %v1114 = vcombine.high %v1090, 0.0
    %v1115 = vcombine.high %v1097, 0.0
    %v1116 = vcombine.high %v1106, 0.0
    %v1117 = vcombine.high %v1113, 0.0
    %v1118 = vcombine.low %v886, %v902
    %v1120 = vunpack.c.l.s4 1983009808
    %v1121 = vunpack.c.0.s8 %v1120
    %v1122 = vlaneseq
    %v1123 = vshrl.u32 %v1122, 7
    %v1124 = vsub.s32 %v1121, %v1123
    %v1125 = vrot.slane %v1118, %v1124
    %v1126 = vcombine.low %v893, %v909
    %v1128 = vunpack.c.l.s4 1983009808
    %v1129 = vunpack.c.0.s8 %v1128
    %v1130 = vlaneseq
    %v1131 = vshrl.u32 %v1130, 7
    %v1132 = vsub.s32 %v1129, %v1131
    %v1133 = vrot.slane %v1126, %v1132
    %v1134 = vcombine.low %v954, %v970
    %v1136 = vunpack.c.l.s4 1983009808
    %v1137 = vunpack.c.0.s8 %v1136
    %v1138 = vlaneseq
    %v1139 = vshrl.u32 %v1138, 7
    %v1140 = vsub.s32 %v1137, %v1139
    %v1141 = vrot.slane %v1134, %v1140
    %v1142 = vcombine.low %v961, %v977
    %v1144 = vunpack.c.l.s4 1983009808
    %v1145 = vunpack.c.0.s8 %v1144
    %v1146 = vlaneseq
    %v1147 = vshrl.u32 %v1146, 7
    %v1148 = vsub.s32 %v1145, %v1147
    %v1149 = vrot.slane %v1142, %v1148
    %v1150 = vcombine.low %v1125, %v1133
    %v1151 = vcombine.high %v1125, %v1133
    %v1153 = vunpack.c.l.s4 1934713408
    %v1154 = vunpack.c.0.s8 %v1153
    %v1155 = vlaneseq
    %v1156 = vshrl.u32 %v1155, 7
    %v1157 = vsub.s32 %v1154, %v1156
    %v1158 = vrot.slane %v1150, %v1157
    %v1160 = vunpack.c.l.s4 1934713408
    %v1161 = vunpack.c.0.s8 %v1160
    %v1162 = vlaneseq
    %v1163 = vshrl.u32 %v1162, 7
    %v1164 = vsub.s32 %v1161, %v1163
    %v1165 = vrot.slane %v1151, %v1164
    %v1166 = vcombine.low %v1141, %v1149
    %v1167 = vcombine.high %v1141, %v1149
    %v1169 = vunpack.c.l.s4 1934713408
    %v1170 = vunpack.c.0.s8 %v1169
    %v1171 = vlaneseq
    %v1172 = vshrl.u32 %v1171, 7
    %v1173 = vsub.s32 %v1170, %v1172
    %v1174 = vrot.slane %v1166, %v1173
    %v1176 = vunpack.c.l.s4 1934713408
    %v1177 = vunpack.c.0.s8 %v1176
    %v1178 = vlaneseq
    %v1179 = vshrl.u32 %v1178, 7
    %v1180 = vsub.s32 %v1177, %v1179
    %v1181 = vrot.slane %v1167, %v1180
    %v1182 = vcombine.low %v1158, %v1174
    %v1183 = vcombine.high %v1158, %v1174
    %v1184 = vcombine.low %v1165, %v1181
    %v1185 = vcombine.high %v1165, %v1181
    %v1186 = vcombine.low %v1022, %v1038
    %v1188 = vunpack.c.l.s4 1983009808
    %v1189 = vunpack.c.0.s8 %v1188
    %v1190 = vlaneseq
    %v1191 = vshrl.u32 %v1190, 7
    %v1192 = vsub.s32 %v1189, %v1191
    %v1193 = vrot.slane %v1186, %v1192
    %v1194 = vcombine.low %v1029, %v1045
    %v1196 = vunpack.c.l.s4 1983009808
    %v1197 = vunpack.c.0.s8 %v1196
    %v1198 = vlaneseq
    %v1199 = vshrl.u32 %v1198, 7
    %v1200 = vsub.s32 %v1197, %v1199
    %v1201 = vrot.slane %v1194, %v1200
    %v1202 = vcombine.low %v1090, %v1106
    %v1204 = vunpack.c.l.s4 1983009808
    %v1205 = vunpack.c.0.s8 %v1204
    %v1206 = vlaneseq
    %v1207 = vshrl.u32 %v1206, 7
    %v1208 = vsub.s32 %v1205, %v1207
    %v1209 = vrot.slane %v1202, %v1208
    %v1210 = vcombine.low %v1097, %v1113
    %v1212 = vunpack.c.l.s4 1983009808
    %v1213 = vunpack.c.0.s8 %v1212
    %v1214 = vlaneseq
    %v1215 = vshrl.u32 %v1214, 7
    %v1216 = vsub.s32 %v1213, %v1215
    %v1217 = vrot.slane %v1210, %v1216
    %v1218 = vcombine.low %v1193, %v1201
    %v1219 = vcombine.high %v1193, %v1201
    %v1221 = vunpack.c.l.s4 1934713408
    %v1222 = vunpack.c.0.s8 %v1221
    %v1223 = vlaneseq
    %v1224 = vshrl.u32 %v1223, 7
    %v1225 = vsub.s32 %v1222, %v1224
    %v1226 = vrot.slane %v1218, %v1225
    %v1228 = vunpack.c.l.s4 1934713408
    %v1229 = vunpack.c.0.s8 %v1228
    %v1230 = vlaneseq
    %v1231 = vshrl.u32 %v1230, 7
    %v1232 = vsub.s32 %v1229, %v1231
    %v1233 = vrot.slane %v1219, %v1232
    %v1234 = vcombine.low %v1209, %v1217
    %v1235 = vcombine.high %v1209, %v1217
    %v1237 = vunpack.c.l.s4 1934713408
    %v1238 = vunpack.c.0.s8 %v1237
    %v1239 = vlaneseq
    %v1240 = vshrl.u32 %v1239, 7
    %v1241 = vsub.s32 %v1238, %v1240
    %v1242 = vrot.slane %v1234, %v1241
    %v1244 = vunpack.c.l.s4 1934713408
    %v1245 = vunpack.c.0.s8 %v1244
    %v1246 = vlaneseq
    %v1247 = vshrl.u32 %v1246, 7
    %v1248 = vsub.s32 %v1245, %v1247
    %v1249 = vrot.slane %v1235, %v1248
    %v1250 = vcombine.low %v1226, %v1242
    %v1251 = vcombine.high %v1226, %v1242
    %v1252 = vcombine.low %v1233, %v1249
    %v1253 = vcombine.high %v1233, %v1249
    %v1254 = vcombine.low %v910, %v912
    %v1256 = vunpack.c.l.s4 1983009808
    %v1257 = vunpack.c.0.s8 %v1256
    %v1258 = vlaneseq
    %v1259 = vshrl.u32 %v1258, 7
    %v1260 = vsub.s32 %v1257, %v1259
    %v1261 = vrot.slane %v1254, %v1260
    %v1262 = vcombine.low %v911, %v913
    %v1264 = vunpack.c.l.s4 1983009808
    %v1265 = vunpack.c.0.s8 %v1264
    %v1266 = vlaneseq
    %v1267 = vshrl.u32 %v1266, 7
    %v1268 = vsub.s32 %v1265, %v1267
    %v1269 = vrot.slane %v1262, %v1268
    %v1270 = vcombine.low %v978, %v980
    %v1272 = vunpack.c.l.s4 1983009808
    %v1273 = vunpack.c.0.s8 %v1272
    %v1274 = vlaneseq
    %v1275 = vshrl.u32 %v1274, 7
    %v1276 = vsub.s32 %v1273, %v1275
    %v1277 = vrot.slane %v1270, %v1276
    %v1278 = vcombine.low %v979, %v981
    %v1280 = vunpack.c.l.s4 1983009808
    %v1281 = vunpack.c.0.s8 %v1280
    %v1282 = vlaneseq
    %v1283 = vshrl.u32 %v1282, 7
    %v1284 = vsub.s32 %v1281, %v1283
    %v1285 = vrot.slane %v1278, %v1284
    %v1286 = vcombine.low %v1261, %v1269
    %v1287 = vcombine.high %v1261, %v1269
    %v1289 = vunpack.c.l.s4 1934713408
    %v1290 = vunpack.c.0.s8 %v1289
    %v1291 = vlaneseq
    %v1292 = vshrl.u32 %v1291, 7
    %v1293 = vsub.s32 %v1290, %v1292
    %v1294 = vrot.slane %v1286, %v1293
    %v1296 = vunpack.c.l.s4 1934713408
    %v1297 = vunpack.c.0.s8 %v1296
    %v1298 = vlaneseq
    %v1299 = vshrl.u32 %v1298, 7
    %v1300 = vsub.s32 %v1297, %v1299
    %v1301 = vrot.slane %v1287, %v1300
    %v1302 = vcombine.low %v1277, %v1285
    %v1303 = vcombine.high %v1277, %v1285
    %v1305 = vunpack.c.l.s4 1934713408
    %v1306 = vunpack.c.0.s8 %v1305
    %v1307 = vlaneseq
    %v1308 = vshrl.u32 %v1307, 7
    %v1309 = vsub.s32 %v1306, %v1308
    %v1310 = vrot.slane %v1302, %v1309
    %v1312 = vunpack.c.l.s4 1934713408
    %v1313 = vunpack.c.0.s8 %v1312
    %v1314 = vlaneseq
    %v1315 = vshrl.u32 %v1314, 7
    %v1316 = vsub.s32 %v1313, %v1315
    %v1317 = vrot.slane %v1303, %v1316
    %v1318 = vcombine.low %v1294, %v1310
    %v1319 = vcombine.high %v1294, %v1310
    %v1320 = vcombine.low %v1301, %v1317
    %v1321 = vcombine.high %v1301, %v1317
    %v1322 = vcombine.low %v1046, %v1048
    %v1324 = vunpack.c.l.s4 1983009808
    %v1325 = vunpack.c.0.s8 %v1324
    %v1326 = vlaneseq
    %v1327 = vshrl.u32 %v1326, 7
    %v1328 = vsub.s32 %v1325, %v1327
    %v1329 = vrot.slane %v1322, %v1328
    %v1330 = vcombine.low %v1047, %v1049
    %v1332 = vunpack.c.l.s4 1983009808
    %v1333 = vunpack.c.0.s8 %v1332
    %v1334 = vlaneseq
    %v1335 = vshrl.u32 %v1334, 7
    %v1336 = vsub.s32 %v1333, %v1335
    %v1337 = vrot.slane %v1330, %v1336
    %v1338 = vcombine.low %v1114, %v1116
    %v1340 = vunpack.c.l.s4 1983009808
    %v1341 = vunpack.c.0.s8 %v1340
    %v1342 = vlaneseq
    %v1343 = vshrl.u32 %v1342, 7
    %v1344 = vsub.s32 %v1341, %v1343
    %v1345 = vrot.slane %v1338, %v1344
    %v1346 = vcombine.low %v1115, %v1117
    %v1348 = vunpack.c.l.s4 1983009808
    %v1349 = vunpack.c.0.s8 %v1348
    %v1350 = vlaneseq
    %v1351 = vshrl.u32 %v1350, 7
    %v1352 = vsub.s32 %v1349, %v1351
    %v1353 = vrot.slane %v1346, %v1352
    %v1354 = vcombine.low %v1329, %v1337
    %v1355 = vcombine.high %v1329, %v1337
    %v1357 = vunpack.c.l.s4 1934713408
    %v1358 = vunpack.c.0.s8 %v1357
    %v1359 = vlaneseq
    %v1360 = vshrl.u32 %v1359, 7
    %v1361 = vsub.s32 %v1358, %v1360
    %v1362 = vrot.slane %v1354, %v1361
    %v1364 = vunpack.c.l.s4 1934713408
    %v1365 = vunpack.c.0.s8 %v1364
    %v1366 = vlaneseq
    %v1367 = vshrl.u32 %v1366, 7
    %v1368 = vsub.s32 %v1365, %v1367
    %v1369 = vrot.slane %v1355, %v1368
    %v1370 = vcombine.low %v1345, %v1353
    %v1371 = vcombine.high %v1345, %v1353
    %v1373 = vunpack.c.l.s4 1934713408
    %v1374 = vunpack.c.0.s8 %v1373
    %v1375 = vlaneseq
    %v1376 = vshrl.u32 %v1375, 7
    %v1377 = vsub.s32 %v1374, %v1376
    %v1378 = vrot.slane %v1370, %v1377
    %v1380 = vunpack.c.l.s4 1934713408
    %v1381 = vunpack.c.0.s8 %v1380
    %v1382 = vlaneseq
    %v1383 = vshrl.u32 %v1382, 7
    %v1384 = vsub.s32 %v1381, %v1383
    %v1385 = vrot.slane %v1371, %v1384
    %v1386 = vcombine.low %v1362, %v1378
    %v1387 = vcombine.high %v1362, %v1378
    %v1388 = vcombine.low %v1369, %v1385
    %v1389 = vcombine.high %v1369, %v1385
    %1390 = vrot.lane.b32.xlu0 %v385, 96
    %v1391 = vpop.permute.xlu0 %1390
    %1392 = vrot.lane.b32.xlu0 %v390, 96
    %v1393 = vpop.permute.xlu0 %1392
    %1394 = vrot.lane.b32.xlu0 %v506, 96
    %v1395 = vpop.permute.xlu0 %1394
    %1396 = vrot.lane.b32.xlu0 %v511, 96
    %v1397 = vpop.permute.xlu0 %1396
    %1398 = vrot.lane.b32.xlu0 %v811, 96
    %v1399 = vpop.permute.xlu0 %1398
    %1400 = vrot.lane.b32.xlu0 %v813, 96
    %v1401 = vpop.permute.xlu0 %1400
    %1402 = vrot.lane.b32.xlu0 %v815, 96
    %v1403 = vpop.permute.xlu0 %1402
    %1404 = vrot.lane.b32.xlu0 %v817, 96
    %v1405 = vpop.permute.xlu0 %1404
    %1406 = vrot.lane.b32.xlu0 %v823, 96
    %v1407 = vpop.permute.xlu0 %1406
    %1408 = vrot.lane.b32.xlu0 %v825, 96
    %v1409 = vpop.permute.xlu0 %1408
    %1410 = vrot.lane.b32.xlu0 %v827, 96
    %v1411 = vpop.permute.xlu0 %1410
    %1412 = vrot.lane.b32.xlu0 %v829, 96
    %v1413 = vpop.permute.xlu0 %1412
    %1414 = vrot.lane.b32.xlu0 %v835, 96
    %v1415 = vpop.permute.xlu0 %1414
    %1416 = vrot.lane.b32.xlu0 %v837, 96
    %v1417 = vpop.permute.xlu0 %1416
    %1418 = vrot.lane.b32.xlu0 %v839, 96
    %v1419 = vpop.permute.xlu0 %1418
    %1420 = vrot.lane.b32.xlu0 %v841, 96
    %v1421 = vpop.permute.xlu0 %1420
    %v1438 = vcombine.low %v1391, %v1407
    %v1439 = vcombine.high %v1391, %v1407
    %v1441 = vunpack.c.l.s4 1983009808
    %v1442 = vunpack.c.0.s8 %v1441
    %v1443 = vlaneseq
    %v1444 = vshrl.u32 %v1443, 7
    %v1445 = vsub.s32 %v1442, %v1444
    %v1446 = vrot.slane %v1438, %v1445
    %v1448 = vunpack.c.l.s4 1983009808
    %v1449 = vunpack.c.0.s8 %v1448
    %v1450 = vlaneseq
    %v1451 = vshrl.u32 %v1450, 7
    %v1452 = vsub.s32 %v1449, %v1451
    %v1453 = vrot.slane %v1439, %v1452
    %v1454 = vcombine.low %v1399, %v1415
    %v1455 = vcombine.high %v1399, %v1415
    %v1457 = vunpack.c.l.s4 1983009808
    %v1458 = vunpack.c.0.s8 %v1457
    %v1459 = vlaneseq
    %v1460 = vshrl.u32 %v1459, 7
    %v1461 = vsub.s32 %v1458, %v1460
    %v1462 = vrot.slane %v1454, %v1461
    %v1464 = vunpack.c.l.s4 1983009808
    %v1465 = vunpack.c.0.s8 %v1464
    %v1466 = vlaneseq
    %v1467 = vshrl.u32 %v1466, 7
    %v1468 = vsub.s32 %v1465, %v1467
    %v1469 = vrot.slane %v1455, %v1468
    %v1470 = vcombine.low %v1446, %v1462
    %v1471 = vcombine.high %v1446, %v1462
    %v1473 = vunpack.c.l.s4 1934713408
    %v1474 = vunpack.c.0.s8 %v1473
    %v1475 = vlaneseq
    %v1476 = vshrl.u32 %v1475, 7
    %v1477 = vsub.s32 %v1474, %v1476
    %v1478 = vrot.slane %v1470, %v1477
    %v1480 = vunpack.c.l.s4 1934713408
    %v1481 = vunpack.c.0.s8 %v1480
    %v1482 = vlaneseq
    %v1483 = vshrl.u32 %v1482, 7
    %v1484 = vsub.s32 %v1481, %v1483
    %v1485 = vrot.slane %v1471, %v1484
    %v1486 = vcombine.low %v1453, %v1469
    %v1487 = vcombine.high %v1453, %v1469
    %v1489 = vunpack.c.l.s4 1934713408
    %v1490 = vunpack.c.0.s8 %v1489
    %v1491 = vlaneseq
    %v1492 = vshrl.u32 %v1491, 7
    %v1493 = vsub.s32 %v1490, %v1492
    %v1494 = vrot.slane %v1486, %v1493
    %v1496 = vunpack.c.l.s4 1934713408
    %v1497 = vunpack.c.0.s8 %v1496
    %v1498 = vlaneseq
    %v1499 = vshrl.u32 %v1498, 7
    %v1500 = vsub.s32 %v1497, %v1499
    %v1501 = vrot.slane %v1487, %v1500
    %v1502 = vcombine.high %v1478, 0.0
    %v1503 = vcombine.high %v1485, 0.0
    %v1504 = vcombine.high %v1494, 0.0
    %v1505 = vcombine.high %v1501, 0.0
    %v1506 = vcombine.low %v1393, %v1409
    %v1507 = vcombine.high %v1393, %v1409
    %v1509 = vunpack.c.l.s4 1983009808
    %v1510 = vunpack.c.0.s8 %v1509
    %v1511 = vlaneseq
    %v1512 = vshrl.u32 %v1511, 7
    %v1513 = vsub.s32 %v1510, %v1512
    %v1514 = vrot.slane %v1506, %v1513
    %v1516 = vunpack.c.l.s4 1983009808
    %v1517 = vunpack.c.0.s8 %v1516
    %v1518 = vlaneseq
    %v1519 = vshrl.u32 %v1518, 7
    %v1520 = vsub.s32 %v1517, %v1519
    %v1521 = vrot.slane %v1507, %v1520
    %v1522 = vcombine.low %v1401, %v1417
    %v1523 = vcombine.high %v1401, %v1417
    %v1525 = vunpack.c.l.s4 1983009808
    %v1526 = vunpack.c.0.s8 %v1525
    %v1527 = vlaneseq
    %v1528 = vshrl.u32 %v1527, 7
    %v1529 = vsub.s32 %v1526, %v1528
    %v1530 = vrot.slane %v1522, %v1529
    %v1532 = vunpack.c.l.s4 1983009808
    %v1533 = vunpack.c.0.s8 %v1532
    %v1534 = vlaneseq
    %v1535 = vshrl.u32 %v1534, 7
    %v1536 = vsub.s32 %v1533, %v1535
    %v1537 = vrot.slane %v1523, %v1536
    %v1538 = vcombine.low %v1514, %v1530
    %v1539 = vcombine.high %v1514, %v1530
    %v1541 = vunpack.c.l.s4 1934713408
    %v1542 = vunpack.c.0.s8 %v1541
    %v1543 = vlaneseq
    %v1544 = vshrl.u32 %v1543, 7
    %v1545 = vsub.s32 %v1542, %v1544
    %v1546 = vrot.slane %v1538, %v1545
    %v1548 = vunpack.c.l.s4 1934713408
    %v1549 = vunpack.c.0.s8 %v1548
    %v1550 = vlaneseq
    %v1551 = vshrl.u32 %v1550, 7
    %v1552 = vsub.s32 %v1549, %v1551
    %v1553 = vrot.slane %v1539, %v1552
    %v1554 = vcombine.low %v1521, %v1537
    %v1555 = vcombine.high %v1521, %v1537
    %v1557 = vunpack.c.l.s4 1934713408
    %v1558 = vunpack.c.0.s8 %v1557
    %v1559 = vlaneseq
    %v1560 = vshrl.u32 %v1559, 7
    %v1561 = vsub.s32 %v1558, %v1560
    %v1562 = vrot.slane %v1554, %v1561
    %v1564 = vunpack.c.l.s4 1934713408
    %v1565 = vunpack.c.0.s8 %v1564
    %v1566 = vlaneseq
    %v1567 = vshrl.u32 %v1566, 7
    %v1568 = vsub.s32 %v1565, %v1567
    %v1569 = vrot.slane %v1555, %v1568
    %v1570 = vcombine.high %v1546, 0.0
    %v1571 = vcombine.high %v1553, 0.0
    %v1572 = vcombine.high %v1562, 0.0
    %v1573 = vcombine.high %v1569, 0.0
    %v1574 = vcombine.low %v1395, %v1411
    %v1575 = vcombine.high %v1395, %v1411
    %v1577 = vunpack.c.l.s4 1983009808
    %v1578 = vunpack.c.0.s8 %v1577
    %v1579 = vlaneseq
    %v1580 = vshrl.u32 %v1579, 7
    %v1581 = vsub.s32 %v1578, %v1580
    %v1582 = vrot.slane %v1574, %v1581
    %v1584 = vunpack.c.l.s4 1983009808
    %v1585 = vunpack.c.0.s8 %v1584
    %v1586 = vlaneseq
    %v1587 = vshrl.u32 %v1586, 7
    %v1588 = vsub.s32 %v1585, %v1587
    %v1589 = vrot.slane %v1575, %v1588
    %v1590 = vcombine.low %v1403, %v1419
    %v1591 = vcombine.high %v1403, %v1419
    %v1593 = vunpack.c.l.s4 1983009808
    %v1594 = vunpack.c.0.s8 %v1593
    %v1595 = vlaneseq
    %v1596 = vshrl.u32 %v1595, 7
    %v1597 = vsub.s32 %v1594, %v1596
    %v1598 = vrot.slane %v1590, %v1597
    %v1600 = vunpack.c.l.s4 1983009808
    %v1601 = vunpack.c.0.s8 %v1600
    %v1602 = vlaneseq
    %v1603 = vshrl.u32 %v1602, 7
    %v1604 = vsub.s32 %v1601, %v1603
    %v1605 = vrot.slane %v1591, %v1604
    %v1606 = vcombine.low %v1582, %v1598
    %v1607 = vcombine.high %v1582, %v1598
    %v1609 = vunpack.c.l.s4 1934713408
    %v1610 = vunpack.c.0.s8 %v1609
    %v1611 = vlaneseq
    %v1612 = vshrl.u32 %v1611, 7
    %v1613 = vsub.s32 %v1610, %v1612
    %v1614 = vrot.slane %v1606, %v1613
    %v1616 = vunpack.c.l.s4 1934713408
    %v1617 = vunpack.c.0.s8 %v1616
    %v1618 = vlaneseq
    %v1619 = vshrl.u32 %v1618, 7
    %v1620 = vsub.s32 %v1617, %v1619
    %v1621 = vrot.slane %v1607, %v1620
    %v1622 = vcombine.low %v1589, %v1605
    %v1623 = vcombine.high %v1589, %v1605
    %v1625 = vunpack.c.l.s4 1934713408
    %v1626 = vunpack.c.0.s8 %v1625
    %v1627 = vlaneseq
    %v1628 = vshrl.u32 %v1627, 7
    %v1629 = vsub.s32 %v1626, %v1628
    %v1630 = vrot.slane %v1622, %v1629
    %v1632 = vunpack.c.l.s4 1934713408
    %v1633 = vunpack.c.0.s8 %v1632
    %v1634 = vlaneseq
    %v1635 = vshrl.u32 %v1634, 7
    %v1636 = vsub.s32 %v1633, %v1635
    %v1637 = vrot.slane %v1623, %v1636
    %v1638 = vcombine.high %v1614, 0.0
    %v1639 = vcombine.high %v1621, 0.0
    %v1640 = vcombine.high %v1630, 0.0
    %v1641 = vcombine.high %v1637, 0.0
    %v1642 = vcombine.low %v1397, %v1413
    %v1643 = vcombine.high %v1397, %v1413
    %v1645 = vunpack.c.l.s4 1983009808
    %v1646 = vunpack.c.0.s8 %v1645
    %v1647 = vlaneseq
    %v1648 = vshrl.u32 %v1647, 7
    %v1649 = vsub.s32 %v1646, %v1648
    %v1650 = vrot.slane %v1642, %v1649
    %v1652 = vunpack.c.l.s4 1983009808
    %v1653 = vunpack.c.0.s8 %v1652
    %v1654 = vlaneseq
    %v1655 = vshrl.u32 %v1654, 7
    %v1656 = vsub.s32 %v1653, %v1655
    %v1657 = vrot.slane %v1643, %v1656
    %v1658 = vcombine.low %v1405, %v1421
    %v1659 = vcombine.high %v1405, %v1421
    %v1661 = vunpack.c.l.s4 1983009808
    %v1662 = vunpack.c.0.s8 %v1661
    %v1663 = vlaneseq
    %v1664 = vshrl.u32 %v1663, 7
    %v1665 = vsub.s32 %v1662, %v1664
    %v1666 = vrot.slane %v1658, %v1665
    %v1668 = vunpack.c.l.s4 1983009808
    %v1669 = vunpack.c.0.s8 %v1668
    %v1670 = vlaneseq
    %v1671 = vshrl.u32 %v1670, 7
    %v1672 = vsub.s32 %v1669, %v1671
    %v1673 = vrot.slane %v1659, %v1672
    %v1674 = vcombine.low %v1650, %v1666
    %v1675 = vcombine.high %v1650, %v1666
    %v1677 = vunpack.c.l.s4 1934713408
    %v1678 = vunpack.c.0.s8 %v1677
    %v1679 = vlaneseq
    %v1680 = vshrl.u32 %v1679, 7
    %v1681 = vsub.s32 %v1678, %v1680
    %v1682 = vrot.slane %v1674, %v1681
    %v1684 = vunpack.c.l.s4 1934713408
    %v1685 = vunpack.c.0.s8 %v1684
    %v1686 = vlaneseq
    %v1687 = vshrl.u32 %v1686, 7
    %v1688 = vsub.s32 %v1685, %v1687
    %v1689 = vrot.slane %v1675, %v1688
    %v1690 = vcombine.low %v1657, %v1673
    %v1691 = vcombine.high %v1657, %v1673
    %v1693 = vunpack.c.l.s4 1934713408
    %v1694 = vunpack.c.0.s8 %v1693
    %v1695 = vlaneseq
    %v1696 = vshrl.u32 %v1695, 7
    %v1697 = vsub.s32 %v1694, %v1696
    %v1698 = vrot.slane %v1690, %v1697
    %v1700 = vunpack.c.l.s4 1934713408
    %v1701 = vunpack.c.0.s8 %v1700
    %v1702 = vlaneseq
    %v1703 = vshrl.u32 %v1702, 7
    %v1704 = vsub.s32 %v1701, %v1703
    %v1705 = vrot.slane %v1691, %v1704
    %v1706 = vcombine.high %v1682, 0.0
    %v1707 = vcombine.high %v1689, 0.0
    %v1708 = vcombine.high %v1698, 0.0
    %v1709 = vcombine.high %v1705, 0.0
    %v1710 = vcombine.low %v1478, %v1494
    %v1712 = vunpack.c.l.s4 1983009808
    %v1713 = vunpack.c.0.s8 %v1712
    %v1714 = vlaneseq
    %v1715 = vshrl.u32 %v1714, 7
    %v1716 = vsub.s32 %v1713, %v1715
    %v1717 = vrot.slane %v1710, %v1716
    %v1718 = vcombine.low %v1485, %v1501
    %v1720 = vunpack.c.l.s4 1983009808
    %v1721 = vunpack.c.0.s8 %v1720
    %v1722 = vlaneseq
    %v1723 = vshrl.u32 %v1722, 7
    %v1724 = vsub.s32 %v1721, %v1723
    %v1725 = vrot.slane %v1718, %v1724
    %v1726 = vcombine.low %v1546, %v1562
    %v1728 = vunpack.c.l.s4 1983009808
    %v1729 = vunpack.c.0.s8 %v1728
    %v1730 = vlaneseq
    %v1731 = vshrl.u32 %v1730, 7
    %v1732 = vsub.s32 %v1729, %v1731
    %v1733 = vrot.slane %v1726, %v1732
    %v1734 = vcombine.low %v1553, %v1569
    %v1736 = vunpack.c.l.s4 1983009808
    %v1737 = vunpack.c.0.s8 %v1736
    %v1738 = vlaneseq
    %v1739 = vshrl.u32 %v1738, 7
    %v1740 = vsub.s32 %v1737, %v1739
    %v1741 = vrot.slane %v1734, %v1740
    %v1742 = vcombine.low %v1717, %v1725
    %v1743 = vcombine.high %v1717, %v1725
    %v1745 = vunpack.c.l.s4 1934713408
    %v1746 = vunpack.c.0.s8 %v1745
    %v1747 = vlaneseq
    %v1748 = vshrl.u32 %v1747, 7
    %v1749 = vsub.s32 %v1746, %v1748
    %v1750 = vrot.slane %v1742, %v1749
    %v1752 = vunpack.c.l.s4 1934713408
    %v1753 = vunpack.c.0.s8 %v1752
    %v1754 = vlaneseq
    %v1755 = vshrl.u32 %v1754, 7
    %v1756 = vsub.s32 %v1753, %v1755
    %v1757 = vrot.slane %v1743, %v1756
    %v1758 = vcombine.low %v1733, %v1741
    %v1759 = vcombine.high %v1733, %v1741
    %v1761 = vunpack.c.l.s4 1934713408
    %v1762 = vunpack.c.0.s8 %v1761
    %v1763 = vlaneseq
    %v1764 = vshrl.u32 %v1763, 7
    %v1765 = vsub.s32 %v1762, %v1764
    %v1766 = vrot.slane %v1758, %v1765
    %v1768 = vunpack.c.l.s4 1934713408
    %v1769 = vunpack.c.0.s8 %v1768
    %v1770 = vlaneseq
    %v1771 = vshrl.u32 %v1770, 7
    %v1772 = vsub.s32 %v1769, %v1771
    %v1773 = vrot.slane %v1759, %v1772
    %v1774 = vcombine.low %v1750, %v1766
    %v1775 = vcombine.high %v1750, %v1766
    %v1776 = vcombine.low %v1757, %v1773
    %v1777 = vcombine.high %v1757, %v1773
    %v1778 = vcombine.low %v1614, %v1630
    %v1780 = vunpack.c.l.s4 1983009808
    %v1781 = vunpack.c.0.s8 %v1780
    %v1782 = vlaneseq
    %v1783 = vshrl.u32 %v1782, 7
    %v1784 = vsub.s32 %v1781, %v1783
    %v1785 = vrot.slane %v1778, %v1784
    %v1786 = vcombine.low %v1621, %v1637
    %v1788 = vunpack.c.l.s4 1983009808
    %v1789 = vunpack.c.0.s8 %v1788
    %v1790 = vlaneseq
    %v1791 = vshrl.u32 %v1790, 7
    %v1792 = vsub.s32 %v1789, %v1791
    %v1793 = vrot.slane %v1786, %v1792
    %v1794 = vcombine.low %v1682, %v1698
    %v1796 = vunpack.c.l.s4 1983009808
    %v1797 = vunpack.c.0.s8 %v1796
    %v1798 = vlaneseq
    %v1799 = vshrl.u32 %v1798, 7
    %v1800 = vsub.s32 %v1797, %v1799
    %v1801 = vrot.slane %v1794, %v1800
    %v1802 = vcombine.low %v1689, %v1705
    %v1804 = vunpack.c.l.s4 1983009808
    %v1805 = vunpack.c.0.s8 %v1804
    %v1806 = vlaneseq
    %v1807 = vshrl.u32 %v1806, 7
    %v1808 = vsub.s32 %v1805, %v1807
    %v1809 = vrot.slane %v1802, %v1808
    %v1810 = vcombine.low %v1785, %v1793
    %v1811 = vcombine.high %v1785, %v1793
    %v1813 = vunpack.c.l.s4 1934713408
    %v1814 = vunpack.c.0.s8 %v1813
    %v1815 = vlaneseq
    %v1816 = vshrl.u32 %v1815, 7
    %v1817 = vsub.s32 %v1814, %v1816
    %v1818 = vrot.slane %v1810, %v1817
    %v1820 = vunpack.c.l.s4 1934713408
    %v1821 = vunpack.c.0.s8 %v1820
    %v1822 = vlaneseq
    %v1823 = vshrl.u32 %v1822, 7
    %v1824 = vsub.s32 %v1821, %v1823
    %v1825 = vrot.slane %v1811, %v1824
    %v1826 = vcombine.low %v1801, %v1809
    %v1827 = vcombine.high %v1801, %v1809
    %v1829 = vunpack.c.l.s4 1934713408
    %v1830 = vunpack.c.0.s8 %v1829
    %v1831 = vlaneseq
    %v1832 = vshrl.u32 %v1831, 7
    %v1833 = vsub.s32 %v1830, %v1832
    %v1834 = vrot.slane %v1826, %v1833
    %v1836 = vunpack.c.l.s4 1934713408
    %v1837 = vunpack.c.0.s8 %v1836
    %v1838 = vlaneseq
    %v1839 = vshrl.u32 %v1838, 7
    %v1840 = vsub.s32 %v1837, %v1839
    %v1841 = vrot.slane %v1827, %v1840
    %v1842 = vcombine.low %v1818, %v1834
    %v1843 = vcombine.high %v1818, %v1834
    %v1844 = vcombine.low %v1825, %v1841
    %v1845 = vcombine.high %v1825, %v1841
    %v1846 = vcombine.low %v1502, %v1504
    %v1848 = vunpack.c.l.s4 1983009808
    %v1849 = vunpack.c.0.s8 %v1848
    %v1850 = vlaneseq
    %v1851 = vshrl.u32 %v1850, 7
    %v1852 = vsub.s32 %v1849, %v1851
    %v1853 = vrot.slane %v1846, %v1852
    %v1854 = vcombine.low %v1503, %v1505
    %v1856 = vunpack.c.l.s4 1983009808
    %v1857 = vunpack.c.0.s8 %v1856
    %v1858 = vlaneseq
    %v1859 = vshrl.u32 %v1858, 7
    %v1860 = vsub.s32 %v1857, %v1859
    %v1861 = vrot.slane %v1854, %v1860
    %v1862 = vcombine.low %v1570, %v1572
    %v1864 = vunpack.c.l.s4 1983009808
    %v1865 = vunpack.c.0.s8 %v1864
    %v1866 = vlaneseq
    %v1867 = vshrl.u32 %v1866, 7
    %v1868 = vsub.s32 %v1865, %v1867
    %v1869 = vrot.slane %v1862, %v1868
    %v1870 = vcombine.low %v1571, %v1573
    %v1872 = vunpack.c.l.s4 1983009808
    %v1873 = vunpack.c.0.s8 %v1872
    %v1874 = vlaneseq
    %v1875 = vshrl.u32 %v1874, 7
    %v1876 = vsub.s32 %v1873, %v1875
    %v1877 = vrot.slane %v1870, %v1876
    %v1878 = vcombine.low %v1853, %v1861
    %v1879 = vcombine.high %v1853, %v1861
    %v1881 = vunpack.c.l.s4 1934713408
    %v1882 = vunpack.c.0.s8 %v1881
    %v1883 = vlaneseq
    %v1884 = vshrl.u32 %v1883, 7
    %v1885 = vsub.s32 %v1882, %v1884
    %v1886 = vrot.slane %v1878, %v1885
    %v1888 = vunpack.c.l.s4 1934713408
    %v1889 = vunpack.c.0.s8 %v1888
    %v1890 = vlaneseq
    %v1891 = vshrl.u32 %v1890, 7
    %v1892 = vsub.s32 %v1889, %v1891
    %v1893 = vrot.slane %v1879, %v1892
    %v1894 = vcombine.low %v1869, %v1877
    %v1895 = vcombine.high %v1869, %v1877
    %v1897 = vunpack.c.l.s4 1934713408
    %v1898 = vunpack.c.0.s8 %v1897
    %v1899 = vlaneseq
    %v1900 = vshrl.u32 %v1899, 7
    %v1901 = vsub.s32 %v1898, %v1900
    %v1902 = vrot.slane %v1894, %v1901
    %v1904 = vunpack.c.l.s4 1934713408
    %v1905 = vunpack.c.0.s8 %v1904
    %v1906 = vlaneseq
    %v1907 = vshrl.u32 %v1906, 7
    %v1908 = vsub.s32 %v1905, %v1907
    %v1909 = vrot.slane %v1895, %v1908
    %v1910 = vcombine.low %v1886, %v1902
    %v1911 = vcombine.high %v1886, %v1902
    %v1912 = vcombine.low %v1893, %v1909
    %v1913 = vcombine.high %v1893, %v1909
    %v1914 = vcombine.low %v1638, %v1640
    %v1916 = vunpack.c.l.s4 1983009808
    %v1917 = vunpack.c.0.s8 %v1916
    %v1918 = vlaneseq
    %v1919 = vshrl.u32 %v1918, 7
    %v1920 = vsub.s32 %v1917, %v1919
    %v1921 = vrot.slane %v1914, %v1920
    %v1922 = vcombine.low %v1639, %v1641
    %v1924 = vunpack.c.l.s4 1983009808
    %v1925 = vunpack.c.0.s8 %v1924
    %v1926 = vlaneseq
    %v1927 = vshrl.u32 %v1926, 7
    %v1928 = vsub.s32 %v1925, %v1927
    %v1929 = vrot.slane %v1922, %v1928
    %v1930 = vcombine.low %v1706, %v1708
    %v1932 = vunpack.c.l.s4 1983009808
    %v1933 = vunpack.c.0.s8 %v1932
    %v1934 = vlaneseq
    %v1935 = vshrl.u32 %v1934, 7
    %v1936 = vsub.s32 %v1933, %v1935
    %v1937 = vrot.slane %v1930, %v1936
    %v1938 = vcombine.low %v1707, %v1709
    %v1940 = vunpack.c.l.s4 1983009808
    %v1941 = vunpack.c.0.s8 %v1940
    %v1942 = vlaneseq
    %v1943 = vshrl.u32 %v1942, 7
    %v1944 = vsub.s32 %v1941, %v1943
    %v1945 = vrot.slane %v1938, %v1944
    %v1946 = vcombine.low %v1921, %v1929
    %v1947 = vcombine.high %v1921, %v1929
    %v1949 = vunpack.c.l.s4 1934713408
    %v1950 = vunpack.c.0.s8 %v1949
    %v1951 = vlaneseq
    %v1952 = vshrl.u32 %v1951, 7
    %v1953 = vsub.s32 %v1950, %v1952
    %v1954 = vrot.slane %v1946, %v1953
    %v1956 = vunpack.c.l.s4 1934713408
    %v1957 = vunpack.c.0.s8 %v1956
    %v1958 = vlaneseq
    %v1959 = vshrl.u32 %v1958, 7
    %v1960 = vsub.s32 %v1957, %v1959
    %v1961 = vrot.slane %v1947, %v1960
    %v1962 = vcombine.low %v1937, %v1945
    %v1963 = vcombine.high %v1937, %v1945
    %v1965 = vunpack.c.l.s4 1934713408
    %v1966 = vunpack.c.0.s8 %v1965
    %v1967 = vlaneseq
    %v1968 = vshrl.u32 %v1967, 7
    %v1969 = vsub.s32 %v1966, %v1968
    %v1970 = vrot.slane %v1962, %v1969
    %v1972 = vunpack.c.l.s4 1934713408
    %v1973 = vunpack.c.0.s8 %v1972
    %v1974 = vlaneseq
    %v1975 = vshrl.u32 %v1974, 7
    %v1976 = vsub.s32 %v1973, %v1975
    %v1977 = vrot.slane %v1963, %v1976
    %v1978 = vcombine.low %v1954, %v1970
    %v1979 = vcombine.high %v1954, %v1970
    %v1980 = vcombine.low %v1961, %v1977
    %v1981 = vcombine.high %v1961, %v1977
    %vm1982 = vcmask 64512
    %v1984 = vsel %vm1982, %v734, 0
    %v1987 = vsel %vm1982, %v1182, 0
    %v1990 = vsel %vm1982, %v1250, 0
    %1992 = vmatprep.subr.mxu0 0.0
    %1993 = vmatpush1.xpose.msra.mxu0 %v1987
    %1994 = vmatprep.subr.mxu0 0.0
    %1995 = vmatpush1.xpose.msra.mxu0 %v1990
    %1996 = vmatprep.subr.mxu0 0.0
    %1997 = vmatpush1.xpose.msra.mxu0 0.0
    %1998 = vmatprep.subr.mxu0 0.0
    %1999 = vmatpush1.xpose.msra.mxu0 0.0
    %2000 = vmatprep.subr.mxu0 0.0
    %2001 = vmatpush1.xpose.msra.mxu0 0.0
    %2002 = vmatprep.subr.mxu0 0.0
    %2003 = vmatpush1.xpose.msra.mxu0 0.0
    %2004 = vmatprep.subr.mxu0 0.0
    %2005 = vmatpush1.xpose.msra.mxu0 0.0
    %2006 = vmatprep.subr.mxu0 0.0
    %2007 = vmatpush1.xpose.msra.mxu0 0.0
    %2008 = vmatprep.subr.mxu0 0.0
    %2009 = vmatpush1.xpose.msra.mxu0 0.0
    %2010 = vmatprep.subr.mxu0 0.0
    %2011 = vmatpush1.xpose.msra.mxu0 0.0
    %2012 = vmatprep.subr.mxu0 0.0
    %2013 = vmatpush1.xpose.msra.mxu0 0.0
    %2014 = vmatprep.subr.mxu0 0.0
    %2015 = vmatpush1.xpose.msra.mxu0 0.0
    %2016 = vmatprep.subr.mxu0 0.0
    %2017 = vmatpush1.xpose.msra.mxu0 0.0
    %2018 = vmatprep.subr.mxu0 0.0
    %2019 = vmatpush1.xpose.msra.mxu0 0.0
    %2020 = vmatprep.subr.mxu0 0.0
    %2021 = vmatpush1.xpose.msra.mxu0 0.0
    %2022 = vmatprep.subr.mxu0 0.0
    %2023 = vmatpush1.xpose.msra.mxu0 0.0
    %2024 = vmatprep.subr.mxu0 0.0
    %2025 = vmatpush1.xpose.msra.mxu0 0.0
    %2026 = vmatprep.subr.mxu0 0.0
    %2027 = vmatpush1.xpose.msra.mxu0 0.0
    %2028 = vmatprep.subr.mxu0 0.0
    %2029 = vmatpush1.xpose.msra.mxu0 0.0
    %2030 = vmatprep.subr.mxu0 0.0
    %2031 = vmatpush1.xpose.msra.mxu0 0.0
    %2032 = vmatprep.subr.mxu0 0.0
    %2033 = vmatpush1.xpose.msra.mxu0 0.0
    %2034 = vmatprep.subr.mxu0 0.0
    %2035 = vmatpush1.xpose.msra.mxu0 0.0
    %2036 = vmatprep.subr.mxu0 0.0
    %2037 = vmatpush1.xpose.msra.mxu0 0.0
    %2038 = vmatprep.subr.mxu0 0.0
    %2039 = vmatpush1.xpose.msra.mxu0 0.0
    %2040 = vmatprep.subr.mxu0 0.0
    %2041 = vmatpush1.xpose.msra.mxu0 0.0
    %2042 = vmatprep.subr.mxu0 0.0
    %2043 = vmatpush1.xpose.msra.mxu0 0.0
    %2044 = vmatprep.subr.mxu0 0.0
    %2045 = vmatpush1.xpose.msra.mxu0 0.0
    %2046 = vmatprep.subr.mxu0 0.0
    %2047 = vmatpush1.xpose.msra.mxu0 0.0
    %2048 = vmatprep.subr.mxu0 0.0
    %2049 = vmatpush1.xpose.msra.mxu0 0.0
    %2050 = vmatprep.subr.mxu0 0.0
    %2051 = vmatpush1.xpose.msra.mxu0 0.0
    %2052 = vmatprep.subr.mxu0 0.0
    %2053 = vmatpush1.xpose.msra.mxu0 0.0
    %2054 = vmatprep.subr.mxu0 0.0
    %2055 = vmatpush1.xpose.msra.mxu0 0.0
    %2056 = vmatprep.mubr.f32.mxu0 0.0
    %2057 = vmatmul.mubr.f32.gmra.mrb[0].mxu0 %v1984
    %v2058 = vpop.f32.mrb[0].mxu0
    %v2059 = vadd.f32 0.0, %v2058
    %v2060 = vpop.f32.mrb[0].mxu0
    %2061 = vdwg.mxu0
    %v2063 = vsel %vm1982, %v735, 0
    %v2066 = vsel %vm1982, %v1183, 0
    %v2069 = vsel %vm1982, %v1251, 0
    %2071 = vmatprep.subr.mxu0 0.0
    %2072 = vmatpush1.xpose.msra.mxu0 %v2066
    %2073 = vmatprep.subr.mxu0 0.0
    %2074 = vmatpush1.xpose.msra.mxu0 %v2069
    %2075 = vmatprep.subr.mxu0 0.0
    %2076 = vmatpush1.xpose.msra.mxu0 0.0
    %2077 = vmatprep.subr.mxu0 0.0
    %2078 = vmatpush1.xpose.msra.mxu0 0.0
    %2079 = vmatprep.subr.mxu0 0.0
    %2080 = vmatpush1.xpose.msra.mxu0 0.0
    %2081 = vmatprep.subr.mxu0 0.0
    %2082 = vmatpush1.xpose.msra.mxu0 0.0
    %2083 = vmatprep.subr.mxu0 0.0
    %2084 = vmatpush1.xpose.msra.mxu0 0.0
    %2085 = vmatprep.subr.mxu0 0.0
    %2086 = vmatpush1.xpose.msra.mxu0 0.0
    %2087 = vmatprep.subr.mxu0 0.0
    %2088 = vmatpush1.xpose.msra.mxu0 0.0
    %2089 = vmatprep.subr.mxu0 0.0
    %2090 = vmatpush1.xpose.msra.mxu0 0.0
    %2091 = vmatprep.subr.mxu0 0.0
    %2092 = vmatpush1.xpose.msra.mxu0 0.0
    %2093 = vmatprep.subr.mxu0 0.0
    %2094 = vmatpush1.xpose.msra.mxu0 0.0
    %2095 = vmatprep.subr.mxu0 0.0
    %2096 = vmatpush1.xpose.msra.mxu0 0.0
    %2097 = vmatprep.subr.mxu0 0.0
    %2098 = vmatpush1.xpose.msra.mxu0 0.0
    %2099 = vmatprep.subr.mxu0 0.0
    %2100 = vmatpush1.xpose.msra.mxu0 0.0
    %2101 = vmatprep.subr.mxu0 0.0
    %2102 = vmatpush1.xpose.msra.mxu0 0.0
    %2103 = vmatprep.subr.mxu0 0.0
    %2104 = vmatpush1.xpose.msra.mxu0 0.0
    %2105 = vmatprep.subr.mxu0 0.0
    %2106 = vmatpush1.xpose.msra.mxu0 0.0
    %2107 = vmatprep.subr.mxu0 0.0
    %2108 = vmatpush1.xpose.msra.mxu0 0.0
    %2109 = vmatprep.subr.mxu0 0.0
    %2110 = vmatpush1.xpose.msra.mxu0 0.0
    %2111 = vmatprep.subr.mxu0 0.0
    %2112 = vmatpush1.xpose.msra.mxu0 0.0
    %2113 = vmatprep.subr.mxu0 0.0
    %2114 = vmatpush1.xpose.msra.mxu0 0.0
    %2115 = vmatprep.subr.mxu0 0.0
    %2116 = vmatpush1.xpose.msra.mxu0 0.0
    %2117 = vmatprep.subr.mxu0 0.0
    %2118 = vmatpush1.xpose.msra.mxu0 0.0
    %2119 = vmatprep.subr.mxu0 0.0
    %2120 = vmatpush1.xpose.msra.mxu0 0.0
    %2121 = vmatprep.subr.mxu0 0.0
    %2122 = vmatpush1.xpose.msra.mxu0 0.0
    %2123 = vmatprep.subr.mxu0 0.0
    %2124 = vmatpush1.xpose.msra.mxu0 0.0
    %2125 = vmatprep.subr.mxu0 0.0
    %2126 = vmatpush1.xpose.msra.mxu0 0.0
    %2127 = vmatprep.subr.mxu0 0.0
    %2128 = vmatpush1.xpose.msra.mxu0 0.0
    %2129 = vmatprep.subr.mxu0 0.0
    %2130 = vmatpush1.xpose.msra.mxu0 0.0
    %2131 = vmatprep.subr.mxu0 0.0
    %2132 = vmatpush1.xpose.msra.mxu0 0.0
    %2133 = vmatprep.subr.mxu0 0.0
    %2134 = vmatpush1.xpose.msra.mxu0 0.0
    %2135 = vmatprep.mubr.f32.mxu0 0.0
    %2136 = vmatmul.mubr.f32.gmra.mrb[0].mxu0 %v2063
    %v2137 = vpop.f32.mrb[0].mxu0
    %v2138 = vadd.f32 0.0, %v2137
    %v2139 = vpop.f32.mrb[0].mxu0
    %2140 = vdwg.mxu0
    %v2142 = vsel %vm1982, %v736, 0
    %v2145 = vsel %vm1982, %v1184, 0
    %v2148 = vsel %vm1982, %v1252, 0
    %2150 = vmatprep.subr.mxu0 0.0
    %2151 = vmatpush1.xpose.msra.mxu0 %v2145
    %2152 = vmatprep.subr.mxu0 0.0
    %2153 = vmatpush1.xpose.msra.mxu0 %v2148
    %2154 = vmatprep.subr.mxu0 0.0
    %2155 = vmatpush1.xpose.msra.mxu0 0.0
    %2156 = vmatprep.subr.mxu0 0.0
    %2157 = vmatpush1.xpose.msra.mxu0 0.0
    %2158 = vmatprep.subr.mxu0 0.0
    %2159 = vmatpush1.xpose.msra.mxu0 0.0
    %2160 = vmatprep.subr.mxu0 0.0
    %2161 = vmatpush1.xpose.msra.mxu0 0.0
    %2162 = vmatprep.subr.mxu0 0.0
    %2163 = vmatpush1.xpose.msra.mxu0 0.0
    %2164 = vmatprep.subr.mxu0 0.0
    %2165 = vmatpush1.xpose.msra.mxu0 0.0
    %2166 = vmatprep.subr.mxu0 0.0
    %2167 = vmatpush1.xpose.msra.mxu0 0.0
    %2168 = vmatprep.subr.mxu0 0.0
    %2169 = vmatpush1.xpose.msra.mxu0 0.0
    %2170 = vmatprep.subr.mxu0 0.0
    %2171 = vmatpush1.xpose.msra.mxu0 0.0
    %2172 = vmatprep.subr.mxu0 0.0
    %2173 = vmatpush1.xpose.msra.mxu0 0.0
    %2174 = vmatprep.subr.mxu0 0.0
    %2175 = vmatpush1.xpose.msra.mxu0 0.0
    %2176 = vmatprep.subr.mxu0 0.0
    %2177 = vmatpush1.xpose.msra.mxu0 0.0
    %2178 = vmatprep.subr.mxu0 0.0
    %2179 = vmatpush1.xpose.msra.mxu0 0.0
    %2180 = vmatprep.subr.mxu0 0.0
    %2181 = vmatpush1.xpose.msra.mxu0 0.0
    %2182 = vmatprep.subr.mxu0 0.0
    %2183 = vmatpush1.xpose.msra.mxu0 0.0
    %2184 = vmatprep.subr.mxu0 0.0
    %2185 = vmatpush1.xpose.msra.mxu0 0.0
    %2186 = vmatprep.subr.mxu0 0.0
    %2187 = vmatpush1.xpose.msra.mxu0 0.0
    %2188 = vmatprep.subr.mxu0 0.0
    %2189 = vmatpush1.xpose.msra.mxu0 0.0
    %2190 = vmatprep.subr.mxu0 0.0
    %2191 = vmatpush1.xpose.msra.mxu0 0.0
    %2192 = vmatprep.subr.mxu0 0.0
    %2193 = vmatpush1.xpose.msra.mxu0 0.0
    %2194 = vmatprep.subr.mxu0 0.0
    %2195 = vmatpush1.xpose.msra.mxu0 0.0
    %2196 = vmatprep.subr.mxu0 0.0
    %2197 = vmatpush1.xpose.msra.mxu0 0.0
    %2198 = vmatprep.subr.mxu0 0.0
    %2199 = vmatpush1.xpose.msra.mxu0 0.0
    %2200 = vmatprep.subr.mxu0 0.0
    %2201 = vmatpush1.xpose.msra.mxu0 0.0
    %2202 = vmatprep.subr.mxu0 0.0
    %2203 = vmatpush1.xpose.msra.mxu0 0.0
    %2204 = vmatprep.subr.mxu0 0.0
    %2205 = vmatpush1.xpose.msra.mxu0 0.0
    %2206 = vmatprep.subr.mxu0 0.0
    %2207 = vmatpush1.xpose.msra.mxu0 0.0
    %2208 = vmatprep.subr.mxu0 0.0
    %2209 = vmatpush1.xpose.msra.mxu0 0.0
    %2210 = vmatprep.subr.mxu0 0.0
    %2211 = vmatpush1.xpose.msra.mxu0 0.0
    %2212 = vmatprep.subr.mxu0 0.0
    %2213 = vmatpush1.xpose.msra.mxu0 0.0
    %2214 = vmatprep.mubr.f32.mxu0 0.0
    %2215 = vmatmul.mubr.f32.gmra.mrb[0].mxu0 %v2142
    %v2216 = vpop.f32.mrb[0].mxu0
    %v2217 = vadd.f32 0.0, %v2216
    %v2218 = vpop.f32.mrb[0].mxu0
    %2219 = vdwg.mxu0
    %v2221 = vsel %vm1982, %v737, 0
    %v2224 = vsel %vm1982, %v1185, 0
    %v2227 = vsel %vm1982, %v1253, 0
    %2229 = vmatprep.subr.mxu0 0.0
    %2230 = vmatpush1.xpose.msra.mxu0 %v2224
    %2231 = vmatprep.subr.mxu0 0.0
    %2232 = vmatpush1.xpose.msra.mxu0 %v2227
    %2233 = vmatprep.subr.mxu0 0.0
    %2234 = vmatpush1.xpose.msra.mxu0 0.0
    %2235 = vmatprep.subr.mxu0 0.0
    %2236 = vmatpush1.xpose.msra.mxu0 0.0
    %2237 = vmatprep.subr.mxu0 0.0
    %2238 = vmatpush1.xpose.msra.mxu0 0.0
    %2239 = vmatprep.subr.mxu0 0.0
    %2240 = vmatpush1.xpose.msra.mxu0 0.0
    %2241 = vmatprep.subr.mxu0 0.0
    %2242 = vmatpush1.xpose.msra.mxu0 0.0
    %2243 = vmatprep.subr.mxu0 0.0
    %2244 = vmatpush1.xpose.msra.mxu0 0.0
    %2245 = vmatprep.subr.mxu0 0.0
    %2246 = vmatpush1.xpose.msra.mxu0 0.0
    %2247 = vmatprep.subr.mxu0 0.0
    %2248 = vmatpush1.xpose.msra.mxu0 0.0
    %2249 = vmatprep.subr.mxu0 0.0
    %2250 = vmatpush1.xpose.msra.mxu0 0.0
    %2251 = vmatprep.subr.mxu0 0.0
    %2252 = vmatpush1.xpose.msra.mxu0 0.0
    %2253 = vmatprep.subr.mxu0 0.0
    %2254 = vmatpush1.xpose.msra.mxu0 0.0
    %2255 = vmatprep.subr.mxu0 0.0
    %2256 = vmatpush1.xpose.msra.mxu0 0.0
    %2257 = vmatprep.subr.mxu0 0.0
    %2258 = vmatpush1.xpose.msra.mxu0 0.0
    %2259 = vmatprep.subr.mxu0 0.0
    %2260 = vmatpush1.xpose.msra.mxu0 0.0
    %2261 = vmatprep.subr.mxu0 0.0
    %2262 = vmatpush1.xpose.msra.mxu0 0.0
    %2263 = vmatprep.subr.mxu0 0.0
    %2264 = vmatpush1.xpose.msra.mxu0 0.0
    %2265 = vmatprep.subr.mxu0 0.0
    %2266 = vmatpush1.xpose.msra.mxu0 0.0
    %2267 = vmatprep.subr.mxu0 0.0
    %2268 = vmatpush1.xpose.msra.mxu0 0.0
    %2269 = vmatprep.subr.mxu0 0.0
    %2270 = vmatpush1.xpose.msra.mxu0 0.0
    %2271 = vmatprep.subr.mxu0 0.0
    %2272 = vmatpush1.xpose.msra.mxu0 0.0
    %2273 = vmatprep.subr.mxu0 0.0
    %2274 = vmatpush1.xpose.msra.mxu0 0.0
    %2275 = vmatprep.subr.mxu0 0.0
    %2276 = vmatpush1.xpose.msra.mxu0 0.0
    %2277 = vmatprep.subr.mxu0 0.0
    %2278 = vmatpush1.xpose.msra.mxu0 0.0
    %2279 = vmatprep.subr.mxu0 0.0
    %2280 = vmatpush1.xpose.msra.mxu0 0.0
    %2281 = vmatprep.subr.mxu0 0.0
    %2282 = vmatpush1.xpose.msra.mxu0 0.0
    %2283 = vmatprep.subr.mxu0 0.0
    %2284 = vmatpush1.xpose.msra.mxu0 0.0
    %2285 = vmatprep.subr.mxu0 0.0
    %2286 = vmatpush1.xpose.msra.mxu0 0.0
    %2287 = vmatprep.subr.mxu0 0.0
    %2288 = vmatpush1.xpose.msra.mxu0 0.0
    %2289 = vmatprep.subr.mxu0 0.0
    %2290 = vmatpush1.xpose.msra.mxu0 0.0
    %2291 = vmatprep.subr.mxu0 0.0
    %2292 = vmatpush1.xpose.msra.mxu0 0.0
    %2293 = vmatprep.mubr.f32.mxu0 0.0
    %2294 = vmatmul.mubr.f32.gmra.mrb[0].mxu0 %v2221
    %v2295 = vpop.f32.mrb[0].mxu0
    %v2296 = vadd.f32 0.0, %v2295
    %v2297 = vpop.f32.mrb[0].mxu0
    %2298 = vdwg.mxu0
    %v2300 = vsel %vm1982, %v802, 0
    %v2303 = vsel %vm1982, %v1318, 0
    %v2306 = vsel %vm1982, %v1386, 0
    %2308 = vmatprep.subr.mxu0 0.0
    %2309 = vmatpush1.xpose.msra.mxu0 %v2303
    %2310 = vmatprep.subr.mxu0 0.0
    %2311 = vmatpush1.xpose.msra.mxu0 %v2306
    %2312 = vmatprep.subr.mxu0 0.0
    %2313 = vmatpush1.xpose.msra.mxu0 0.0
    %2314 = vmatprep.subr.mxu0 0.0
    %2315 = vmatpush1.xpose.msra.mxu0 0.0
    %2316 = vmatprep.subr.mxu0 0.0
    %2317 = vmatpush1.xpose.msra.mxu0 0.0
    %2318 = vmatprep.subr.mxu0 0.0
    %2319 = vmatpush1.xpose.msra.mxu0 0.0
    %2320 = vmatprep.subr.mxu0 0.0
    %2321 = vmatpush1.xpose.msra.mxu0 0.0
    %2322 = vmatprep.subr.mxu0 0.0
    %2323 = vmatpush1.xpose.msra.mxu0 0.0
    %2324 = vmatprep.subr.mxu0 0.0
    %2325 = vmatpush1.xpose.msra.mxu0 0.0
    %2326 = vmatprep.subr.mxu0 0.0
    %2327 = vmatpush1.xpose.msra.mxu0 0.0
    %2328 = vmatprep.subr.mxu0 0.0
    %2329 = vmatpush1.xpose.msra.mxu0 0.0
    %2330 = vmatprep.subr.mxu0 0.0
    %2331 = vmatpush1.xpose.msra.mxu0 0.0
    %2332 = vmatprep.subr.mxu0 0.0
    %2333 = vmatpush1.xpose.msra.mxu0 0.0
    %2334 = vmatprep.subr.mxu0 0.0
    %2335 = vmatpush1.xpose.msra.mxu0 0.0
    %2336 = vmatprep.subr.mxu0 0.0
    %2337 = vmatpush1.xpose.msra.mxu0 0.0
    %2338 = vmatprep.subr.mxu0 0.0
    %2339 = vmatpush1.xpose.msra.mxu0 0.0
    %2340 = vmatprep.subr.mxu0 0.0
    %2341 = vmatpush1.xpose.msra.mxu0 0.0
    %2342 = vmatprep.subr.mxu0 0.0
    %2343 = vmatpush1.xpose.msra.mxu0 0.0
    %2344 = vmatprep.subr.mxu0 0.0
    %2345 = vmatpush1.xpose.msra.mxu0 0.0
    %2346 = vmatprep.subr.mxu0 0.0
    %2347 = vmatpush1.xpose.msra.mxu0 0.0
    %2348 = vmatprep.subr.mxu0 0.0
    %2349 = vmatpush1.xpose.msra.mxu0 0.0
    %2350 = vmatprep.subr.mxu0 0.0
    %2351 = vmatpush1.xpose.msra.mxu0 0.0
    %2352 = vmatprep.subr.mxu0 0.0
    %2353 = vmatpush1.xpose.msra.mxu0 0.0
    %2354 = vmatprep.subr.mxu0 0.0
    %2355 = vmatpush1.xpose.msra.mxu0 0.0
    %2356 = vmatprep.subr.mxu0 0.0
    %2357 = vmatpush1.xpose.msra.mxu0 0.0
    %2358 = vmatprep.subr.mxu0 0.0
    %2359 = vmatpush1.xpose.msra.mxu0 0.0
    %2360 = vmatprep.subr.mxu0 0.0
    %2361 = vmatpush1.xpose.msra.mxu0 0.0
    %2362 = vmatprep.subr.mxu0 0.0
    %2363 = vmatpush1.xpose.msra.mxu0 0.0
    %2364 = vmatprep.subr.mxu0 0.0
    %2365 = vmatpush1.xpose.msra.mxu0 0.0
    %2366 = vmatprep.subr.mxu0 0.0
    %2367 = vmatpush1.xpose.msra.mxu0 0.0
    %2368 = vmatprep.subr.mxu0 0.0
    %2369 = vmatpush1.xpose.msra.mxu0 0.0
    %2370 = vmatprep.subr.mxu0 0.0
    %2371 = vmatpush1.xpose.msra.mxu0 0.0
    %2372 = vmatprep.mubr.f32.mxu0 0.0
    %2373 = vmatmul.mubr.f32.gmra.mrb[0].mxu0 %v2300
    %v2374 = vpop.f32.mrb[0].mxu0
    %v2375 = vadd.f32 0.0, %v2374
    %v2376 = vpop.f32.mrb[0].mxu0
    %2377 = vdwg.mxu0
    %v2379 = vsel %vm1982, %v803, 0
    %v2382 = vsel %vm1982, %v1319, 0
    %v2385 = vsel %vm1982, %v1387, 0
    %2387 = vmatprep.subr.mxu0 0.0
    %2388 = vmatpush1.xpose.msra.mxu0 %v2382
    %2389 = vmatprep.subr.mxu0 0.0
    %2390 = vmatpush1.xpose.msra.mxu0 %v2385
    %2391 = vmatprep.subr.mxu0 0.0
    %2392 = vmatpush1.xpose.msra.mxu0 0.0
    %2393 = vmatprep.subr.mxu0 0.0
    %2394 = vmatpush1.xpose.msra.mxu0 0.0
    %2395 = vmatprep.subr.mxu0 0.0
    %2396 = vmatpush1.xpose.msra.mxu0 0.0
    %2397 = vmatprep.subr.mxu0 0.0
    %2398 = vmatpush1.xpose.msra.mxu0 0.0
    %2399 = vmatprep.subr.mxu0 0.0
    %2400 = vmatpush1.xpose.msra.mxu0 0.0
    %2401 = vmatprep.subr.mxu0 0.0
    %2402 = vmatpush1.xpose.msra.mxu0 0.0
    %2403 = vmatprep.subr.mxu0 0.0
    %2404 = vmatpush1.xpose.msra.mxu0 0.0
    %2405 = vmatprep.subr.mxu0 0.0
    %2406 = vmatpush1.xpose.msra.mxu0 0.0
    %2407 = vmatprep.subr.mxu0 0.0
    %2408 = vmatpush1.xpose.msra.mxu0 0.0
    %2409 = vmatprep.subr.mxu0 0.0
    %2410 = vmatpush1.xpose.msra.mxu0 0.0
    %2411 = vmatprep.subr.mxu0 0.0
    %2412 = vmatpush1.xpose.msra.mxu0 0.0
    %2413 = vmatprep.subr.mxu0 0.0
    %2414 = vmatpush1.xpose.msra.mxu0 0.0
    %2415 = vmatprep.subr.mxu0 0.0
    %2416 = vmatpush1.xpose.msra.mxu0 0.0
    %2417 = vmatprep.subr.mxu0 0.0
    %2418 = vmatpush1.xpose.msra.mxu0 0.0
    %2419 = vmatprep.subr.mxu0 0.0
    %2420 = vmatpush1.xpose.msra.mxu0 0.0
    %2421 = vmatprep.subr.mxu0 0.0
    %2422 = vmatpush1.xpose.msra.mxu0 0.0
    %2423 = vmatprep.subr.mxu0 0.0
    %2424 = vmatpush1.xpose.msra.mxu0 0.0
    %2425 = vmatprep.subr.mxu0 0.0
    %2426 = vmatpush1.xpose.msra.mxu0 0.0
    %2427 = vmatprep.subr.mxu0 0.0
    %2428 = vmatpush1.xpose.msra.mxu0 0.0
    %2429 = vmatprep.subr.mxu0 0.0
    %2430 = vmatpush1.xpose.msra.mxu0 0.0
    %2431 = vmatprep.subr.mxu0 0.0
    %2432 = vmatpush1.xpose.msra.mxu0 0.0
    %2433 = vmatprep.subr.mxu0 0.0
    %2434 = vmatpush1.xpose.msra.mxu0 0.0
    %2435 = vmatprep.subr.mxu0 0.0
    %2436 = vmatpush1.xpose.msra.mxu0 0.0
    %2437 = vmatprep.subr.mxu0 0.0
    %2438 = vmatpush1.xpose.msra.mxu0 0.0
    %2439 = vmatprep.subr.mxu0 0.0
    %2440 = vmatpush1.xpose.msra.mxu0 0.0
    %2441 = vmatprep.subr.mxu0 0.0
    %2442 = vmatpush1.xpose.msra.mxu0 0.0
    %2443 = vmatprep.subr.mxu0 0.0
    %2444 = vmatpush1.xpose.msra.mxu0 0.0
    %2445 = vmatprep.subr.mxu0 0.0
    %2446 = vmatpush1.xpose.msra.mxu0 0.0
    %2447 = vmatprep.subr.mxu0 0.0
    %2448 = vmatpush1.xpose.msra.mxu0 0.0
    %2449 = vmatprep.subr.mxu0 0.0
    %2450 = vmatpush1.xpose.msra.mxu0 0.0
    %2451 = vmatprep.mubr.f32.mxu0 0.0
    %2452 = vmatmul.mubr.f32.gmra.mrb[0].mxu0 %v2379
    %v2453 = vpop.f32.mrb[0].mxu0
    %v2454 = vadd.f32 0.0, %v2453
    %v2455 = vpop.f32.mrb[0].mxu0
    %2456 = vdwg.mxu0
    %v2458 = vsel %vm1982, %v804, 0
    %v2461 = vsel %vm1982, %v1320, 0
    %v2464 = vsel %vm1982, %v1388, 0
    %2466 = vmatprep.subr.mxu0 0.0
    %2467 = vmatpush1.xpose.msra.mxu0 %v2461
    %2468 = vmatprep.subr.mxu0 0.0
    %2469 = vmatpush1.xpose.msra.mxu0 %v2464
    %2470 = vmatprep.subr.mxu0 0.0
    %2471 = vmatpush1.xpose.msra.mxu0 0.0
    %2472 = vmatprep.subr.mxu0 0.0
    %2473 = vmatpush1.xpose.msra.mxu0 0.0
    %2474 = vmatprep.subr.mxu0 0.0
    %2475 = vmatpush1.xpose.msra.mxu0 0.0
    %2476 = vmatprep.subr.mxu0 0.0
    %2477 = vmatpush1.xpose.msra.mxu0 0.0
    %2478 = vmatprep.subr.mxu0 0.0
    %2479 = vmatpush1.xpose.msra.mxu0 0.0
    %2480 = vmatprep.subr.mxu0 0.0
    %2481 = vmatpush1.xpose.msra.mxu0 0.0
    %2482 = vmatprep.subr.mxu0 0.0
    %2483 = vmatpush1.xpose.msra.mxu0 0.0
    %2484 = vmatprep.subr.mxu0 0.0
    %2485 = vmatpush1.xpose.msra.mxu0 0.0
    %2486 = vmatprep.subr.mxu0 0.0
    %2487 = vmatpush1.xpose.msra.mxu0 0.0
    %2488 = vmatprep.subr.mxu0 0.0
    %2489 = vmatpush1.xpose.msra.mxu0 0.0
    %2490 = vmatprep.subr.mxu0 0.0
    %2491 = vmatpush1.xpose.msra.mxu0 0.0
    %2492 = vmatprep.subr.mxu0 0.0
    %2493 = vmatpush1.xpose.msra.mxu0 0.0
    %2494 = vmatprep.subr.mxu0 0.0
    %2495 = vmatpush1.xpose.msra.mxu0 0.0
    %2496 = vmatprep.subr.mxu0 0.0
    %2497 = vmatpush1.xpose.msra.mxu0 0.0
    %2498 = vmatprep.subr.mxu0 0.0
    %2499 = vmatpush1.xpose.msra.mxu0 0.0
    %2500 = vmatprep.subr.mxu0 0.0
    %2501 = vmatpush1.xpose.msra.mxu0 0.0
    %2502 = vmatprep.subr.mxu0 0.0
    %2503 = vmatpush1.xpose.msra.mxu0 0.0
    %2504 = vmatprep.subr.mxu0 0.0
    %2505 = vmatpush1.xpose.msra.mxu0 0.0
    %2506 = vmatprep.subr.mxu0 0.0
    %2507 = vmatpush1.xpose.msra.mxu0 0.0
    %2508 = vmatprep.subr.mxu0 0.0
    %2509 = vmatpush1.xpose.msra.mxu0 0.0
    %2510 = vmatprep.subr.mxu0 0.0
    %2511 = vmatpush1.xpose.msra.mxu0 0.0
    %2512 = vmatprep.subr.mxu0 0.0
    %2513 = vmatpush1.xpose.msra.mxu0 0.0
    %2514 = vmatprep.subr.mxu0 0.0
    %2515 = vmatpush1.xpose.msra.mxu0 0.0
    %2516 = vmatprep.subr.mxu0 0.0
    %2517 = vmatpush1.xpose.msra.mxu0 0.0
    %2518 = vmatprep.subr.mxu0 0.0
    %2519 = vmatpush1.xpose.msra.mxu0 0.0
    %2520 = vmatprep.subr.mxu0 0.0
    %2521 = vmatpush1.xpose.msra.mxu0 0.0
    %2522 = vmatprep.subr.mxu0 0.0
    %2523 = vmatpush1.xpose.msra.mxu0 0.0
    %2524 = vmatprep.subr.mxu0 0.0
    %2525 = vmatpush1.xpose.msra.mxu0 0.0
    %2526 = vmatprep.subr.mxu0 0.0
    %2527 = vmatpush1.xpose.msra.mxu0 0.0
    %2528 = vmatprep.subr.mxu0 0.0
    %2529 = vmatpush1.xpose.msra.mxu0 0.0
    %2530 = vmatprep.mubr.f32.mxu0 0.0
    %2531 = vmatmul.mubr.f32.gmra.mrb[0].mxu0 %v2458
    %v2532 = vpop.f32.mrb[0].mxu0
    %v2533 = vadd.f32 0.0, %v2532
    %v2534 = vpop.f32.mrb[0].mxu0
    %2535 = vdwg.mxu0
    %v2537 = vsel %vm1982, %v805, 0
    %v2540 = vsel %vm1982, %v1321, 0
    %v2543 = vsel %vm1982, %v1389, 0
    %2545 = vmatprep.subr.mxu0 0.0
    %2546 = vmatpush1.xpose.msra.mxu0 %v2540
    %2547 = vmatprep.subr.mxu0 0.0
    %2548 = vmatpush1.xpose.msra.mxu0 %v2543
    %2549 = vmatprep.subr.mxu0 0.0
    %2550 = vmatpush1.xpose.msra.mxu0 0.0
    %2551 = vmatprep.subr.mxu0 0.0
    %2552 = vmatpush1.xpose.msra.mxu0 0.0
    %2553 = vmatprep.subr.mxu0 0.0
    %2554 = vmatpush1.xpose.msra.mxu0 0.0
    %2555 = vmatprep.subr.mxu0 0.0
    %2556 = vmatpush1.xpose.msra.mxu0 0.0
    %2557 = vmatprep.subr.mxu0 0.0
    %2558 = vmatpush1.xpose.msra.mxu0 0.0
    %2559 = vmatprep.subr.mxu0 0.0
    %2560 = vmatpush1.xpose.msra.mxu0 0.0
    %2561 = vmatprep.subr.mxu0 0.0
    %2562 = vmatpush1.xpose.msra.mxu0 0.0
    %2563 = vmatprep.subr.mxu0 0.0
    %2564 = vmatpush1.xpose.msra.mxu0 0.0
    %2565 = vmatprep.subr.mxu0 0.0
    %2566 = vmatpush1.xpose.msra.mxu0 0.0
    %2567 = vmatprep.subr.mxu0 0.0
    %2568 = vmatpush1.xpose.msra.mxu0 0.0
    %2569 = vmatprep.subr.mxu0 0.0
    %2570 = vmatpush1.xpose.msra.mxu0 0.0
    %2571 = vmatprep.subr.mxu0 0.0
    %2572 = vmatpush1.xpose.msra.mxu0 0.0
    %2573 = vmatprep.subr.mxu0 0.0
    %2574 = vmatpush1.xpose.msra.mxu0 0.0
    %2575 = vmatprep.subr.mxu0 0.0
    %2576 = vmatpush1.xpose.msra.mxu0 0.0
    %2577 = vmatprep.subr.mxu0 0.0
    %2578 = vmatpush1.xpose.msra.mxu0 0.0
    %2579 = vmatprep.subr.mxu0 0.0
    %2580 = vmatpush1.xpose.msra.mxu0 0.0
    %2581 = vmatprep.subr.mxu0 0.0
    %2582 = vmatpush1.xpose.msra.mxu0 0.0
    %2583 = vmatprep.subr.mxu0 0.0
    %2584 = vmatpush1.xpose.msra.mxu0 0.0
    %2585 = vmatprep.subr.mxu0 0.0
    %2586 = vmatpush1.xpose.msra.mxu0 0.0
    %2587 = vmatprep.subr.mxu0 0.0
    %2588 = vmatpush1.xpose.msra.mxu0 0.0
    %2589 = vmatprep.subr.mxu0 0.0
    %2590 = vmatpush1.xpose.msra.mxu0 0.0
    %2591 = vmatprep.subr.mxu0 0.0
    %2592 = vmatpush1.xpose.msra.mxu0 0.0
    %2593 = vmatprep.subr.mxu0 0.0
    %2594 = vmatpush1.xpose.msra.mxu0 0.0
    %2595 = vmatprep.subr.mxu0 0.0
    %2596 = vmatpush1.xpose.msra.mxu0 0.0
    %2597 = vmatprep.subr.mxu0 0.0
    %2598 = vmatpush1.xpose.msra.mxu0 0.0
    %2599 = vmatprep.subr.mxu0 0.0
    %2600 = vmatpush1.xpose.msra.mxu0 0.0
    %2601 = vmatprep.subr.mxu0 0.0
    %2602 = vmatpush1.xpose.msra.mxu0 0.0
    %2603 = vmatprep.subr.mxu0 0.0
    %2604 = vmatpush1.xpose.msra.mxu0 0.0
    %2605 = vmatprep.subr.mxu0 0.0
    %2606 = vmatpush1.xpose.msra.mxu0 0.0
    %2607 = vmatprep.subr.mxu0 0.0
    %2608 = vmatpush1.xpose.msra.mxu0 0.0
    %2609 = vmatprep.mubr.f32.mxu0 0.0
    %2610 = vmatmul.mubr.f32.gmra.mrb[0].mxu0 %v2537
    %v2611 = vpop.f32.mrb[0].mxu0
    %v2612 = vadd.f32 0.0, %v2611
    %v2613 = vpop.f32.mrb[0].mxu0
    %2614 = vdwg.mxu0
    %vm2615 = vcmask 130048
    %v2616 = vsel %vm2615, %v2059, -inf
    %2617 = vmax.xlane.f32.xlu0 %v2616
    %v2618 = vpop.xlane.xlu0 %2617
    %v2619 = vsel %vm2615, %v2138, -inf
    %2620 = vmax.xlane.f32.xlu0 %v2619
    %v2621 = vpop.xlane.xlu0 %2620
    %v2622 = vsel %vm2615, %v2217, -inf
    %2623 = vmax.xlane.f32.xlu0 %v2622
    %v2624 = vpop.xlane.xlu0 %2623
    %v2625 = vsel %vm2615, %v2296, -inf
    %2626 = vmax.xlane.f32.xlu0 %v2625
    %v2627 = vpop.xlane.xlu0 %2626
    %v2628 = vsel %vm2615, %v2375, -inf
    %2629 = vmax.xlane.f32.xlu0 %v2628
    %v2630 = vpop.xlane.xlu0 %2629
    %v2631 = vsel %vm2615, %v2454, -inf
    %2632 = vmax.xlane.f32.xlu0 %v2631
    %v2633 = vpop.xlane.xlu0 %2632
    %v2634 = vsel %vm2615, %v2533, -inf
    %2635 = vmax.xlane.f32.xlu0 %v2634
    %v2636 = vpop.xlane.xlu0 %2635
    %v2637 = vsel %vm2615, %v2612, -inf
    %2638 = vmax.xlane.f32.xlu0 %v2637
    %v2639 = vpop.xlane.xlu0 %2638
    %v2640 = vsub.f32 %v2059, %v2618
    %v2641 = vsub.f32 %v2138, %v2621
    %v2642 = vsub.f32 %v2217, %v2624
    %v2643 = vsub.f32 %v2296, %v2627
    %v2644 = vsub.f32 %v2375, %v2630
    %v2645 = vsub.f32 %v2454, %v2633
    %v2646 = vsub.f32 %v2533, %v2636
    %v2647 = vsub.f32 %v2612, %v2639
    %v2648 = vmul.f32 %v2640, 1.442695
    %v2649 = vpow.pop %v2648
    %v2650 = vmul.f32 %v2641, 1.442695
    %v2651 = vpow.pop %v2650
    %v2652 = vmul.f32 %v2642, 1.442695
    %v2653 = vpow.pop %v2652
    %v2654 = vmul.f32 %v2643, 1.442695
    %v2655 = vpow.pop %v2654
    %v2656 = vmul.f32 %v2644, 1.442695
    %v2657 = vpow.pop %v2656
    %v2658 = vmul.f32 %v2645, 1.442695
    %v2659 = vpow.pop %v2658
    %v2660 = vmul.f32 %v2646, 1.442695
    %v2661 = vpow.pop %v2660
    %v2662 = vmul.f32 %v2647, 1.442695
    %v2663 = vpow.pop %v2662
    %v2664 = vsel %vm2615, %v2649, 0.0
    %2665 = vadd.xlane.f32.xlu0 %v2664
    %v2666 = vpop.xlane.xlu0 %2665
    %v2667 = vsel %vm2615, %v2651, 0.0
    %2668 = vadd.xlane.f32.xlu0 %v2667
    %v2669 = vpop.xlane.xlu0 %2668
    %v2670 = vsel %vm2615, %v2653, 0.0
    %2671 = vadd.xlane.f32.xlu0 %v2670
    %v2672 = vpop.xlane.xlu0 %2671
    %v2673 = vsel %vm2615, %v2655, 0.0
    %2674 = vadd.xlane.f32.xlu0 %v2673
    %v2675 = vpop.xlane.xlu0 %2674
    %v2676 = vsel %vm2615, %v2657, 0.0
    %2677 = vadd.xlane.f32.xlu0 %v2676
    %v2678 = vpop.xlane.xlu0 %2677
    %v2679 = vsel %vm2615, %v2659, 0.0
    %2680 = vadd.xlane.f32.xlu0 %v2679
    %v2681 = vpop.xlane.xlu0 %2680
    %v2682 = vsel %vm2615, %v2661, 0.0
    %2683 = vadd.xlane.f32.xlu0 %v2682
    %v2684 = vpop.xlane.xlu0 %2683
    %v2685 = vsel %vm2615, %v2663, 0.0
    %2686 = vadd.xlane.f32.xlu0 %v2685
    %v2687 = vpop.xlane.xlu0 %2686
    %v2688 = vrcp.pop %v2666
    %v2689 = vrcp.pop %v2669
    %v2690 = vrcp.pop %v2672
    %v2691 = vrcp.pop %v2675
    %v2692 = vrcp.pop %v2678
    %v2693 = vrcp.pop %v2681
    %v2694 = vrcp.pop %v2684
    %v2695 = vrcp.pop %v2687
    %v2696 = vmul.f32 %v2649, %v2688
    %v2697 = vmul.f32 %v2651, %v2689
    %v2698 = vmul.f32 %v2653, %v2690
    %v2699 = vmul.f32 %v2655, %v2691
    %v2700 = vmul.f32 %v2657, %v2692
    %v2701 = vmul.f32 %v2659, %v2693
    %v2702 = vmul.f32 %v2661, %v2694
    %v2703 = vmul.f32 %v2663, %v2695
    %v2705 = vsel %vm2615, %v2696, 0
    %2707 = vmatprep.subr.mxu0 0.0
    %2708 = vmatpush1.msra.mxu0 %v1774
    %2709 = vmatprep.subr.mxu0 0.0
    %2710 = vmatpush1.msra.mxu0 %v1842
    %2711 = vmatprep.subr.mxu0 0.0
    %2712 = vmatpush1.msra.mxu0 0.0
    %2713 = vmatprep.subr.mxu0 0.0
    %2714 = vmatpush1.msra.mxu0 0.0
    %2715 = vmatprep.subr.mxu0 0.0
    %2716 = vmatpush1.msra.mxu0 0.0
    %2717 = vmatprep.subr.mxu0 0.0
    %2718 = vmatpush1.msra.mxu0 0.0
    %2719 = vmatprep.subr.mxu0 0.0
    %2720 = vmatpush1.msra.mxu0 0.0
    %2721 = vmatprep.subr.mxu0 0.0
    %2722 = vmatpush1.msra.mxu0 0.0
    %2723 = vmatprep.subr.mxu0 0.0
    %2724 = vmatpush1.msra.mxu0 0.0
    %2725 = vmatprep.subr.mxu0 0.0
    %2726 = vmatpush1.msra.mxu0 0.0
    %2727 = vmatprep.subr.mxu0 0.0
    %2728 = vmatpush1.msra.mxu0 0.0
    %2729 = vmatprep.subr.mxu0 0.0
    %2730 = vmatpush1.msra.mxu0 0.0
    %2731 = vmatprep.subr.mxu0 0.0
    %2732 = vmatpush1.msra.mxu0 0.0
    %2733 = vmatprep.subr.mxu0 0.0
    %2734 = vmatpush1.msra.mxu0 0.0
    %2735 = vmatprep.subr.mxu0 0.0
    %2736 = vmatpush1.msra.mxu0 0.0
    %2737 = vmatprep.subr.mxu0 0.0
    %2738 = vmatpush1.msra.mxu0 0.0
    %2739 = vmatprep.subr.mxu0 0.0
    %2740 = vmatpush1.msra.mxu0 0.0
    %2741 = vmatprep.subr.mxu0 0.0
    %2742 = vmatpush1.msra.mxu0 0.0
    %2743 = vmatprep.subr.mxu0 0.0
    %2744 = vmatpush1.msra.mxu0 0.0
    %2745 = vmatprep.subr.mxu0 0.0
    %2746 = vmatpush1.msra.mxu0 0.0
    %2747 = vmatprep.subr.mxu0 0.0
    %2748 = vmatpush1.msra.mxu0 0.0
    %2749 = vmatprep.subr.mxu0 0.0
    %2750 = vmatpush1.msra.mxu0 0.0
    %2751 = vmatprep.subr.mxu0 0.0
    %2752 = vmatpush1.msra.mxu0 0.0
    %2753 = vmatprep.subr.mxu0 0.0
    %2754 = vmatpush1.msra.mxu0 0.0
    %2755 = vmatprep.subr.mxu0 0.0
    %2756 = vmatpush1.msra.mxu0 0.0
    %2757 = vmatprep.subr.mxu0 0.0
    %2758 = vmatpush1.msra.mxu0 0.0
    %2759 = vmatprep.subr.mxu0 0.0
    %2760 = vmatpush1.msra.mxu0 0.0
    %2761 = vmatprep.subr.mxu0 0.0
    %2762 = vmatpush1.msra.mxu0 0.0
    %2763 = vmatprep.subr.mxu0 0.0
    %2764 = vmatpush1.msra.mxu0 0.0
    %2765 = vmatprep.subr.mxu0 0.0
    %2766 = vmatpush1.msra.mxu0 0.0
    %2767 = vmatprep.subr.mxu0 0.0
    %2768 = vmatpush1.msra.mxu0 0.0
    %2769 = vmatprep.subr.mxu0 0.0
    %2770 = vmatpush1.msra.mxu0 0.0
    %2771 = vmatprep.mubr.f32.mxu0 0.0
    %2772 = vmatmul.mubr.f32.gmra.mrb[0].mxu0 %v2705
    %v2773 = vpop.f32.mrb[0].mxu0
    %v2774 = vadd.f32 0.0, %v2773
    %v2775 = vpop.f32.mrb[0].mxu0
    %2776 = vdwg.mxu0
    %v2778 = vsel %vm2615, %v2697, 0
    %2780 = vmatprep.subr.mxu0 0.0
    %2781 = vmatpush1.msra.mxu0 %v1775
    %2782 = vmatprep.subr.mxu0 0.0
    %2783 = vmatpush1.msra.mxu0 %v1843
    %2784 = vmatprep.subr.mxu0 0.0
    %2785 = vmatpush1.msra.mxu0 0.0
    %2786 = vmatprep.subr.mxu0 0.0
    %2787 = vmatpush1.msra.mxu0 0.0
    %2788 = vmatprep.subr.mxu0 0.0
    %2789 = vmatpush1.msra.mxu0 0.0
    %2790 = vmatprep.subr.mxu0 0.0
    %2791 = vmatpush1.msra.mxu0 0.0
    %2792 = vmatprep.subr.mxu0 0.0
    %2793 = vmatpush1.msra.mxu0 0.0
    %2794 = vmatprep.subr.mxu0 0.0
    %2795 = vmatpush1.msra.mxu0 0.0
    %2796 = vmatprep.subr.mxu0 0.0
    %2797 = vmatpush1.msra.mxu0 0.0
    %2798 = vmatprep.subr.mxu0 0.0
    %2799 = vmatpush1.msra.mxu0 0.0
    %2800 = vmatprep.subr.mxu0 0.0
    %2801 = vmatpush1.msra.mxu0 0.0
    %2802 = vmatprep.subr.mxu0 0.0
    %2803 = vmatpush1.msra.mxu0 0.0
    %2804 = vmatprep.subr.mxu0 0.0
    %2805 = vmatpush1.msra.mxu0 0.0
    %2806 = vmatprep.subr.mxu0 0.0
    %2807 = vmatpush1.msra.mxu0 0.0
    %2808 = vmatprep.subr.mxu0 0.0
    %2809 = vmatpush1.msra.mxu0 0.0
    %2810 = vmatprep.subr.mxu0 0.0
    %2811 = vmatpush1.msra.mxu0 0.0
    %2812 = vmatprep.subr.mxu0 0.0
    %2813 = vmatpush1.msra.mxu0 0.0
    %2814 = vmatprep.subr.mxu0 0.0
    %2815 = vmatpush1.msra.mxu0 0.0
    %2816 = vmatprep.subr.mxu0 0.0
    %2817 = vmatpush1.msra.mxu0 0.0
    %2818 = vmatprep.subr.mxu0 0.0
    %2819 = vmatpush1.msra.mxu0 0.0
    %2820 = vmatprep.subr.mxu0 0.0
    %2821 = vmatpush1.msra.mxu0 0.0
    %2822 = vmatprep.subr.mxu0 0.0
    %2823 = vmatpush1.msra.mxu0 0.0
    %2824 = vmatprep.subr.mxu0 0.0
    %2825 = vmatpush1.msra.mxu0 0.0
    %2826 = vmatprep.subr.mxu0 0.0
    %2827 = vmatpush1.msra.mxu0 0.0
    %2828 = vmatprep.subr.mxu0 0.0
    %2829 = vmatpush1.msra.mxu0 0.0
    %2830 = vmatprep.subr.mxu0 0.0
    %2831 = vmatpush1.msra.mxu0 0.0
    %2832 = vmatprep.subr.mxu0 0.0
    %2833 = vmatpush1.msra.mxu0 0.0
    %2834 = vmatprep.subr.mxu0 0.0
    %2835 = vmatpush1.msra.mxu0 0.0
    %2836 = vmatprep.subr.mxu0 0.0
    %2837 = vmatpush1.msra.mxu0 0.0
    %2838 = vmatprep.subr.mxu0 0.0
    %2839 = vmatpush1.msra.mxu0 0.0
    %2840 = vmatprep.subr.mxu0 0.0
    %2841 = vmatpush1.msra.mxu0 0.0
    %2842 = vmatprep.subr.mxu0 0.0
    %2843 = vmatpush1.msra.mxu0 0.0
    %2844 = vmatprep.mubr.f32.mxu0 0.0
    %2845 = vmatmul.mubr.f32.gmra.mrb[0].mxu0 %v2778
    %v2846 = vpop.f32.mrb[0].mxu0
    %v2847 = vadd.f32 0.0, %v2846
    %v2848 = vpop.f32.mrb[0].mxu0
    %2849 = vdwg.mxu0
    %v2851 = vsel %vm2615, %v2698, 0
    %2853 = vmatprep.subr.mxu0 0.0
    %2854 = vmatpush1.msra.mxu0 %v1776
    %2855 = vmatprep.subr.mxu0 0.0
    %2856 = vmatpush1.msra.mxu0 %v1844
    %2857 = vmatprep.subr.mxu0 0.0
    %2858 = vmatpush1.msra.mxu0 0.0
    %2859 = vmatprep.subr.mxu0 0.0
    %2860 = vmatpush1.msra.mxu0 0.0
    %2861 = vmatprep.subr.mxu0 0.0
    %2862 = vmatpush1.msra.mxu0 0.0
    %2863 = vmatprep.subr.mxu0 0.0
    %2864 = vmatpush1.msra.mxu0 0.0
    %2865 = vmatprep.subr.mxu0 0.0
    %2866 = vmatpush1.msra.mxu0 0.0
    %2867 = vmatprep.subr.mxu0 0.0
    %2868 = vmatpush1.msra.mxu0 0.0
    %2869 = vmatprep.subr.mxu0 0.0
    %2870 = vmatpush1.msra.mxu0 0.0
    %2871 = vmatprep.subr.mxu0 0.0
    %2872 = vmatpush1.msra.mxu0 0.0
    %2873 = vmatprep.subr.mxu0 0.0
    %2874 = vmatpush1.msra.mxu0 0.0
    %2875 = vmatprep.subr.mxu0 0.0
    %2876 = vmatpush1.msra.mxu0 0.0
    %2877 = vmatprep.subr.mxu0 0.0
    %2878 = vmatpush1.msra.mxu0 0.0
    %2879 = vmatprep.subr.mxu0 0.0
    %2880 = vmatpush1.msra.mxu0 0.0
    %2881 = vmatprep.subr.mxu0 0.0
    %2882 = vmatpush1.msra.mxu0 0.0
    %2883 = vmatprep.subr.mxu0 0.0
    %2884 = vmatpush1.msra.mxu0 0.0
    %2885 = vmatprep.subr.mxu0 0.0
    %2886 = vmatpush1.msra.mxu0 0.0
    %2887 = vmatprep.subr.mxu0 0.0
    %2888 = vmatpush1.msra.mxu0 0.0
    %2889 = vmatprep.subr.mxu0 0.0
    %2890 = vmatpush1.msra.mxu0 0.0
    %2891 = vmatprep.subr.mxu0 0.0
    %2892 = vmatpush1.msra.mxu0 0.0
    %2893 = vmatprep.subr.mxu0 0.0
    %2894 = vmatpush1.msra.mxu0 0.0
    %2895 = vmatprep.subr.mxu0 0.0
    %2896 = vmatpush1.msra.mxu0 0.0
    %2897 = vmatprep.subr.mxu0 0.0
    %2898 = vmatpush1.msra.mxu0 0.0
    %2899 = vmatprep.subr.mxu0 0.0
    %2900 = vmatpush1.msra.mxu0 0.0
    %2901 = vmatprep.subr.mxu0 0.0
    %2902 = vmatpush1.msra.mxu0 0.0
    %2903 = vmatprep.subr.mxu0 0.0
    %2904 = vmatpush1.msra.mxu0 0.0
    %2905 = vmatprep.subr.mxu0 0.0
    %2906 = vmatpush1.msra.mxu0 0.0
    %2907 = vmatprep.subr.mxu0 0.0
    %2908 = vmatpush1.msra.mxu0 0.0
    %2909 = vmatprep.subr.mxu0 0.0
    %2910 = vmatpush1.msra.mxu0 0.0
    %2911 = vmatprep.subr.mxu0 0.0
    %2912 = vmatpush1.msra.mxu0 0.0
    %2913 = vmatprep.subr.mxu0 0.0
    %2914 = vmatpush1.msra.mxu0 0.0
    %2915 = vmatprep.subr.mxu0 0.0
    %2916 = vmatpush1.msra.mxu0 0.0
    %2917 = vmatprep.mubr.f32.mxu0 0.0
    %2918 = vmatmul.mubr.f32.gmra.mrb[0].mxu0 %v2851
    %v2919 = vpop.f32.mrb[0].mxu0
    %v2920 = vadd.f32 0.0, %v2919
    %v2921 = vpop.f32.mrb[0].mxu0
    %2922 = vdwg.mxu0
    %v2924 = vsel %vm2615, %v2699, 0
    %2926 = vmatprep.subr.mxu0 0.0
    %2927 = vmatpush1.msra.mxu0 %v1777
    %2928 = vmatprep.subr.mxu0 0.0
    %2929 = vmatpush1.msra.mxu0 %v1845
    %2930 = vmatprep.subr.mxu0 0.0
    %2931 = vmatpush1.msra.mxu0 0.0
    %2932 = vmatprep.subr.mxu0 0.0
    %2933 = vmatpush1.msra.mxu0 0.0
    %2934 = vmatprep.subr.mxu0 0.0
    %2935 = vmatpush1.msra.mxu0 0.0
    %2936 = vmatprep.subr.mxu0 0.0
    %2937 = vmatpush1.msra.mxu0 0.0
    %2938 = vmatprep.subr.mxu0 0.0
    %2939 = vmatpush1.msra.mxu0 0.0
    %2940 = vmatprep.subr.mxu0 0.0
    %2941 = vmatpush1.msra.mxu0 0.0
    %2942 = vmatprep.subr.mxu0 0.0
    %2943 = vmatpush1.msra.mxu0 0.0
    %2944 = vmatprep.subr.mxu0 0.0
    %2945 = vmatpush1.msra.mxu0 0.0
    %2946 = vmatprep.subr.mxu0 0.0
    %2947 = vmatpush1.msra.mxu0 0.0
    %2948 = vmatprep.subr.mxu0 0.0
    %2949 = vmatpush1.msra.mxu0 0.0
    %2950 = vmatprep.subr.mxu0 0.0
    %2951 = vmatpush1.msra.mxu0 0.0
    %2952 = vmatprep.subr.mxu0 0.0
    %2953 = vmatpush1.msra.mxu0 0.0
    %2954 = vmatprep.subr.mxu0 0.0
    %2955 = vmatpush1.msra.mxu0 0.0
    %2956 = vmatprep.subr.mxu0 0.0
    %2957 = vmatpush1.msra.mxu0 0.0
    %2958 = vmatprep.subr.mxu0 0.0
    %2959 = vmatpush1.msra.mxu0 0.0
    %2960 = vmatprep.subr.mxu0 0.0
    %2961 = vmatpush1.msra.mxu0 0.0
    %2962 = vmatprep.subr.mxu0 0.0
    %2963 = vmatpush1.msra.mxu0 0.0
    %2964 = vmatprep.subr.mxu0 0.0
    %2965 = vmatpush1.msra.mxu0 0.0
    %2966 = vmatprep.subr.mxu0 0.0
    %2967 = vmatpush1.msra.mxu0 0.0
    %2968 = vmatprep.subr.mxu0 0.0
    %2969 = vmatpush1.msra.mxu0 0.0
    %2970 = vmatprep.subr.mxu0 0.0
    %2971 = vmatpush1.msra.mxu0 0.0
    %2972 = vmatprep.subr.mxu0 0.0
    %2973 = vmatpush1.msra.mxu0 0.0
    %2974 = vmatprep.subr.mxu0 0.0
    %2975 = vmatpush1.msra.mxu0 0.0
    %2976 = vmatprep.subr.mxu0 0.0
    %2977 = vmatpush1.msra.mxu0 0.0
    %2978 = vmatprep.subr.mxu0 0.0
    %2979 = vmatpush1.msra.mxu0 0.0
    %2980 = vmatprep.subr.mxu0 0.0
    %2981 = vmatpush1.msra.mxu0 0.0
    %2982 = vmatprep.subr.mxu0 0.0
    %2983 = vmatpush1.msra.mxu0 0.0
    %2984 = vmatprep.subr.mxu0 0.0
    %2985 = vmatpush1.msra.mxu0 0.0
    %2986 = vmatprep.subr.mxu0 0.0
    %2987 = vmatpush1.msra.mxu0 0.0
    %2988 = vmatprep.subr.mxu0 0.0
    %2989 = vmatpush1.msra.mxu0 0.0
    %2990 = vmatprep.mubr.f32.mxu0 0.0
    %2991 = vmatmul.mubr.f32.gmra.mrb[0].mxu0 %v2924
    %v2992 = vpop.f32.mrb[0].mxu0
    %v2993 = vadd.f32 0.0, %v2992
    %v2994 = vpop.f32.mrb[0].mxu0
    %2995 = vdwg.mxu0
    %v2997 = vsel %vm2615, %v2700, 0
    %2999 = vmatprep.subr.mxu0 0.0
    %3000 = vmatpush1.msra.mxu0 %v1910
    %3001 = vmatprep.subr.mxu0 0.0
    %3002 = vmatpush1.msra.mxu0 %v1978
    %3003 = vmatprep.subr.mxu0 0.0
    %3004 = vmatpush1.msra.mxu0 0.0
    %3005 = vmatprep.subr.mxu0 0.0
    %3006 = vmatpush1.msra.mxu0 0.0
    %3007 = vmatprep.subr.mxu0 0.0
    %3008 = vmatpush1.msra.mxu0 0.0
    %3009 = vmatprep.subr.mxu0 0.0
    %3010 = vmatpush1.msra.mxu0 0.0
    %3011 = vmatprep.subr.mxu0 0.0
    %3012 = vmatpush1.msra.mxu0 0.0
    %3013 = vmatprep.subr.mxu0 0.0
    %3014 = vmatpush1.msra.mxu0 0.0
    %3015 = vmatprep.subr.mxu0 0.0
    %3016 = vmatpush1.msra.mxu0 0.0
    %3017 = vmatprep.subr.mxu0 0.0
    %3018 = vmatpush1.msra.mxu0 0.0
    %3019 = vmatprep.subr.mxu0 0.0
    %3020 = vmatpush1.msra.mxu0 0.0
    %3021 = vmatprep.subr.mxu0 0.0
    %3022 = vmatpush1.msra.mxu0 0.0
    %3023 = vmatprep.subr.mxu0 0.0
    %3024 = vmatpush1.msra.mxu0 0.0
    %3025 = vmatprep.subr.mxu0 0.0
    %3026 = vmatpush1.msra.mxu0 0.0
    %3027 = vmatprep.subr.mxu0 0.0
    %3028 = vmatpush1.msra.mxu0 0.0
    %3029 = vmatprep.subr.mxu0 0.0
    %3030 = vmatpush1.msra.mxu0 0.0
    %3031 = vmatprep.subr.mxu0 0.0
    %3032 = vmatpush1.msra.mxu0 0.0
    %3033 = vmatprep.subr.mxu0 0.0
    %3034 = vmatpush1.msra.mxu0 0.0
    %3035 = vmatprep.subr.mxu0 0.0
    %3036 = vmatpush1.msra.mxu0 0.0
    %3037 = vmatprep.subr.mxu0 0.0
    %3038 = vmatpush1.msra.mxu0 0.0
    %3039 = vmatprep.subr.mxu0 0.0
    %3040 = vmatpush1.msra.mxu0 0.0
    %3041 = vmatprep.subr.mxu0 0.0
    %3042 = vmatpush1.msra.mxu0 0.0
    %3043 = vmatprep.subr.mxu0 0.0
    %3044 = vmatpush1.msra.mxu0 0.0
    %3045 = vmatprep.subr.mxu0 0.0
    %3046 = vmatpush1.msra.mxu0 0.0
    %3047 = vmatprep.subr.mxu0 0.0
    %3048 = vmatpush1.msra.mxu0 0.0
    %3049 = vmatprep.subr.mxu0 0.0
    %3050 = vmatpush1.msra.mxu0 0.0
    %3051 = vmatprep.subr.mxu0 0.0
    %3052 = vmatpush1.msra.mxu0 0.0
    %3053 = vmatprep.subr.mxu0 0.0
    %3054 = vmatpush1.msra.mxu0 0.0
    %3055 = vmatprep.subr.mxu0 0.0
    %3056 = vmatpush1.msra.mxu0 0.0
    %3057 = vmatprep.subr.mxu0 0.0
    %3058 = vmatpush1.msra.mxu0 0.0
    %3059 = vmatprep.subr.mxu0 0.0
    %3060 = vmatpush1.msra.mxu0 0.0
    %3061 = vmatprep.subr.mxu0 0.0
    %3062 = vmatpush1.msra.mxu0 0.0
    %3063 = vmatprep.mubr.f32.mxu0 0.0
    %3064 = vmatmul.mubr.f32.gmra.mrb[0].mxu0 %v2997
    %v3065 = vpop.f32.mrb[0].mxu0
    %v3066 = vadd.f32 0.0, %v3065
    %v3067 = vpop.f32.mrb[0].mxu0
    %3068 = vdwg.mxu0
    %v3070 = vsel %vm2615, %v2701, 0
    %3072 = vmatprep.subr.mxu0 0.0
    %3073 = vmatpush1.msra.mxu0 %v1911
    %3074 = vmatprep.subr.mxu0 0.0
    %3075 = vmatpush1.msra.mxu0 %v1979
    %3076 = vmatprep.subr.mxu0 0.0
    %3077 = vmatpush1.msra.mxu0 0.0
    %3078 = vmatprep.subr.mxu0 0.0
    %3079 = vmatpush1.msra.mxu0 0.0
    %3080 = vmatprep.subr.mxu0 0.0
    %3081 = vmatpush1.msra.mxu0 0.0
    %3082 = vmatprep.subr.mxu0 0.0
    %3083 = vmatpush1.msra.mxu0 0.0
    %3084 = vmatprep.subr.mxu0 0.0
    %3085 = vmatpush1.msra.mxu0 0.0
    %3086 = vmatprep.subr.mxu0 0.0
    %3087 = vmatpush1.msra.mxu0 0.0
    %3088 = vmatprep.subr.mxu0 0.0
    %3089 = vmatpush1.msra.mxu0 0.0
    %3090 = vmatprep.subr.mxu0 0.0
    %3091 = vmatpush1.msra.mxu0 0.0
    %3092 = vmatprep.subr.mxu0 0.0
    %3093 = vmatpush1.msra.mxu0 0.0
    %3094 = vmatprep.subr.mxu0 0.0
    %3095 = vmatpush1.msra.mxu0 0.0
    %3096 = vmatprep.subr.mxu0 0.0
    %3097 = vmatpush1.msra.mxu0 0.0
    %3098 = vmatprep.subr.mxu0 0.0
    %3099 = vmatpush1.msra.mxu0 0.0
    %3100 = vmatprep.subr.mxu0 0.0
    %3101 = vmatpush1.msra.mxu0 0.0
    %3102 = vmatprep.subr.mxu0 0.0
    %3103 = vmatpush1.msra.mxu0 0.0
    %3104 = vmatprep.subr.mxu0 0.0
    %3105 = vmatpush1.msra.mxu0 0.0
    %3106 = vmatprep.subr.mxu0 0.0
    %3107 = vmatpush1.msra.mxu0 0.0
    %3108 = vmatprep.subr.mxu0 0.0
    %3109 = vmatpush1.msra.mxu0 0.0
    %3110 = vmatprep.subr.mxu0 0.0
    %3111 = vmatpush1.msra.mxu0 0.0
    %3112 = vmatprep.subr.mxu0 0.0
    %3113 = vmatpush1.msra.mxu0 0.0
    %3114 = vmatprep.subr.mxu0 0.0
    %3115 = vmatpush1.msra.mxu0 0.0
    %3116 = vmatprep.subr.mxu0 0.0
    %3117 = vmatpush1.msra.mxu0 0.0
    %3118 = vmatprep.subr.mxu0 0.0
    %3119 = vmatpush1.msra.mxu0 0.0
    %3120 = vmatprep.subr.mxu0 0.0
    %3121 = vmatpush1.msra.mxu0 0.0
    %3122 = vmatprep.subr.mxu0 0.0
    %3123 = vmatpush1.msra.mxu0 0.0
    %3124 = vmatprep.subr.mxu0 0.0
    %3125 = vmatpush1.msra.mxu0 0.0
    %3126 = vmatprep.subr.mxu0 0.0
    %3127 = vmatpush1.msra.mxu0 0.0
    %3128 = vmatprep.subr.mxu0 0.0
    %3129 = vmatpush1.msra.mxu0 0.0
    %3130 = vmatprep.subr.mxu0 0.0
    %3131 = vmatpush1.msra.mxu0 0.0
    %3132 = vmatprep.subr.mxu0 0.0
    %3133 = vmatpush1.msra.mxu0 0.0
    %3134 = vmatprep.subr.mxu0 0.0
    %3135 = vmatpush1.msra.mxu0 0.0
    %3136 = vmatprep.mubr.f32.mxu0 0.0
    %3137 = vmatmul.mubr.f32.gmra.mrb[0].mxu0 %v3070
    %v3138 = vpop.f32.mrb[0].mxu0
    %v3139 = vadd.f32 0.0, %v3138
    %v3140 = vpop.f32.mrb[0].mxu0
    %3141 = vdwg.mxu0
    %v3143 = vsel %vm2615, %v2702, 0
    %3145 = vmatprep.subr.mxu0 0.0
    %3146 = vmatpush1.msra.mxu0 %v1912
    %3147 = vmatprep.subr.mxu0 0.0
    %3148 = vmatpush1.msra.mxu0 %v1980
    %3149 = vmatprep.subr.mxu0 0.0
    %3150 = vmatpush1.msra.mxu0 0.0
    %3151 = vmatprep.subr.mxu0 0.0
    %3152 = vmatpush1.msra.mxu0 0.0
    %3153 = vmatprep.subr.mxu0 0.0
    %3154 = vmatpush1.msra.mxu0 0.0
    %3155 = vmatprep.subr.mxu0 0.0
    %3156 = vmatpush1.msra.mxu0 0.0
    %3157 = vmatprep.subr.mxu0 0.0
    %3158 = vmatpush1.msra.mxu0 0.0
    %3159 = vmatprep.subr.mxu0 0.0
    %3160 = vmatpush1.msra.mxu0 0.0
    %3161 = vmatprep.subr.mxu0 0.0
    %3162 = vmatpush1.msra.mxu0 0.0
    %3163 = vmatprep.subr.mxu0 0.0
    %3164 = vmatpush1.msra.mxu0 0.0
    %3165 = vmatprep.subr.mxu0 0.0
    %3166 = vmatpush1.msra.mxu0 0.0
    %3167 = vmatprep.subr.mxu0 0.0
    %3168 = vmatpush1.msra.mxu0 0.0
    %3169 = vmatprep.subr.mxu0 0.0
    %3170 = vmatpush1.msra.mxu0 0.0
    %3171 = vmatprep.subr.mxu0 0.0
    %3172 = vmatpush1.msra.mxu0 0.0
    %3173 = vmatprep.subr.mxu0 0.0
    %3174 = vmatpush1.msra.mxu0 0.0
    %3175 = vmatprep.subr.mxu0 0.0
    %3176 = vmatpush1.msra.mxu0 0.0
    %3177 = vmatprep.subr.mxu0 0.0
    %3178 = vmatpush1.msra.mxu0 0.0
    %3179 = vmatprep.subr.mxu0 0.0
    %3180 = vmatpush1.msra.mxu0 0.0
    %3181 = vmatprep.subr.mxu0 0.0
    %3182 = vmatpush1.msra.mxu0 0.0
    %3183 = vmatprep.subr.mxu0 0.0
    %3184 = vmatpush1.msra.mxu0 0.0
    %3185 = vmatprep.subr.mxu0 0.0
    %3186 = vmatpush1.msra.mxu0 0.0
    %3187 = vmatprep.subr.mxu0 0.0
    %3188 = vmatpush1.msra.mxu0 0.0
    %3189 = vmatprep.subr.mxu0 0.0
    %3190 = vmatpush1.msra.mxu0 0.0
    %3191 = vmatprep.subr.mxu0 0.0
    %3192 = vmatpush1.msra.mxu0 0.0
    %3193 = vmatprep.subr.mxu0 0.0
    %3194 = vmatpush1.msra.mxu0 0.0
    %3195 = vmatprep.subr.mxu0 0.0
    %3196 = vmatpush1.msra.mxu0 0.0
    %3197 = vmatprep.subr.mxu0 0.0
    %3198 = vmatpush1.msra.mxu0 0.0
    %3199 = vmatprep.subr.mxu0 0.0
    %3200 = vmatpush1.msra.mxu0 0.0
    %3201 = vmatprep.subr.mxu0 0.0
    %3202 = vmatpush1.msra.mxu0 0.0
    %3203 = vmatprep.subr.mxu0 0.0
    %3204 = vmatpush1.msra.mxu0 0.0
    %3205 = vmatprep.subr.mxu0 0.0
    %3206 = vmatpush1.msra.mxu0 0.0
    %3207 = vmatprep.subr.mxu0 0.0
    %3208 = vmatpush1.msra.mxu0 0.0
    %3209 = vmatprep.mubr.f32.mxu0 0.0
    %3210 = vmatmul.mubr.f32.gmra.mrb[0].mxu0 %v3143
    %v3211 = vpop.f32.mrb[0].mxu0
    %v3212 = vadd.f32 0.0, %v3211
    %v3213 = vpop.f32.mrb[0].mxu0
    %3214 = vdwg.mxu0
    %v3216 = vsel %vm2615, %v2703, 0
    %3218 = vmatprep.subr.mxu0 0.0
    %3219 = vmatpush1.msra.mxu0 %v1913
    %3220 = vmatprep.subr.mxu0 0.0
    %3221 = vmatpush1.msra.mxu0 %v1981
    %3222 = vmatprep.subr.mxu0 0.0
    %3223 = vmatpush1.msra.mxu0 0.0
    %3224 = vmatprep.subr.mxu0 0.0
    %3225 = vmatpush1.msra.mxu0 0.0
    %3226 = vmatprep.subr.mxu0 0.0
    %3227 = vmatpush1.msra.mxu0 0.0
    %3228 = vmatprep.subr.mxu0 0.0
    %3229 = vmatpush1.msra.mxu0 0.0
    %3230 = vmatprep.subr.mxu0 0.0
    %3231 = vmatpush1.msra.mxu0 0.0
    %3232 = vmatprep.subr.mxu0 0.0
    %3233 = vmatpush1.msra.mxu0 0.0
    %3234 = vmatprep.subr.mxu0 0.0
    %3235 = vmatpush1.msra.mxu0 0.0
    %3236 = vmatprep.subr.mxu0 0.0
    %3237 = vmatpush1.msra.mxu0 0.0
    %3238 = vmatprep.subr.mxu0 0.0
    %3239 = vmatpush1.msra.mxu0 0.0
    %3240 = vmatprep.subr.mxu0 0.0
    %3241 = vmatpush1.msra.mxu0 0.0
    %3242 = vmatprep.subr.mxu0 0.0
    %3243 = vmatpush1.msra.mxu0 0.0
    %3244 = vmatprep.subr.mxu0 0.0
    %3245 = vmatpush1.msra.mxu0 0.0
    %3246 = vmatprep.subr.mxu0 0.0
    %3247 = vmatpush1.msra.mxu0 0.0
    %3248 = vmatprep.subr.mxu0 0.0
    %3249 = vmatpush1.msra.mxu0 0.0
    %3250 = vmatprep.subr.mxu0 0.0
    %3251 = vmatpush1.msra.mxu0 0.0
    %3252 = vmatprep.subr.mxu0 0.0
    %3253 = vmatpush1.msra.mxu0 0.0
    %3254 = vmatprep.subr.mxu0 0.0
    %3255 = vmatpush1.msra.mxu0 0.0
    %3256 = vmatprep.subr.mxu0 0.0
    %3257 = vmatpush1.msra.mxu0 0.0
    %3258 = vmatprep.subr.mxu0 0.0
    %3259 = vmatpush1.msra.mxu0 0.0
    %3260 = vmatprep.subr.mxu0 0.0
    %3261 = vmatpush1.msra.mxu0 0.0
    %3262 = vmatprep.subr.mxu0 0.0
    %3263 = vmatpush1.msra.mxu0 0.0
    %3264 = vmatprep.subr.mxu0 0.0
    %3265 = vmatpush1.msra.mxu0 0.0
    %3266 = vmatprep.subr.mxu0 0.0
    %3267 = vmatpush1.msra.mxu0 0.0
    %3268 = vmatprep.subr.mxu0 0.0
    %3269 = vmatpush1.msra.mxu0 0.0
    %3270 = vmatprep.subr.mxu0 0.0
    %3271 = vmatpush1.msra.mxu0 0.0
    %3272 = vmatprep.subr.mxu0 0.0
    %3273 = vmatpush1.msra.mxu0 0.0
    %3274 = vmatprep.subr.mxu0 0.0
    %3275 = vmatpush1.msra.mxu0 0.0
    %3276 = vmatprep.subr.mxu0 0.0
    %3277 = vmatpush1.msra.mxu0 0.0
    %3278 = vmatprep.subr.mxu0 0.0
    %3279 = vmatpush1.msra.mxu0 0.0
    %3280 = vmatprep.subr.mxu0 0.0
    %3281 = vmatpush1.msra.mxu0 0.0
    %3282 = vmatprep.mubr.f32.mxu0 0.0
    %3283 = vmatmul.mubr.f32.gmra.mrb[0].mxu0 %v3216
    %v3284 = vpop.f32.mrb[0].mxu0
    %v3285 = vadd.f32 0.0, %v3284
    %v3286 = vpop.f32.mrb[0].mxu0
    %3287 = vdwg.mxu0
    %v3288 = vcombine.low %v2774, %v2920
    %v3289 = vcombine.high %v2774, %v2920
    %v3291 = vunpack.c.l.s4 1983009808
    %v3292 = vunpack.c.0.s8 %v3291
    %v3293 = vlaneseq
    %v3294 = vshrl.u32 %v3293, 7
    %v3295 = vsub.s32 %v3292, %v3294
    %v3296 = vrot.slane %v3288, %v3295
    %v3298 = vunpack.c.l.s4 1983009808
    %v3299 = vunpack.c.0.s8 %v3298
    %v3300 = vlaneseq
    %v3301 = vshrl.u32 %v3300, 7
    %v3302 = vsub.s32 %v3299, %v3301
    %v3303 = vrot.slane %v3289, %v3302
    %v3304 = vcombine.low %v2847, %v2993
    %v3305 = vcombine.high %v2847, %v2993
    %v3307 = vunpack.c.l.s4 1983009808
    %v3308 = vunpack.c.0.s8 %v3307
    %v3309 = vlaneseq
    %v3310 = vshrl.u32 %v3309, 7
    %v3311 = vsub.s32 %v3308, %v3310
    %v3312 = vrot.slane %v3304, %v3311
    %v3314 = vunpack.c.l.s4 1983009808
    %v3315 = vunpack.c.0.s8 %v3314
    %v3316 = vlaneseq
    %v3317 = vshrl.u32 %v3316, 7
    %v3318 = vsub.s32 %v3315, %v3317
    %v3319 = vrot.slane %v3305, %v3318
    %v3320 = vcombine.low %v3296, %v3312
    %v3321 = vcombine.high %v3296, %v3312
    %v3323 = vunpack.c.l.s4 1934713408
    %v3324 = vunpack.c.0.s8 %v3323
    %v3325 = vlaneseq
    %v3326 = vshrl.u32 %v3325, 7
    %v3327 = vsub.s32 %v3324, %v3326
    %v3328 = vrot.slane %v3320, %v3327
    %v3330 = vunpack.c.l.s4 1934713408
    %v3331 = vunpack.c.0.s8 %v3330
    %v3332 = vlaneseq
    %v3333 = vshrl.u32 %v3332, 7
    %v3334 = vsub.s32 %v3331, %v3333
    %v3335 = vrot.slane %v3321, %v3334
    %v3336 = vcombine.low %v3303, %v3319
    %v3337 = vcombine.high %v3303, %v3319
    %v3339 = vunpack.c.l.s4 1934713408
    %v3340 = vunpack.c.0.s8 %v3339
    %v3341 = vlaneseq
    %v3342 = vshrl.u32 %v3341, 7
    %v3343 = vsub.s32 %v3340, %v3342
    %v3344 = vrot.slane %v3336, %v3343
    %v3346 = vunpack.c.l.s4 1934713408
    %v3347 = vunpack.c.0.s8 %v3346
    %v3348 = vlaneseq
    %v3349 = vshrl.u32 %v3348, 7
    %v3350 = vsub.s32 %v3347, %v3349
    %v3351 = vrot.slane %v3337, %v3350
    %v3352 = vcombine.high %v3328, 0.0
    %v3353 = vcombine.high %v3335, 0.0
    %v3354 = vcombine.high %v3344, 0.0
    %v3355 = vcombine.high %v3351, 0.0
    %v3356 = vcombine.low %v3066, %v3212
    %v3357 = vcombine.high %v3066, %v3212
    %v3359 = vunpack.c.l.s4 1983009808
    %v3360 = vunpack.c.0.s8 %v3359
    %v3361 = vlaneseq
    %v3362 = vshrl.u32 %v3361, 7
    %v3363 = vsub.s32 %v3360, %v3362
    %v3364 = vrot.slane %v3356, %v3363
    %v3366 = vunpack.c.l.s4 1983009808
    %v3367 = vunpack.c.0.s8 %v3366
    %v3368 = vlaneseq
    %v3369 = vshrl.u32 %v3368, 7
    %v3370 = vsub.s32 %v3367, %v3369
    %v3371 = vrot.slane %v3357, %v3370
    %v3372 = vcombine.low %v3139, %v3285
    %v3373 = vcombine.high %v3139, %v3285
    %v3375 = vunpack.c.l.s4 1983009808
    %v3376 = vunpack.c.0.s8 %v3375
    %v3377 = vlaneseq
    %v3378 = vshrl.u32 %v3377, 7
    %v3379 = vsub.s32 %v3376, %v3378
    %v3380 = vrot.slane %v3372, %v3379
    %v3382 = vunpack.c.l.s4 1983009808
    %v3383 = vunpack.c.0.s8 %v3382
    %v3384 = vlaneseq
    %v3385 = vshrl.u32 %v3384, 7
    %v3386 = vsub.s32 %v3383, %v3385
    %v3387 = vrot.slane %v3373, %v3386
    %v3388 = vcombine.low %v3364, %v3380
    %v3389 = vcombine.high %v3364, %v3380
    %v3391 = vunpack.c.l.s4 1934713408
    %v3392 = vunpack.c.0.s8 %v3391
    %v3393 = vlaneseq
    %v3394 = vshrl.u32 %v3393, 7
    %v3395 = vsub.s32 %v3392, %v3394
    %v3396 = vrot.slane %v3388, %v3395
    %v3398 = vunpack.c.l.s4 1934713408
    %v3399 = vunpack.c.0.s8 %v3398
    %v3400 = vlaneseq
    %v3401 = vshrl.u32 %v3400, 7
    %v3402 = vsub.s32 %v3399, %v3401
    %v3403 = vrot.slane %v3389, %v3402
    %v3404 = vcombine.low %v3371, %v3387
    %v3405 = vcombine.high %v3371, %v3387
    %v3407 = vunpack.c.l.s4 1934713408
    %v3408 = vunpack.c.0.s8 %v3407
    %v3409 = vlaneseq
    %v3410 = vshrl.u32 %v3409, 7
    %v3411 = vsub.s32 %v3408, %v3410
    %v3412 = vrot.slane %v3404, %v3411
    %v3414 = vunpack.c.l.s4 1934713408
    %v3415 = vunpack.c.0.s8 %v3414
    %v3416 = vlaneseq
    %v3417 = vshrl.u32 %v3416, 7
    %v3418 = vsub.s32 %v3415, %v3417
    %v3419 = vrot.slane %v3405, %v3418
    %v3420 = vcombine.high %v3396, 0.0
    %v3421 = vcombine.high %v3403, 0.0
    %v3422 = vcombine.high %v3412, 0.0
    %v3423 = vcombine.high %v3419, 0.0
    %v3424 = vcombine.low %v3328, %v3352
    %v3426 = vunpack.c.l.s4 1983009808
    %v3427 = vunpack.c.0.s8 %v3426
    %v3428 = vlaneseq
    %v3429 = vshrl.u32 %v3428, 7
    %v3430 = vsub.s32 %v3427, %v3429
    %v3431 = vrot.slane %v3424, %v3430
    %v3432 = vcombine.low %v3396, %v3420
    %v3434 = vunpack.c.l.s4 1983009808
    %v3435 = vunpack.c.0.s8 %v3434
    %v3436 = vlaneseq
    %v3437 = vshrl.u32 %v3436, 7
    %v3438 = vsub.s32 %v3435, %v3437
    %v3439 = vrot.slane %v3432, %v3438
    %v3440 = vcombine.low %v3335, %v3353
    %v3442 = vunpack.c.l.s4 1983009808
    %v3443 = vunpack.c.0.s8 %v3442
    %v3444 = vlaneseq
    %v3445 = vshrl.u32 %v3444, 7
    %v3446 = vsub.s32 %v3443, %v3445
    %v3447 = vrot.slane %v3440, %v3446
    %v3448 = vcombine.low %v3403, %v3421
    %v3450 = vunpack.c.l.s4 1983009808
    %v3451 = vunpack.c.0.s8 %v3450
    %v3452 = vlaneseq
    %v3453 = vshrl.u32 %v3452, 7
    %v3454 = vsub.s32 %v3451, %v3453
    %v3455 = vrot.slane %v3448, %v3454
    %v3456 = vcombine.low %v3431, %v3439
    %v3457 = vcombine.high %v3431, %v3439
    %v3459 = vunpack.c.l.s4 1934713408
    %v3460 = vunpack.c.0.s8 %v3459
    %v3461 = vlaneseq
    %v3462 = vshrl.u32 %v3461, 7
    %v3463 = vsub.s32 %v3460, %v3462
    %v3464 = vrot.slane %v3456, %v3463
    %v3466 = vunpack.c.l.s4 1934713408
    %v3467 = vunpack.c.0.s8 %v3466
    %v3468 = vlaneseq
    %v3469 = vshrl.u32 %v3468, 7
    %v3470 = vsub.s32 %v3467, %v3469
    %v3471 = vrot.slane %v3457, %v3470
    %v3472 = vcombine.low %v3447, %v3455
    %v3473 = vcombine.high %v3447, %v3455
    %v3475 = vunpack.c.l.s4 1934713408
    %v3476 = vunpack.c.0.s8 %v3475
    %v3477 = vlaneseq
    %v3478 = vshrl.u32 %v3477, 7
    %v3479 = vsub.s32 %v3476, %v3478
    %v3480 = vrot.slane %v3472, %v3479
    %v3482 = vunpack.c.l.s4 1934713408
    %v3483 = vunpack.c.0.s8 %v3482
    %v3484 = vlaneseq
    %v3485 = vshrl.u32 %v3484, 7
    %v3486 = vsub.s32 %v3483, %v3485
    %v3487 = vrot.slane %v3473, %v3486
    %v3488 = vcombine.low %v3464, %v3480
    %v3489 = vcombine.high %v3464, %v3480
    %v3490 = vcombine.low %v3471, %v3487
    %v3491 = vcombine.high %v3471, %v3487
    %v3492 = vcombine.low %v3344, %v3354
    %v3494 = vunpack.c.l.s4 1983009808
    %v3495 = vunpack.c.0.s8 %v3494
    %v3496 = vlaneseq
    %v3497 = vshrl.u32 %v3496, 7
    %v3498 = vsub.s32 %v3495, %v3497
    %v3499 = vrot.slane %v3492, %v3498
    %v3500 = vcombine.low %v3412, %v3422
    %v3502 = vunpack.c.l.s4 1983009808
    %v3503 = vunpack.c.0.s8 %v3502
    %v3504 = vlaneseq
    %v3505 = vshrl.u32 %v3504, 7
    %v3506 = vsub.s32 %v3503, %v3505
    %v3507 = vrot.slane %v3500, %v3506
    %v3508 = vcombine.low %v3351, %v3355
    %v3510 = vunpack.c.l.s4 1983009808
    %v3511 = vunpack.c.0.s8 %v3510
    %v3512 = vlaneseq
    %v3513 = vshrl.u32 %v3512, 7
    %v3514 = vsub.s32 %v3511, %v3513
    %v3515 = vrot.slane %v3508, %v3514
    %v3516 = vcombine.low %v3419, %v3423
    %v3518 = vunpack.c.l.s4 1983009808
    %v3519 = vunpack.c.0.s8 %v3518
    %v3520 = vlaneseq
    %v3521 = vshrl.u32 %v3520, 7
    %v3522 = vsub.s32 %v3519, %v3521
    %v3523 = vrot.slane %v3516, %v3522
    %v3524 = vcombine.low %v3499, %v3507
    %v3525 = vcombine.high %v3499, %v3507
    %v3527 = vunpack.c.l.s4 1934713408
    %v3528 = vunpack.c.0.s8 %v3527
    %v3529 = vlaneseq
    %v3530 = vshrl.u32 %v3529, 7
    %v3531 = vsub.s32 %v3528, %v3530
    %v3532 = vrot.slane %v3524, %v3531
    %v3534 = vunpack.c.l.s4 1934713408
    %v3535 = vunpack.c.0.s8 %v3534
    %v3536 = vlaneseq
    %v3537 = vshrl.u32 %v3536, 7
    %v3538 = vsub.s32 %v3535, %v3537
    %v3539 = vrot.slane %v3525, %v3538
    %v3540 = vcombine.low %v3515, %v3523
    %v3541 = vcombine.high %v3515, %v3523
    %v3543 = vunpack.c.l.s4 1934713408
    %v3544 = vunpack.c.0.s8 %v3543
    %v3545 = vlaneseq
    %v3546 = vshrl.u32 %v3545, 7
    %v3547 = vsub.s32 %v3544, %v3546
    %v3548 = vrot.slane %v3540, %v3547
    %v3550 = vunpack.c.l.s4 1934713408
    %v3551 = vunpack.c.0.s8 %v3550
    %v3552 = vlaneseq
    %v3553 = vshrl.u32 %v3552, 7
    %v3554 = vsub.s32 %v3551, %v3553
    %v3555 = vrot.slane %v3541, %v3554
    %v3556 = vcombine.low %v3532, %v3548
    %v3557 = vcombine.high %v3532, %v3548
    %v3558 = vcombine.low %v3539, %v3555
    %v3559 = vcombine.high %v3539, %v3555
    %3562 = vrot.lane.b32.xlu0 %v3489, 8
    %v3563 = vpop.permute.xlu0 %3562
    %3564 = vrot.lane.b32.xlu0 %v3557, 8
    %v3565 = vpop.permute.xlu0 %3564
    %3570 = vrot.lane.b32.xlu0 %v3490, 16
    %v3571 = vpop.permute.xlu0 %3570
    %3572 = vrot.lane.b32.xlu0 %v3558, 16
    %v3573 = vpop.permute.xlu0 %3572
    %3578 = vrot.lane.b32.xlu0 %v3491, 24
    %v3579 = vpop.permute.xlu0 %3578
    %3580 = vrot.lane.b32.xlu0 %v3559, 24
    %v3581 = vpop.permute.xlu0 %3580
    %v3584 = vsel %vm1982, %v3488, %v3563
    %v3585 = vsel %vm1982, %v3556, %v3565
    %v3586 = vsel %vm2615, %v3584, %v3571
    %v3587 = vsel %vm2615, %v3585, %v3573
    %vm3588 = vcmask 195584
    %v3589 = vsel %vm3588, %v3586, %v3579
    %v3590 = vsel %vm3588, %v3587, %v3581
    %v3591 = vld [vmem:[#allocation10] sm:$0xff]
    %v3592 = vld [vmem:[#allocation10 + $0x8] sm:$0xff]
    %v3593 = vld [vmem:[#allocation10 + $0x10] sm:$0xff]
    %v3594 = vld [vmem:[#allocation10 + $0x18] sm:$0xff]
    %v3595 = vld [vmem:[%s7] sm:$0x1]
    %v3597 = vlaneseq
    %v3598 = vshrl.u32 %v3597, 7
    %v3599 = vsub.s32 0, %v3598
    %v3600 = vrot.slane %v3595, %v3599
    %v3603 = vsel %vm181, %v3589, 0
    %v3606 = vsel %vm181, %v3590, 0
    %3608 = vmatprep.subr.mxu0 0.0
    %3609 = vmatpush1.msra.mxu0 %v3591
    %3610 = vmatprep.subr.mxu0 0.0
    %3611 = vmatpush1.msra.mxu0 %v3592
    %3612 = vmatprep.subr.mxu0 0.0
    %3613 = vmatpush1.msra.mxu0 %v3593
    %3614 = vmatprep.subr.mxu0 0.0
    %3615 = vmatpush1.msra.mxu0 %v3594
    %3616 = vmatprep.subr.mxu0 0.0
    %3617 = vmatpush1.msra.mxu0 0.0
    %3618 = vmatprep.subr.mxu0 0.0
    %3619 = vmatpush1.msra.mxu0 0.0
    %3620 = vmatprep.subr.mxu0 0.0
    %3621 = vmatpush1.msra.mxu0 0.0
    %3622 = vmatprep.subr.mxu0 0.0
    %3623 = vmatpush1.msra.mxu0 0.0
    %3624 = vmatprep.subr.mxu0 0.0
    %3625 = vmatpush1.msra.mxu0 0.0
    %3626 = vmatprep.subr.mxu0 0.0
    %3627 = vmatpush1.msra.mxu0 0.0
    %3628 = vmatprep.subr.mxu0 0.0
    %3629 = vmatpush1.msra.mxu0 0.0
    %3630 = vmatprep.subr.mxu0 0.0
    %3631 = vmatpush1.msra.mxu0 0.0
    %3632 = vmatprep.subr.mxu0 0.0
    %3633 = vmatpush1.msra.mxu0 0.0
    %3634 = vmatprep.subr.mxu0 0.0
    %3635 = vmatpush1.msra.mxu0 0.0
    %3636 = vmatprep.subr.mxu0 0.0
    %3637 = vmatpush1.msra.mxu0 0.0
    %3638 = vmatprep.subr.mxu0 0.0
    %3639 = vmatpush1.msra.mxu0 0.0
    %3640 = vmatprep.subr.mxu0 0.0
    %3641 = vmatpush1.msra.mxu0 0.0
    %3642 = vmatprep.subr.mxu0 0.0
    %3643 = vmatpush1.msra.mxu0 0.0
    %3644 = vmatprep.subr.mxu0 0.0
    %3645 = vmatpush1.msra.mxu0 0.0
    %3646 = vmatprep.subr.mxu0 0.0
    %3647 = vmatpush1.msra.mxu0 0.0
    %3648 = vmatprep.subr.mxu0 0.0
    %3649 = vmatpush1.msra.mxu0 0.0
    %3650 = vmatprep.subr.mxu0 0.0
    %3651 = vmatpush1.msra.mxu0 0.0
    %3652 = vmatprep.subr.mxu0 0.0
    %3653 = vmatpush1.msra.mxu0 0.0
    %3654 = vmatprep.subr.mxu0 0.0
    %3655 = vmatpush1.msra.mxu0 0.0
    %3656 = vmatprep.subr.mxu0 0.0
    %3657 = vmatpush1.msra.mxu0 0.0
    %3658 = vmatprep.subr.mxu0 0.0
    %3659 = vmatpush1.msra.mxu0 0.0
    %3660 = vmatprep.subr.mxu0 0.0
    %3661 = vmatpush1.msra.mxu0 0.0
    %3662 = vmatprep.subr.mxu0 0.0
    %3663 = vmatpush1.msra.mxu0 0.0
    %3664 = vmatprep.subr.mxu0 0.0
    %3665 = vmatpush1.msra.mxu0 0.0
    %3666 = vmatprep.subr.mxu0 0.0
    %3667 = vmatpush1.msra.mxu0 0.0
    %3668 = vmatprep.subr.mxu0 0.0
    %3669 = vmatpush1.msra.mxu0 0.0
    %3670 = vmatprep.subr.mxu0 0.0
    %3671 = vmatpush1.msra.mxu0 0.0
    %3672 = vmatprep.mubr.f32.mxu0 0.0
    %3673 = vmatmul.mubr.f32.gmra.mrb[0].mxu0 %v3603
    %v3674 = vpop.f32.mrb[0].mxu0
    %v3675 = vadd.f32 %v3600, %v3674
    %v3676 = vpop.f32.mrb[0].mxu0
    %3677 = vmatprep.mubr.f32.mxu0 0.0
    %3678 = vmatmul.mubr.f32.gmra.mrb[0].mxu0 %v3606
    %v3679 = vpop.f32.mrb[0].mxu0
    %v3680 = vadd.f32 %v3600, %v3679
    %v3681 = vpop.f32.mrb[0].mxu0
    %3682 = vdwg.mxu0
    %v3685 = vcombine.high %v3675, %v3675
    %v3687 = vunpack.c.l.s4 1983009808
    %v3688 = vunpack.c.0.s8 %v3687
    %v3689 = vlaneseq
    %v3690 = vshrl.u32 %v3689, 7
    %v3691 = vsub.s32 %v3688, %v3690
    %v3692 = vrot.slane %v3675, %v3691
    %v3694 = vunpack.c.l.s4 1983009808
    %v3695 = vunpack.c.0.s8 %v3694
    %v3696 = vlaneseq
    %v3697 = vshrl.u32 %v3696, 7
    %v3698 = vsub.s32 %v3695, %v3697
    %v3699 = vrot.slane %v3685, %v3698
    %v3700 = vcombine.high %v3692, %v3692
    %v3701 = vcombine.high %v3699, %v3699
    %v3702 = vcombine.high %v3680, %v3680
    %v3704 = vunpack.c.l.s4 1983009808
    %v3705 = vunpack.c.0.s8 %v3704
    %v3706 = vlaneseq
    %v3707 = vshrl.u32 %v3706, 7
    %v3708 = vsub.s32 %v3705, %v3707
    %v3709 = vrot.slane %v3680, %v3708
    %v3711 = vunpack.c.l.s4 1983009808
    %v3712 = vunpack.c.0.s8 %v3711
    %v3713 = vlaneseq
    %v3714 = vshrl.u32 %v3713, 7
    %v3715 = vsub.s32 %v3712, %v3714
    %v3716 = vrot.slane %v3702, %v3715
    %v3717 = vcombine.high %v3709, %v3709
    %v3718 = vcombine.high %v3716, %v3716
    %v3727 = vadd.f32 %v120, %v3692
    %v3728 = vadd.f32 %v121, %v3700
    %v3729 = vadd.f32 %v122, %v3699
    %v3730 = vadd.f32 %v123, %v3701
    %v3731 = vadd.f32 %v124, %v3709
    %v3732 = vadd.f32 %v125, %v3717
    %v3733 = vadd.f32 %v126, %v3716
    %v3734 = vadd.f32 %v127, %v3718
    %v3743 = vcombine.low %v3727, %v3728
    %v3744 = vcombine.low %v3729, %v3730
    %v3746 = vunpack.c.l.s4 1983009808
    %v3747 = vunpack.c.0.s8 %v3746
    %v3748 = vlaneseq
    %v3749 = vshrl.u32 %v3748, 7
    %v3750 = vsub.s32 %v3747, %v3749
    %v3751 = vrot.slane %v3743, %v3750
    %v3753 = vunpack.c.l.s4 1983009808
    %v3754 = vunpack.c.0.s8 %v3753
    %v3755 = vlaneseq
    %v3756 = vshrl.u32 %v3755, 7
    %v3757 = vsub.s32 %v3754, %v3756
    %v3758 = vrot.slane %v3744, %v3757
    %v3759 = vcombine.low %v3751, %v3758
    %v3760 = vcombine.low %v3731, %v3732
    %v3761 = vcombine.low %v3733, %v3734
    %v3763 = vunpack.c.l.s4 1983009808
    %v3764 = vunpack.c.0.s8 %v3763
    %v3765 = vlaneseq
    %v3766 = vshrl.u32 %v3765, 7
    %v3767 = vsub.s32 %v3764, %v3766
    %v3768 = vrot.slane %v3760, %v3767
    %v3770 = vunpack.c.l.s4 1983009808
    %v3771 = vunpack.c.0.s8 %v3770
    %v3772 = vlaneseq
    %v3773 = vshrl.u32 %v3772, 7
    %v3774 = vsub.s32 %v3771, %v3773
    %v3775 = vrot.slane %v3761, %v3774
    %v3776 = vcombine.low %v3768, %v3775
    %v3779 = vsel %vm181, %v3759, 0.0
    %3780 = vadd.xlane.f32.xlu0 %v3779
    %v3781 = vpop.xlane.xlu0 %3780
    %v3782 = vsel %vm181, %v3776, 0.0
    %3783 = vadd.xlane.f32.xlu0 %v3782
    %v3784 = vpop.xlane.xlu0 %3783
    %v3785 = vrcp.pop 32.0
    %v3786 = vmul.f32 %v3781, %v3785
    %v3787 = vmul.f32 %v3784, %v3785
    %v3791 = vunpack.c.l.s4 269488144
    %v3792 = vunpack.c.0.s8 %v3791
    %v3793 = vlaneseq
    %v3794 = vshrl.u32 %v3793, 7
    %v3795 = vsub.s32 %v3792, %v3794
    %v3796 = vrot.slane %v3786, %v3795
    %v3798 = vunpack.c.l.s4 842150450
    %v3799 = vunpack.c.0.s8 %v3798
    %v3800 = vlaneseq
    %v3801 = vshrl.u32 %v3800, 7
    %v3802 = vsub.s32 %v3799, %v3801
    %v3803 = vrot.slane %v3786, %v3802
    %v3805 = vunpack.c.l.s4 1414812756
    %v3806 = vunpack.c.0.s8 %v3805
    %v3807 = vlaneseq
    %v3808 = vshrl.u32 %v3807, 7
    %v3809 = vsub.s32 %v3806, %v3808
    %v3810 = vrot.slane %v3786, %v3809
    %v3812 = vunpack.c.l.s4 1987475062
    %v3813 = vunpack.c.0.s8 %v3812
    %v3814 = vlaneseq
    %v3815 = vshrl.u32 %v3814, 7
    %v3816 = vsub.s32 %v3813, %v3815
    %v3817 = vrot.slane %v3786, %v3816
    %v3819 = vunpack.c.l.s4 269488144
    %v3820 = vunpack.c.0.s8 %v3819
    %v3821 = vlaneseq
    %v3822 = vshrl.u32 %v3821, 7
    %v3823 = vsub.s32 %v3820, %v3822
    %v3824 = vrot.slane %v3787, %v3823
    %v3826 = vunpack.c.l.s4 842150450
    %v3827 = vunpack.c.0.s8 %v3826
    %v3828 = vlaneseq
    %v3829 = vshrl.u32 %v3828, 7
    %v3830 = vsub.s32 %v3827, %v3829
    %v3831 = vrot.slane %v3787, %v3830
    %v3833 = vunpack.c.l.s4 1414812756
    %v3834 = vunpack.c.0.s8 %v3833
    %v3835 = vlaneseq
    %v3836 = vshrl.u32 %v3835, 7
    %v3837 = vsub.s32 %v3834, %v3836
    %v3838 = vrot.slane %v3787, %v3837
    %v3840 = vunpack.c.l.s4 1987475062
    %v3841 = vunpack.c.0.s8 %v3840
    %v3842 = vlaneseq
    %v3843 = vshrl.u32 %v3842, 7
    %v3844 = vsub.s32 %v3841, %v3843
    %v3845 = vrot.slane %v3787, %v3844
    %v3854 = vsub.f32 %v3727, %v3796
    %v3855 = vsub.f32 %v3728, %v3803
    %v3856 = vsub.f32 %v3729, %v3810
    %v3857 = vsub.f32 %v3730, %v3817
    %v3858 = vsub.f32 %v3731, %v3824
    %v3859 = vsub.f32 %v3732, %v3831
    %v3860 = vsub.f32 %v3733, %v3838
    %v3861 = vsub.f32 %v3734, %v3845
    %v3862 = vmul.f32 %v3854, %v3854
    %v3863 = vmul.f32 %v3855, %v3855
    %v3864 = vmul.f32 %v3856, %v3856
    %v3865 = vmul.f32 %v3857, %v3857
    %v3866 = vmul.f32 %v3858, %v3858
    %v3867 = vmul.f32 %v3859, %v3859
    %v3868 = vmul.f32 %v3860, %v3860
    %v3869 = vmul.f32 %v3861, %v3861
    %v3878 = vcombine.low %v3862, %v3863
    %v3879 = vcombine.low %v3864, %v3865
    %v3881 = vunpack.c.l.s4 1983009808
    %v3882 = vunpack.c.0.s8 %v3881
    %v3883 = vlaneseq
    %v3884 = vshrl.u32 %v3883, 7
    %v3885 = vsub.s32 %v3882, %v3884
    %v3886 = vrot.slane %v3878, %v3885
    %v3888 = vunpack.c.l.s4 1983009808
    %v3889 = vunpack.c.0.s8 %v3888
    %v3890 = vlaneseq
    %v3891 = vshrl.u32 %v3890, 7
    %v3892 = vsub.s32 %v3889, %v3891
    %v3893 = vrot.slane %v3879, %v3892
    %v3894 = vcombine.low %v3886, %v3893
    %v3895 = vcombine.low %v3866, %v3867
    %v3896 = vcombine.low %v3868, %v3869
    %v3898 = vunpack.c.l.s4 1983009808
    %v3899 = vunpack.c.0.s8 %v3898
    %v3900 = vlaneseq
    %v3901 = vshrl.u32 %v3900, 7
    %v3902 = vsub.s32 %v3899, %v3901
    %v3903 = vrot.slane %v3895, %v3902
    %v3905 = vunpack.c.l.s4 1983009808
    %v3906 = vunpack.c.0.s8 %v3905
    %v3907 = vlaneseq
    %v3908 = vshrl.u32 %v3907, 7
    %v3909 = vsub.s32 %v3906, %v3908
    %v3910 = vrot.slane %v3896, %v3909
    %v3911 = vcombine.low %v3903, %v3910
    %v3914 = vsel %vm181, %v3894, 0.0
    %3915 = vadd.xlane.f32.xlu0 %v3914
    %v3916 = vpop.xlane.xlu0 %3915
    %v3917 = vsel %vm181, %v3911, 0.0
    %3918 = vadd.xlane.f32.xlu0 %v3917
    %v3919 = vpop.xlane.xlu0 %3918
    %v3920 = vmul.f32 %v3916, %v3785
    %v3921 = vmul.f32 %v3919, %v3785
    %v3922 = vadd.f32 %v3920, 1e-05
    %v3923 = vadd.f32 %v3921, 1e-05
    %v3924 = vrsqrt.pop %v3922
    %v3925 = vrsqrt.pop %v3923
    %v3929 = vunpack.c.l.s4 269488144
    %v3930 = vunpack.c.0.s8 %v3929
    %v3931 = vlaneseq
    %v3932 = vshrl.u32 %v3931, 7
    %v3933 = vsub.s32 %v3930, %v3932
    %v3934 = vrot.slane %v3924, %v3933
    %v3936 = vunpack.c.l.s4 842150450
    %v3937 = vunpack.c.0.s8 %v3936
    %v3938 = vlaneseq
    %v3939 = vshrl.u32 %v3938, 7
    %v3940 = vsub.s32 %v3937, %v3939
    %v3941 = vrot.slane %v3924, %v3940
    %v3943 = vunpack.c.l.s4 1414812756
    %v3944 = vunpack.c.0.s8 %v3943
    %v3945 = vlaneseq
    %v3946 = vshrl.u32 %v3945, 7
    %v3947 = vsub.s32 %v3944, %v3946
    %v3948 = vrot.slane %v3924, %v3947
    %v3950 = vunpack.c.l.s4 1987475062
    %v3951 = vunpack.c.0.s8 %v3950
    %v3952 = vlaneseq
    %v3953 = vshrl.u32 %v3952, 7
    %v3954 = vsub.s32 %v3951, %v3953
    %v3955 = vrot.slane %v3924, %v3954
    %v3957 = vunpack.c.l.s4 269488144
    %v3958 = vunpack.c.0.s8 %v3957
    %v3959 = vlaneseq
    %v3960 = vshrl.u32 %v3959, 7
    %v3961 = vsub.s32 %v3958, %v3960
    %v3962 = vrot.slane %v3925, %v3961
    %v3964 = vunpack.c.l.s4 842150450
    %v3965 = vunpack.c.0.s8 %v3964
    %v3966 = vlaneseq
    %v3967 = vshrl.u32 %v3966, 7
    %v3968 = vsub.s32 %v3965, %v3967
    %v3969 = vrot.slane %v3925, %v3968
    %v3971 = vunpack.c.l.s4 1414812756
    %v3972 = vunpack.c.0.s8 %v3971
    %v3973 = vlaneseq
    %v3974 = vshrl.u32 %v3973, 7
    %v3975 = vsub.s32 %v3972, %v3974
    %v3976 = vrot.slane %v3925, %v3975
    %v3978 = vunpack.c.l.s4 1987475062
    %v3979 = vunpack.c.0.s8 %v3978
    %v3980 = vlaneseq
    %v3981 = vshrl.u32 %v3980, 7
    %v3982 = vsub.s32 %v3979, %v3981
    %v3983 = vrot.slane %v3925, %v3982
    %v3992 = vmul.f32 %v3854, %v3934
    %v3993 = vmul.f32 %v3855, %v3941
    %v3994 = vmul.f32 %v3856, %v3948
    %v3995 = vmul.f32 %v3857, %v3955
    %v3996 = vmul.f32 %v3858, %v3962
    %v3997 = vmul.f32 %v3859, %v3969
    %v3998 = vmul.f32 %v3860, %v3976
    %v3999 = vmul.f32 %v3861, %v3983
    %v4000 = vld [vmem:[%s8] sm:$0x1]
    %v4002 = vlaneseq
    %v4003 = vshrl.u32 %v4002, 7
    %v4004 = vsub.s32 0, %v4003
    %v4005 = vrot.slane %v4000, %v4004
    %v4006 = vcombine.high %v4005, %v4005
    %v4008 = vunpack.c.l.s4 1983009808
    %v4009 = vunpack.c.0.s8 %v4008
    %v4010 = vlaneseq
    %v4011 = vshrl.u32 %v4010, 7
    %v4012 = vsub.s32 %v4009, %v4011
    %v4013 = vrot.slane %v4005, %v4012
    %v4015 = vunpack.c.l.s4 1983009808
    %v4016 = vunpack.c.0.s8 %v4015
    %v4017 = vlaneseq
    %v4018 = vshrl.u32 %v4017, 7
    %v4019 = vsub.s32 %v4016, %v4018
    %v4020 = vrot.slane %v4006, %v4019
    %v4021 = vcombine.high %v4013, %v4013
    %v4022 = vcombine.high %v4020, %v4020
    %v4027 = vmul.f32 %v3992, %v4013
    %v4028 = vmul.f32 %v3993, %v4021
    %v4029 = vmul.f32 %v3994, %v4020
    %v4030 = vmul.f32 %v3995, %v4022
    %v4031 = vmul.f32 %v3996, %v4013
    %v4032 = vmul.f32 %v3997, %v4021
    %v4033 = vmul.f32 %v3998, %v4020
    %v4034 = vmul.f32 %v3999, %v4022
    %v4035 = vld [vmem:[%s9] sm:$0x1]
    %v4037 = vlaneseq
    %v4038 = vshrl.u32 %v4037, 7
    %v4039 = vsub.s32 0, %v4038
    %v4040 = vrot.slane %v4035, %v4039
    %v4041 = vcombine.high %v4040, %v4040
    %v4043 = vunpack.c.l.s4 1983009808
    %v4044 = vunpack.c.0.s8 %v4043
    %v4045 = vlaneseq
    %v4046 = vshrl.u32 %v4045, 7
    %v4047 = vsub.s32 %v4044, %v4046
    %v4048 = vrot.slane %v4040, %v4047
    %v4050 = vunpack.c.l.s4 1983009808
    %v4051 = vunpack.c.0.s8 %v4050
    %v4052 = vlaneseq
    %v4053 = vshrl.u32 %v4052, 7
    %v4054 = vsub.s32 %v4051, %v4053
    %v4055 = vrot.slane %v4041, %v4054
    %v4056 = vcombine.high %v4048, %v4048
    %v4057 = vcombine.high %v4055, %v4055
    %v4062 = vadd.f32 %v4027, %v4048
    %v4063 = vadd.f32 %v4028, %v4056
    %v4064 = vadd.f32 %v4029, %v4055
    %v4065 = vadd.f32 %v4030, %v4057
    %v4066 = vadd.f32 %v4031, %v4048
    %v4067 = vadd.f32 %v4032, %v4056
    %v4068 = vadd.f32 %v4033, %v4055
    %v4069 = vadd.f32 %v4034, %v4057
    %vm4070 = vcmask 254976
    %4071 = vst.msk [vmem:[#allocation11] sm:$0x3] %vm4070, %v4062
    %4072 = vst.msk [vmem:[#allocation11 + $0x2] sm:$0x3] %vm4070, %v4063
    %4073 = vst.msk [vmem:[#allocation11 + $0x4] sm:$0x3] %vm4070, %v4064
    %4074 = vst.msk [vmem:[#allocation11 + $0x6] sm:$0x3] %vm4070, %v4065
    %4075 = vst.msk [vmem:[#allocation11 + $0x8] sm:$0x3] %vm4070, %v4066
    %4076 = vst.msk [vmem:[#allocation11 + $0xa] sm:$0x3] %vm4070, %v4067
    %4077 = vst.msk [vmem:[#allocation11 + $0xc] sm:$0x3] %vm4070, %v4068
    %4078 = vst.msk [vmem:[#allocation11 + $0xe] sm:$0x3] %vm4070, %v4069
    // Predicated region
    $region62: #{tpu_custom_call.1} parent=1 // pred_check
      _
    $region63: #{tpu_custom_call.1} parent=1 // pred_check_branch
      %4080 = sbr.rel (0) target = $region65
    $region64: #{tpu_custom_call.1} parent=1 // pred_region
      %s4082 = ssub.s32 256, 256
      %4083 = vsyncadd [#allocation4], %s4082
      %s4084 = sshll.u32 [#allocation11], 4
      %s4085 = int_to_ptr.vmem [resolvable:$true] %s4084
      %4090 = dma.vmem_to_hbm [thread:$0]  %s4085, 256, %s10, [#allocation4], 32, 32, 2
    $region65: #{tpu_custom_call.1} parent=1 // pred_fallthru
      _
    // Predicated region
    $region66: #{tpu_custom_call.1} parent=1 // pred_check
      _
    $region67: #{tpu_custom_call.1} parent=1 // pred_check_branch
      %4092 = sbr.rel (0) target = $region69
    $region68: #{tpu_custom_call.1} parent=1 // pred_region
      %4093 = dma.done [#allocation4], 256
    $region69: #{tpu_custom_call.1} parent=1 // pred_fallthru
      _
    %4094 = vsyncpa [#allocation3], 1
    %4095 = vsyncpa [#allocation6], 1
    %4096 = vsyncpa [#allocation9], 1
    %4097 = vsyncpa [#allocation4], 1

</llo_original>
